<compile_context>
chip_gen: v5e
topology: v5e:2x2
jax: 0.10.0
libtpu: 0.0.40
codegen_flags: <defaults>
</compile_context>

<pallas_src>
import functools

import jax
import jax.numpy as jnp
from jax.experimental import pallas as pl
from jax.experimental.pallas import tpu as pltpu

_LN_EPS = 1e-5
# Explicit scoped-VMEM limit: safe on v5e/v6e (128 MiB physical) and leaves
# headroom on v7x (64 MiB physical).  Raise together with tile/weight sizes.
_VMEM_LIMIT = 32 * 1024 * 1024


def _largest_divisor_leq(n, cap):
    cap = max(1, min(n, cap))
    d = cap
    while n % d:
        d -= 1
    return d


def _layer_norm_f32(s, gamma_f32, beta_f32, eps):
    mean = jnp.mean(s, axis=-1, keepdims=True)
    c = s - mean
    var = jnp.mean(c * c, axis=-1, keepdims=True)   # biased variance (PyTorch LN)
    inv = jax.lax.rsqrt(var + eps)
    return c * inv * gamma_f32 + beta_f32


# ---------------------------------------------------------------------------
# Fused: (optional +pos) -> single-head attention -> residual add -> LayerNorm1
# ---------------------------------------------------------------------------
def _attn_ln_kernel(*refs, scale, eps, add_pos):
    if add_pos:
        (x_ref, pos_ref, wqkv_ref, bqkv_ref, wo_ref, bo_ref,
         g_ref, bln_ref, o_ref) = refs
    else:
        (x_ref, wqkv_ref, bqkv_ref, wo_ref, bo_ref,
         g_ref, bln_ref, o_ref) = refs

    x = x_ref[...]                                   # [TB, S, E]
    if add_pos:
        x = x + pos_ref[...]                         # pos folded into layer 0
    TB, S, E = x.shape
    x2 = x.reshape(TB * S, E)                        # pack batch into MXU M dim

    # Fused QKV projection: one [TB*S, E] @ [E, 3E] MXU issue, one bias add.
    qkv = jnp.dot(x2, wqkv_ref[...], preferred_element_type=jnp.float32)
    qkv = qkv + bqkv_ref[...].astype(jnp.float32)
    q = qkv[:, 0 * E:1 * E].reshape(TB, S, E)        # lane-aligned slices (E=128)
    k = qkv[:, 1 * E:2 * E].reshape(TB, S, E)
    v = qkv[:, 2 * E:3 * E].reshape(TB, S, E)

    # scores = Q K^T / sqrt(E); batched contraction, no explicit transpose.
    # TODO(synk): for large S (>= ~1K, esp. v5e 16 MiB scoped VMEM) switch to
    #             flash-style tq/tk tiling with online softmax.
    scores = jnp.einsum('bqd,bkd->bqk', q, k,
                        preferred_element_type=jnp.float32) * scale
    scores = scores - jnp.max(scores, axis=-1, keepdims=True)
    p = jnp.exp(scores)
    p = p * pl.reciprocal(jnp.sum(p, axis=-1, keepdims=True), approx=True)
    # Dropout on attention weights (eval mode) == identity.

    ctx = jnp.einsum('bqk,bkd->bqd', p.astype(x.dtype), v.astype(x.dtype),
                     preferred_element_type=jnp.float32)
    ctx2 = ctx.reshape(TB * S, E).astype(x.dtype)
    attn = jnp.dot(ctx2, wo_ref[...], preferred_element_type=jnp.float32)
    attn = attn + bo_ref[...].astype(jnp.float32)

    # Fused residual add + LayerNorm1 epilogue (saves an HBM round-trip).
    s = x2.astype(jnp.float32) + attn
    y = _layer_norm_f32(s, g_ref[...].astype(jnp.float32),
                        bln_ref[...].astype(jnp.float32), eps)
    o_ref[...] = y.reshape(TB, S, E).astype(o_ref.dtype)


def self_attention_ln(x, pos, wqkv, bqkv, wo, bo, gamma, beta, *, eps=_LN_EPS):
    """Returns LN1((x [+ pos]) + Attention(x [+ pos])).  x: [B, S, E]."""
    B, S, E = x.shape
    add_pos = pos is not None
    scale = 1.0 / (E ** 0.5)
    # Pack batches per grid step so TB*S tokens fill the MXU M rows (~256).
    TB = _largest_divisor_leq(B, max(1, 256 // S))
    kernel = functools.partial(_attn_ln_kernel, scale=scale, eps=eps,
                               add_pos=add_pos)

    # Resident weights/biases: constant index_map keeps them in VMEM.
    # TODO(synk): at large E add pipeline_mode=pl.Buffered(1) on these specs to
    #             drop the pointless second VMEM buffer (negligible at E=128).
    w_res = lambda shape: pl.BlockSpec(shape, lambda b: (0, 0))

    in_specs = [pl.BlockSpec((TB, S, E), lambda b: (b, 0, 0))]
    inputs = [x]
    if add_pos:
        in_specs.append(pl.BlockSpec((1, S, E), lambda b: (0, 0, 0)))
        inputs.append(pos)
    in_specs += [w_res((E, 3 * E)), w_res((1, 3 * E)),
                 w_res((E, E)), w_res((1, E)),
                 w_res((1, E)), w_res((1, E))]
    inputs += [wqkv, bqkv.reshape(1, 3 * E), wo, bo.reshape(1, E),
               gamma.reshape(1, E), beta.reshape(1, E)]

    M = B * S
    itemsize = x.dtype.itemsize
    cost = pl.CostEstimate(
        flops=8 * M * E * E + 4 * B * S * S * E + 10 * M * E,
        transcendentals=B * S * S + M,
        bytes_accessed=(2 * M * E + 4 * E * E + 6 * E) * itemsize)

    return pl.pallas_call(
        kernel,
        out_shape=jax.ShapeDtypeStruct((B, S, E), x.dtype),
        grid_spec=pl.GridSpec(
            grid=(B // TB,),
            in_specs=in_specs,
            out_specs=pl.BlockSpec((TB, S, E), lambda b: (b, 0, 0)),
        ),
        # TODO(synk): on v7x verify both TensorCores are busy; if one idles,
        #             switch this axis to pltpu.CORE_PARALLEL / pl.core_map.
        compiler_params=pltpu.CompilerParams(
            dimension_semantics=("parallel",),
            vmem_limit_bytes=_VMEM_LIMIT),
        cost_estimate=cost,
    )(*inputs)


# ---------------------------------------------------------------------------
# Fused: FFN (Linear -> ReLU -> Dropout(eval) -> Linear) -> residual add -> LN2
# ---------------------------------------------------------------------------
def _ffn_ln_kernel(x_ref, w1_ref, b1_ref, w2_ref, b2_ref, g_ref, bln_ref,
                   o_ref, *, eps):
    # x_ref: [TM, E]  w1: [E, H]  b1: [1, H]  w2: [H, E]  b2: [1, E]
    x = x_ref[...]                                   # native dtype -> MXU
    h = jnp.dot(x, w1_ref[...], preferred_element_type=jnp.float32)
    h = jnp.maximum(h + b1_ref[...].astype(jnp.float32), 0.0)   # bias + ReLU
    # Dropout (eval mode) == identity.
    h = h.astype(x.dtype)                            # keep 2nd matmul MXU-native
    y = jnp.dot(h, w2_ref[...], preferred_element_type=jnp.float32)
    y = y + b2_ref[...].astype(jnp.float32)
    # Fused residual add + LayerNorm2 epilogue.
    s = x.astype(jnp.float32) + y
    out = _layer_norm_f32(s, g_ref[...].astype(jnp.float32),
                          bln_ref[...].astype(jnp.float32), eps)
    o_ref[...] = out.astype(o_ref.dtype)


def feed_forward_ln(x, w1, b1, w2, b2, gamma, beta, *, eps=_LN_EPS, tm=512):
    """Returns LN2(x + FFN(x)).  x: [B, S, E]."""
    B, S, E = x.shape
    H = w1.shape[1]
    M = B * S
    TM = M if M <= tm else tm                        # full extent for toy M

    x2d = x.reshape(M, E)
    itemsize = x.dtype.itemsize
    cost = pl.CostEstimate(
        flops=4 * M * E * H + 10 * M * E,
        transcendentals=M,
        bytes_accessed=(2 * M * E + 2 * E * H + H + 3 * E) * itemsize)

    w_res = lambda shape: pl.BlockSpec(shape, lambda i: (0, 0))
    out = pl.pallas_call(
        functools.partial(_ffn_ln_kernel, eps=eps),
        out_shape=jax.ShapeDtypeStruct((M, E), x.dtype),
        grid_spec=pl.GridSpec(
            grid=(pl.cdiv(M, TM),),
            in_specs=[
                pl.BlockSpec((TM, E), lambda i: (i, 0)),   # activation tile
                w_res((E, H)), w_res((1, H)),              # resident weights
                w_res((H, E)), w_res((1, E)),
                w_res((1, E)), w_res((1, E)),              # LN2 gamma/beta
            ],
            out_specs=pl.BlockSpec((TM, E), lambda i: (i, 0)),
        ),
        compiler_params=pltpu.CompilerParams(
            dimension_semantics=("parallel",),
            vmem_limit_bytes=_VMEM_LIMIT),
        cost_estimate=cost,
    )(x2d, w1, b1.reshape(1, H), w2, b2.reshape(1, E),
      gamma.reshape(1, E), beta.reshape(1, E))
    return out.reshape(B, S, E)


# ---------------------------------------------------------------------------
# LN-only kernel for the final norm (no zeros residual round-trip)
# ---------------------------------------------------------------------------
def _ln_kernel(x_ref, g_ref, b_ref, o_ref, *, eps):
    s = x_ref[...].astype(jnp.float32)
    o_ref[...] = _layer_norm_f32(
        s, g_ref[...].astype(jnp.float32), b_ref[...].astype(jnp.float32),
        eps).astype(o_ref.dtype)


def layer_norm(x, gamma, beta, *, eps=_LN_EPS, tm=512):
    B, S, E = x.shape
    M = B * S
    TM = M if M <= tm else tm
    out = pl.pallas_call(
        functools.partial(_ln_kernel, eps=eps),
        out_shape=jax.ShapeDtypeStruct((M, E), x.dtype),
        grid_spec=pl.GridSpec(
            grid=(pl.cdiv(M, TM),),
            in_specs=[
                pl.BlockSpec((TM, E), lambda i: (i, 0)),
                pl.BlockSpec((1, E), lambda i: (0, 0)),
                pl.BlockSpec((1, E), lambda i: (0, 0)),
            ],
            out_specs=pl.BlockSpec((TM, E), lambda i: (i, 0)),
        ),
        compiler_params=pltpu.CompilerParams(
            dimension_semantics=("parallel",),
            vmem_limit_bytes=_VMEM_LIMIT),
    )(x.reshape(M, E), gamma.reshape(1, E), beta.reshape(1, E))
    return out.reshape(B, S, E)


# ---------------------------------------------------------------------------
# Full TransformerEncoder forward (Pallas blocks assembled in JAX)
# ---------------------------------------------------------------------------
def transformer_encoder_forward(tokens, pos, layers, final_g, final_b, wc, bc):
    # TODO(synk): the external patch_embedder is not defined in the spec;
    #             `tokens` are the pre-embedded patch tokens [B, num_patches, E].
    x = tokens
    for li, p in enumerate(layers):
        # `tokens + pos` is folded into layer 0's fused attention kernel.
        x = self_attention_ln(x, pos if li == 0 else None,
                              p["wqkv"], p["bqkv"], p["wo"], p["bo"],
                              p["ln1_g"], p["ln1_b"])
        x = feed_forward_ln(x, p["w1"], p["b1"], p["w2"], p["b2"],
                            p["ln2_g"], p["ln2_b"])
    x = layer_norm(x, final_g, final_b)              # final_norm (LN-only path)
    pooled = jnp.mean(x, axis=1)
    # Tiny epilogue (mean-pool + [E, num_classes] classifier) kept in plain JAX.
    return jnp.matmul(pooled, wc, precision=jax.lax.Precision.HIGHEST) + bc


# ---------------------------------------------------------------------------
# Pure-JAX reference for correctness checking
# ---------------------------------------------------------------------------
def reference_forward(tokens, pos, layers, final_g, final_b, wc, bc):
    hp = jax.lax.Precision.HIGHEST

    def ln(v, g, b, eps=_LN_EPS):
        m = v.mean(-1, keepdims=True)
        var = ((v - m) ** 2).mean(-1, keepdims=True)
        return (v - m) / jnp.sqrt(var + eps) * g + b

    x = tokens + pos
    E = x.shape[-1]
    for p in layers:
        q = jnp.matmul(x, p["wq"], precision=hp) + p["bq"]
        k = jnp.matmul(x, p["wk"], precision=hp) + p["bk"]
        v = jnp.matmul(x, p["wv"], precision=hp) + p["bv"]
        scores = jnp.matmul(q, jnp.swapaxes(k, -1, -2), precision=hp) / (E ** 0.5)
        a = jax.nn.softmax(scores, axis=-1)
        ctx = jnp.matmul(a, v, precision=hp)
        attn_out = jnp.matmul(ctx, p["wo"], precision=hp) + p["bo"]
        x = ln(x + attn_out, p["ln1_g"], p["ln1_b"])
        h = jax.nn.relu(jnp.matmul(x, p["w1"], precision=hp) + p["b1"])
        ffn_out = jnp.matmul(h, p["w2"], precision=hp) + p["b2"]
        x = ln(x + ffn_out, p["ln2_g"], p["ln2_b"])
    x = ln(x, final_g, final_b)
    pooled = x.mean(axis=1)
    return jnp.matmul(pooled, wc, precision=hp) + bc


# ---------------------------------------------------------------------------
# Deterministic parameter init (PyTorch-Linear-like uniform bounds)
# ---------------------------------------------------------------------------
def _linear_init(key, fan_in, fan_out):
    kw, kb = jax.random.split(key)
    bound = 1.0 / (fan_in ** 0.5)
    w = jax.random.uniform(kw, (fan_in, fan_out), minval=-bound, maxval=bound,
                           dtype=jnp.float32)
    b = jax.random.uniform(kb, (fan_out,), minval=-bound, maxval=bound,
                           dtype=jnp.float32)
    return w, b


def init_layer(key, E, H):
    ks = jax.random.split(key, 10)
    wq, bq = _linear_init(ks[0], E, E)
    wk, bk = _linear_init(ks[1], E, E)
    wv, bv = _linear_init(ks[2], E, E)
    wo, bo = _linear_init(ks[3], E, E)
    w1, b1 = _linear_init(ks[4], E, H)
    w2, b2 = _linear_init(ks[5], H, E)
    # LayerNorm affine params (perturbed from 1/0 so the check exercises them).
    ln1_g = 1.0 + 0.1 * jax.random.normal(ks[6], (E,), dtype=jnp.float32)
    ln1_b = 0.1 * jax.random.normal(ks[7], (E,), dtype=jnp.float32)
    ln2_g = 1.0 + 0.1 * jax.random.normal(ks[8], (E,), dtype=jnp.float32)
    ln2_b = 0.1 * jax.random.normal(ks[9], (E,), dtype=jnp.float32)
    return dict(
        # Fused QKV weights for the Pallas kernel (one [E, 3E] matmul).
        wqkv=jnp.concatenate([wq, wk, wv], axis=1),
        bqkv=jnp.concatenate([bq, bk, bv], axis=0),
        wo=wo, bo=bo, w1=w1, b1=b1, w2=w2, b2=b2,
        ln1_g=ln1_g, ln1_b=ln1_b, ln2_g=ln2_g, ln2_b=ln2_b,
        # Separate Q/K/V kept only for the pure-JAX reference.
        wq=wq, bq=bq, wk=wk, bk=bk, wv=wv, bv=bv)


if __name__ == "__main__":
    # Small shapes consistent with the module: embed_dim=128 (module default,
    # also lane-dense), num_patches=16, batch=2, 2 encoder layers, 10 classes.
    # TODO(synk): weights/activations can be cast to bf16 at the caller for
    #             2x HBM/VMEM savings; accumulators already stay f32.
    B, S, E, C = 2, 16, 128, 10
    NUM_LAYERS = 2
    H = 4 * E

    root = jax.random.PRNGKey(0)
    k_tok, k_pos, k_layers, k_final, k_clf = jax.random.split(root, 5)

    tokens = jax.random.normal(k_tok, (B, S, E), dtype=jnp.float32)
    pos = jax.random.normal(k_pos, (1, S, E), dtype=jnp.float32)

    layer_keys = jax.random.split(k_layers, NUM_LAYERS)
    layers = tuple(init_layer(k, E, H) for k in layer_keys)

    kg, kb = jax.random.split(k_final)
    final_g = 1.0 + 0.1 * jax.random.normal(kg, (E,), dtype=jnp.float32)
    final_b = 0.1 * jax.random.normal(kb, (E,), dtype=jnp.float32)
    wc, bc = _linear_init(k_clf, E, C)

    fwd = jax.jit(transformer_encoder_forward)
    logits = fwd(tokens, pos, layers, final_g, final_b, wc, bc)
    jax.block_until_ready(logits)

    ref = reference_forward(tokens, pos, layers, final_g, final_b, wc, bc)
    assert logits.shape == (B, C)
    # Tolerance covers MXU accumulation order and the approx EUP reciprocal in
    # the softmax vs the HIGHEST-precision reference; real structural bugs
    # produce errors orders of magnitude larger.
    max_diff = float(jnp.max(jnp.abs(logits - ref)))
    assert jnp.allclose(logits, ref, atol=2e-2, rtol=2e-2), max_diff

    print("KERNEL_OK")
</pallas_src>

<mosaic_0001>
module attributes {stable_mosaic.version = 11 : i64} {
  func.func @_attn_ln_kernel(%arg0: i32, %arg1: memref<2x16x128xf32, #tpu.memory_space<vmem>>, %arg2: memref<1x16x128xf32, #tpu.memory_space<vmem>>, %arg3: memref<128x384xf32, #tpu.memory_space<vmem>>, %arg4: memref<1x384xf32, #tpu.memory_space<vmem>>, %arg5: memref<128x128xf32, #tpu.memory_space<vmem>>, %arg6: memref<1x128xf32, #tpu.memory_space<vmem>>, %arg7: memref<1x128xf32, #tpu.memory_space<vmem>>, %arg8: memref<1x128xf32, #tpu.memory_space<vmem>>, %arg9: memref<2x16x128xf32, #tpu.memory_space<vmem>>) attributes {dimension_semantics = [#tpu.dimension_semantics<parallel>], iteration_bounds = array<i64: 1>, scalar_prefetch = 0 : i64, scratch_operands = 0 : i64, tpu.core_type = #tpu.core_type<tc>, window_params = [{transform_indices = @transform_0, window_bounds = array<i64: 2, 16, 128>}, {pipeline_mode = #tpu.pipeline_mode<synchronous>, transform_indices = @transform_1, window_bounds = array<i64: 1, 16, 128>}, {pipeline_mode = #tpu.pipeline_mode<synchronous>, transform_indices = @transform_2, window_bounds = array<i64: 128, 384>}, {pipeline_mode = #tpu.pipeline_mode<synchronous>, transform_indices = @transform_3, window_bounds = array<i64: 1, 384>}, {pipeline_mode = #tpu.pipeline_mode<synchronous>, transform_indices = @transform_4, window_bounds = array<i64: 128, 128>}, {pipeline_mode = #tpu.pipeline_mode<synchronous>, transform_indices = @transform_5, window_bounds = array<i64: 1, 128>}, {pipeline_mode = #tpu.pipeline_mode<synchronous>, transform_indices = @transform_6, window_bounds = array<i64: 1, 128>}, {pipeline_mode = #tpu.pipeline_mode<synchronous>, transform_indices = @transform_7, window_bounds = array<i64: 1, 128>}, {transform_indices = @transform_8, window_bounds = array<i64: 2, 16, 128>}]} {
    %c0 = arith.constant 0 : index
    %c0_0 = arith.constant 0 : index
    %c0_1 = arith.constant 0 : index
    %0 = vector.load %arg1[%c0, %c0_0, %c0_1] : memref<2x16x128xf32, #tpu.memory_space<vmem>>, vector<2x16x128xf32>
    %c0_2 = arith.constant 0 : index
    %c0_3 = arith.constant 0 : index
    %c0_4 = arith.constant 0 : index
    %1 = vector.load %arg2[%c0_2, %c0_3, %c0_4] : memref<1x16x128xf32, #tpu.memory_space<vmem>>, vector<1x16x128xf32>
    %2 = vector.broadcast %1 : vector<1x16x128xf32> to vector<2x16x128xf32>
    %3 = arith.addf %0, %2 : vector<2x16x128xf32>
    %4 = vector.shape_cast %3 : vector<2x16x128xf32> to vector<32x128xf32>
    %c0_5 = arith.constant 0 : index
    %c0_6 = arith.constant 0 : index
    %5 = vector.load %arg3[%c0_5, %c0_6] : memref<128x384xf32, #tpu.memory_space<vmem>>, vector<128x384xf32>
    %cst = arith.constant dense<0.000000e+00> : vector<32x384xf32>
    %6 = tpu.matmul %4, %5, %cst {dimension_numbers = #tpu.dot_dimension_numbers<[1], [0], [0], [1], [0, 0, 1, 1], [], []>} : vector<32x128xf32>, vector<128x384xf32>, vector<32x384xf32> -> vector<32x384xf32>
    %c0_7 = arith.constant 0 : index
    %c0_8 = arith.constant 0 : index
    %7 = vector.load %arg4[%c0_7, %c0_8] : memref<1x384xf32, #tpu.memory_space<vmem>>, vector<1x384xf32>
    %8 = vector.broadcast %7 : vector<1x384xf32> to vector<32x384xf32>
    %9 = arith.addf %6, %8 : vector<32x384xf32>
    %10 = vector.extract_strided_slice %9 {offsets = [0, 0], sizes = [32, 128], strides = [1, 1]} : vector<32x384xf32> to vector<32x128xf32>
    %11 = vector.shape_cast %10 : vector<32x128xf32> to vector<2x16x128xf32>
    %12 = vector.extract_strided_slice %9 {offsets = [0, 128], sizes = [32, 128], strides = [1, 1]} : vector<32x384xf32> to vector<32x128xf32>
    %13 = vector.shape_cast %12 : vector<32x128xf32> to vector<2x16x128xf32>
    %14 = vector.extract_strided_slice %9 {offsets = [0, 256], sizes = [32, 128], strides = [1, 1]} : vector<32x384xf32> to vector<32x128xf32>
    %15 = vector.shape_cast %14 : vector<32x128xf32> to vector<2x16x128xf32>
    "tpu.trace_start"() <{level = 10 : i32, message = "bqd,bkd->bqk"}> : () -> ()
    %cst_9 = arith.constant dense<0.000000e+00> : vector<2x16x16xf32>
    %16 = tpu.matmul %11, %13, %cst_9 {dimension_numbers = #tpu.dot_dimension_numbers<[2], [2], [1], [1], [0, 0, 0, 1, 1, 1], [0], [0]>} : vector<2x16x128xf32>, vector<2x16x128xf32>, vector<2x16x16xf32> -> vector<2x16x16xf32>
    "tpu.trace_stop"() : () -> ()
    %cst_10 = arith.constant 0.0883883461 : f32
    %17 = vector.broadcast %cst_10 : f32 to vector<2x16x16xf32>
    %18 = arith.mulf %16, %17 : vector<2x16x16xf32>
    %cst_11 = arith.constant dense<0xFF800000> : vector<2x16xf32>
    %19 = vector.multi_reduction <maximumf>, %18, %cst_11 [2] : vector<2x16x16xf32> to vector<2x16xf32>
    %20 = vector.shape_cast %19 : vector<2x16xf32> to vector<2x16x1xf32>
    %21 = vector.broadcast %20 : vector<2x16x1xf32> to vector<2x16x16xf32>
    %22 = arith.subf %18, %21 : vector<2x16x16xf32>
    %23 = math.exp %22 : vector<2x16x16xf32>
    %cst_12 = arith.constant dense<0.000000e+00> : vector<2x16xf32>
    %24 = vector.multi_reduction <add>, %23, %cst_12 [2] : vector<2x16x16xf32> to vector<2x16xf32>
    %25 = vector.shape_cast %24 : vector<2x16xf32> to vector<2x16x1xf32>
    %26 = tpu.reciprocal %25 {approx = true} : vector<2x16x1xf32> -> vector<2x16x1xf32>
    %27 = vector.broadcast %26 : vector<2x16x1xf32> to vector<2x16x16xf32>
    %28 = arith.mulf %23, %27 : vector<2x16x16xf32>
    "tpu.trace_start"() <{level = 10 : i32, message = "bqk,bkd->bqd"}> : () -> ()
    %cst_13 = arith.constant dense<0.000000e+00> : vector<2x16x128xf32>
    %29 = tpu.matmul %28, %15, %cst_13 {dimension_numbers = #tpu.dot_dimension_numbers<[2], [1], [1], [2], [0, 0, 0, 1, 1, 2], [0], [0]>} : vector<2x16x16xf32>, vector<2x16x128xf32>, vector<2x16x128xf32> -> vector<2x16x128xf32>
    "tpu.trace_stop"() : () -> ()
    %30 = vector.shape_cast %29 : vector<2x16x128xf32> to vector<32x128xf32>
    %c0_14 = arith.constant 0 : index
    %c0_15 = arith.constant 0 : index
    %31 = vector.load %arg5[%c0_14, %c0_15] : memref<128x128xf32, #tpu.memory_space<vmem>>, vector<128x128xf32>
    %cst_16 = arith.constant dense<0.000000e+00> : vector<32x128xf32>
    %32 = tpu.matmul %30, %31, %cst_16 {dimension_numbers = #tpu.dot_dimension_numbers<[1], [0], [0], [1], [0, 0, 1, 1], [], []>} : vector<32x128xf32>, vector<128x128xf32>, vector<32x128xf32> -> vector<32x128xf32>
    %c0_17 = arith.constant 0 : index
    %c0_18 = arith.constant 0 : index
    %33 = vector.load %arg6[%c0_17, %c0_18] : memref<1x128xf32, #tpu.memory_space<vmem>>, vector<1x128xf32>
    %34 = vector.broadcast %33 : vector<1x128xf32> to vector<32x128xf32>
    %35 = arith.addf %32, %34 : vector<32x128xf32>
    %36 = arith.addf %4, %35 : vector<32x128xf32>
    %c0_19 = arith.constant 0 : index
    %c0_20 = arith.constant 0 : index
    %37 = vector.load %arg7[%c0_19, %c0_20] : memref<1x128xf32, #tpu.memory_space<vmem>>, vector<1x128xf32>
    %c0_21 = arith.constant 0 : index
    %c0_22 = arith.constant 0 : index
    %38 = vector.load %arg8[%c0_21, %c0_22] : memref<1x128xf32, #tpu.memory_space<vmem>>, vector<1x128xf32>
    %cst_23 = arith.constant dense<0.000000e+00> : vector<32xf32>
    %39 = vector.multi_reduction <add>, %36, %cst_23 [1] : vector<32x128xf32> to vector<32xf32>
    %40 = vector.shape_cast %39 : vector<32xf32> to vector<32x1xf32>
    %cst_24 = arith.constant 1.280000e+02 : f32
    %41 = vector.broadcast %cst_24 : f32 to vector<32x1xf32>
    %42 = arith.divf %40, %41 : vector<32x1xf32>
    %43 = vector.broadcast %42 : vector<32x1xf32> to vector<32x128xf32>
    %44 = arith.subf %36, %43 : vector<32x128xf32>
    %45 = arith.mulf %44, %44 : vector<32x128xf32>
    %cst_25 = arith.constant dense<0.000000e+00> : vector<32xf32>
    %46 = vector.multi_reduction <add>, %45, %cst_25 [1] : vector<32x128xf32> to vector<32xf32>
    %47 = vector.shape_cast %46 : vector<32xf32> to vector<32x1xf32>
    %cst_26 = arith.constant 1.280000e+02 : f32
    %48 = vector.broadcast %cst_26 : f32 to vector<32x1xf32>
    %49 = arith.divf %47, %48 : vector<32x1xf32>
    %cst_27 = arith.constant 9.99999974E-6 : f32
    %50 = vector.broadcast %cst_27 : f32 to vector<32x1xf32>
    %51 = arith.addf %49, %50 : vector<32x1xf32>
    %52 = math.rsqrt %51 : vector<32x1xf32>
    %53 = vector.broadcast %52 : vector<32x1xf32> to vector<32x128xf32>
    %54 = arith.mulf %44, %53 : vector<32x128xf32>
    %55 = vector.broadcast %37 : vector<1x128xf32> to vector<32x128xf32>
    %56 = arith.mulf %54, %55 : vector<32x128xf32>
    %57 = vector.broadcast %38 : vector<1x128xf32> to vector<32x128xf32>
    %58 = arith.addf %56, %57 : vector<32x128xf32>
    %59 = vector.shape_cast %58 : vector<32x128xf32> to vector<2x16x128xf32>
    %c0_28 = arith.constant 0 : index
    %c0_29 = arith.constant 0 : index
    %c0_30 = arith.constant 0 : index
    %60 = vector.load %arg9[%c0_28, %c0_29, %c0_30] : memref<2x16x128xf32, #tpu.memory_space<vmem>>, vector<2x16x128xf32>
    tpu.vector_store %arg9[%c0_28, %c0_29, %c0_30], %59 {strides = array<i32>} : memref<2x16x128xf32, #tpu.memory_space<vmem>>, vector<2x16x128xf32>,
    return
  }
  func.func @transform_0(%arg0: i32) -> (i32, i32, i32) {
    %c0_i32 = arith.constant 0 : i32
    %c0_i32_0 = arith.constant 0 : i32
    %c0_i32_1 = arith.constant 0 : i32
    return %arg0, %c0_i32, %c0_i32_0 : i32, i32, i32
  }
  func.func @transform_1(%arg0: i32) -> (i32, i32, i32) {
    %c0_i32 = arith.constant 0 : i32
    %c0_i32_0 = arith.constant 0 : i32
    %c0_i32_1 = arith.constant 0 : i32
    %c0_i32_2 = arith.constant 0 : i32
    return %c0_i32, %c0_i32_0, %c0_i32_1 : i32, i32, i32
  }
  func.func @transform_2(%arg0: i32) -> (i32, i32) {
    %c0_i32 = arith.constant 0 : i32
    %c0_i32_0 = arith.constant 0 : i32
    %c0_i32_1 = arith.constant 0 : i32
    return %c0_i32, %c0_i32_0 : i32, i32
  }
  func.func @transform_3(%arg0: i32) -> (i32, i32) {
    %c0_i32 = arith.constant 0 : i32
    %c0_i32_0 = arith.constant 0 : i32
    %c0_i32_1 = arith.constant 0 : i32
    return %c0_i32, %c0_i32_0 : i32, i32
  }
  func.func @transform_4(%arg0: i32) -> (i32, i32) {
    %c0_i32 = arith.constant 0 : i32
    %c0_i32_0 = arith.constant 0 : i32
    %c0_i32_1 = arith.constant 0 : i32
    return %c0_i32, %c0_i32_0 : i32, i32
  }
  func.func @transform_5(%arg0: i32) -> (i32, i32) {
    %c0_i32 = arith.constant 0 : i32
    %c0_i32_0 = arith.constant 0 : i32
    %c0_i32_1 = arith.constant 0 : i32
    return %c0_i32, %c0_i32_0 : i32, i32
  }
  func.func @transform_6(%arg0: i32) -> (i32, i32) {
    %c0_i32 = arith.constant 0 : i32
    %c0_i32_0 = arith.constant 0 : i32
    %c0_i32_1 = arith.constant 0 : i32
    return %c0_i32, %c0_i32_0 : i32, i32
  }
  func.func @transform_7(%arg0: i32) -> (i32, i32) {
    %c0_i32 = arith.constant 0 : i32
    %c0_i32_0 = arith.constant 0 : i32
    %c0_i32_1 = arith.constant 0 : i32
    return %c0_i32, %c0_i32_0 : i32, i32
  }
  func.func @transform_8(%arg0: i32) -> (i32, i32, i32) {
    %c0_i32 = arith.constant 0 : i32
    %c0_i32_0 = arith.constant 0 : i32
    %c0_i32_1 = arith.constant 0 : i32
    return %arg0, %c0_i32, %c0_i32_0 : i32, i32, i32
  }
}

module attributes {stable_mosaic.version = 11 : i64} {
  func.func @_ffn_ln_kernel(%arg0: i32, %arg1: memref<32x128xf32, #tpu.memory_space<vmem>>, %arg2: memref<128x512xf32, #tpu.memory_space<vmem>>, %arg3: memref<1x512xf32, #tpu.memory_space<vmem>>, %arg4: memref<512x128xf32, #tpu.memory_space<vmem>>, %arg5: memref<1x128xf32, #tpu.memory_space<vmem>>, %arg6: memref<1x128xf32, #tpu.memory_space<vmem>>, %arg7: memref<1x128xf32, #tpu.memory_space<vmem>>, %arg8: memref<32x128xf32, #tpu.memory_space<vmem>>) attributes {dimension_semantics = [#tpu.dimension_semantics<parallel>], iteration_bounds = array<i64: 1>, scalar_prefetch = 0 : i64, scratch_operands = 0 : i64, tpu.core_type = #tpu.core_type<tc>, window_params = [{transform_indices = @transform_0, window_bounds = array<i64: 32, 128>}, {pipeline_mode = #tpu.pipeline_mode<synchronous>, transform_indices = @transform_1, window_bounds = array<i64: 128, 512>}, {pipeline_mode = #tpu.pipeline_mode<synchronous>, transform_indices = @transform_2, window_bounds = array<i64: 1, 512>}, {pipeline_mode = #tpu.pipeline_mode<synchronous>, transform_indices = @transform_3, window_bounds = array<i64: 512, 128>}, {pipeline_mode = #tpu.pipeline_mode<synchronous>, transform_indices = @transform_4, window_bounds = array<i64: 1, 128>}, {pipeline_mode = #tpu.pipeline_mode<synchronous>, transform_indices = @transform_5, window_bounds = array<i64: 1, 128>}, {pipeline_mode = #tpu.pipeline_mode<synchronous>, transform_indices = @transform_6, window_bounds = array<i64: 1, 128>}, {transform_indices = @transform_7, window_bounds = array<i64: 32, 128>}]} {
    %c0 = arith.constant 0 : index
    %c0_0 = arith.constant 0 : index
    %0 = vector.load %arg1[%c0, %c0_0] : memref<32x128xf32, #tpu.memory_space<vmem>>, vector<32x128xf32>
    %c0_1 = arith.constant 0 : index
    %c0_2 = arith.constant 0 : index
    %1 = vector.load %arg2[%c0_1, %c0_2] : memref<128x512xf32, #tpu.memory_space<vmem>>, vector<128x512xf32>
    %cst = arith.constant dense<0.000000e+00> : vector<32x512xf32>
    %2 = tpu.matmul %0, %1, %cst {dimension_numbers = #tpu.dot_dimension_numbers<[1], [0], [0], [1], [0, 0, 1, 1], [], []>} : vector<32x128xf32>, vector<128x512xf32>, vector<32x512xf32> -> vector<32x512xf32>
    %c0_3 = arith.constant 0 : index
    %c0_4 = arith.constant 0 : index
    %3 = vector.load %arg3[%c0_3, %c0_4] : memref<1x512xf32, #tpu.memory_space<vmem>>, vector<1x512xf32>
    %4 = vector.broadcast %3 : vector<1x512xf32> to vector<32x512xf32>
    %5 = arith.addf %2, %4 : vector<32x512xf32>
    %cst_5 = arith.constant 0.000000e+00 : f32
    %6 = vector.broadcast %cst_5 : f32 to vector<32x512xf32>
    %7 = arith.maximumf %5, %6 : vector<32x512xf32>
    %c0_6 = arith.constant 0 : index
    %c0_7 = arith.constant 0 : index
    %8 = vector.load %arg4[%c0_6, %c0_7] : memref<512x128xf32, #tpu.memory_space<vmem>>, vector<512x128xf32>
    %cst_8 = arith.constant dense<0.000000e+00> : vector<32x128xf32>
    %9 = tpu.matmul %7, %8, %cst_8 {dimension_numbers = #tpu.dot_dimension_numbers<[1], [0], [0], [1], [0, 0, 1, 1], [], []>} : vector<32x512xf32>, vector<512x128xf32>, vector<32x128xf32> -> vector<32x128xf32>
    %c0_9 = arith.constant 0 : index
    %c0_10 = arith.constant 0 : index
    %10 = vector.load %arg5[%c0_9, %c0_10] : memref<1x128xf32, #tpu.memory_space<vmem>>, vector<1x128xf32>
    %11 = vector.broadcast %10 : vector<1x128xf32> to vector<32x128xf32>
    %12 = arith.addf %9, %11 : vector<32x128xf32>
    %13 = arith.addf %0, %12 : vector<32x128xf32>
    %c0_11 = arith.constant 0 : index
    %c0_12 = arith.constant 0 : index
    %14 = vector.load %arg6[%c0_11, %c0_12] : memref<1x128xf32, #tpu.memory_space<vmem>>, vector<1x128xf32>
    %c0_13 = arith.constant 0 : index
    %c0_14 = arith.constant 0 : index
    %15 = vector.load %arg7[%c0_13, %c0_14] : memref<1x128xf32, #tpu.memory_space<vmem>>, vector<1x128xf32>
    %cst_15 = arith.constant dense<0.000000e+00> : vector<32xf32>
    %16 = vector.multi_reduction <add>, %13, %cst_15 [1] : vector<32x128xf32> to vector<32xf32>
    %17 = vector.shape_cast %16 : vector<32xf32> to vector<32x1xf32>
    %cst_16 = arith.constant 1.280000e+02 : f32
    %18 = vector.broadcast %cst_16 : f32 to vector<32x1xf32>
    %19 = arith.divf %17, %18 : vector<32x1xf32>
    %20 = vector.broadcast %19 : vector<32x1xf32> to vector<32x128xf32>
    %21 = arith.subf %13, %20 : vector<32x128xf32>
    %22 = arith.mulf %21, %21 : vector<32x128xf32>
    %cst_17 = arith.constant dense<0.000000e+00> : vector<32xf32>
    %23 = vector.multi_reduction <add>, %22, %cst_17 [1] : vector<32x128xf32> to vector<32xf32>
    %24 = vector.shape_cast %23 : vector<32xf32> to vector<32x1xf32>
    %cst_18 = arith.constant 1.280000e+02 : f32
    %25 = vector.broadcast %cst_18 : f32 to vector<32x1xf32>
    %26 = arith.divf %24, %25 : vector<32x1xf32>
    %cst_19 = arith.constant 9.99999974E-6 : f32
    %27 = vector.broadcast %cst_19 : f32 to vector<32x1xf32>
    %28 = arith.addf %26, %27 : vector<32x1xf32>
    %29 = math.rsqrt %28 : vector<32x1xf32>
    %30 = vector.broadcast %29 : vector<32x1xf32> to vector<32x128xf32>
    %31 = arith.mulf %21, %30 : vector<32x128xf32>
    %32 = vector.broadcast %14 : vector<1x128xf32> to vector<32x128xf32>
    %33 = arith.mulf %31, %32 : vector<32x128xf32>
    %34 = vector.broadcast %15 : vector<1x128xf32> to vector<32x128xf32>
    %35 = arith.addf %33, %34 : vector<32x128xf32>
    %c0_20 = arith.constant 0 : index
    %c0_21 = arith.constant 0 : index
    %36 = vector.load %arg8[%c0_20, %c0_21] : memref<32x128xf32, #tpu.memory_space<vmem>>, vector<32x128xf32>
    tpu.vector_store %arg8[%c0_20, %c0_21], %35 {strides = array<i32>} : memref<32x128xf32, #tpu.memory_space<vmem>>, vector<32x128xf32>,
    return
  }
  func.func @transform_0(%arg0: i32) -> (i32, i32) {
    %c0_i32 = arith.constant 0 : i32
    %c0_i32_0 = arith.constant 0 : i32
    return %arg0, %c0_i32 : i32, i32
  }
  func.func @transform_1(%arg0: i32) -> (i32, i32) {
    %c0_i32 = arith.constant 0 : i32
    %c0_i32_0 = arith.constant 0 : i32
    %c0_i32_1 = arith.constant 0 : i32
    return %c0_i32, %c0_i32_0 : i32, i32
  }
  func.func @transform_2(%arg0: i32) -> (i32, i32) {
    %c0_i32 = arith.constant 0 : i32
    %c0_i32_0 = arith.constant 0 : i32
    %c0_i32_1 = arith.constant 0 : i32
    return %c0_i32, %c0_i32_0 : i32, i32
  }
  func.func @transform_3(%arg0: i32) -> (i32, i32) {
    %c0_i32 = arith.constant 0 : i32
    %c0_i32_0 = arith.constant 0 : i32
    %c0_i32_1 = arith.constant 0 : i32
    return %c0_i32, %c0_i32_0 : i32, i32
  }
  func.func @transform_4(%arg0: i32) -> (i32, i32) {
    %c0_i32 = arith.constant 0 : i32
    %c0_i32_0 = arith.constant 0 : i32
    %c0_i32_1 = arith.constant 0 : i32
    return %c0_i32, %c0_i32_0 : i32, i32
  }
  func.func @transform_5(%arg0: i32) -> (i32, i32) {
    %c0_i32 = arith.constant 0 : i32
    %c0_i32_0 = arith.constant 0 : i32
    %c0_i32_1 = arith.constant 0 : i32
    return %c0_i32, %c0_i32_0 : i32, i32
  }
  func.func @transform_6(%arg0: i32) -> (i32, i32) {
    %c0_i32 = arith.constant 0 : i32
    %c0_i32_0 = arith.constant 0 : i32
    %c0_i32_1 = arith.constant 0 : i32
    return %c0_i32, %c0_i32_0 : i32, i32
  }
  func.func @transform_7(%arg0: i32) -> (i32, i32) {
    %c0_i32 = arith.constant 0 : i32
    %c0_i32_0 = arith.constant 0 : i32
    return %arg0, %c0_i32 : i32, i32
  }
}

module attributes {stable_mosaic.version = 11 : i64} {
  func.func @_ffn_ln_kernel(%arg0: i32, %arg1: memref<32x128xf32, #tpu.memory_space<vmem>>, %arg2: memref<128x512xf32, #tpu.memory_space<vmem>>, %arg3: memref<1x512xf32, #tpu.memory_space<vmem>>, %arg4: memref<512x128xf32, #tpu.memory_space<vmem>>, %arg5: memref<1x128xf32, #tpu.memory_space<vmem>>, %arg6: memref<1x128xf32, #tpu.memory_space<vmem>>, %arg7: memref<1x128xf32, #tpu.memory_space<vmem>>, %arg8: memref<32x128xf32, #tpu.memory_space<vmem>>) attributes {dimension_semantics = [#tpu.dimension_semantics<parallel>], iteration_bounds = array<i64: 1>, scalar_prefetch = 0 : i64, scratch_operands = 0 : i64, tpu.core_type = #tpu.core_type<tc>, window_params = [{transform_indices = @transform_0, window_bounds = array<i64: 32, 128>}, {pipeline_mode = #tpu.pipeline_mode<synchronous>, transform_indices = @transform_1, window_bounds = array<i64: 128, 512>}, {pipeline_mode = #tpu.pipeline_mode<synchronous>, transform_indices = @transform_2, window_bounds = array<i64: 1, 512>}, {pipeline_mode = #tpu.pipeline_mode<synchronous>, transform_indices = @transform_3, window_bounds = array<i64: 512, 128>}, {pipeline_mode = #tpu.pipeline_mode<synchronous>, transform_indices = @transform_4, window_bounds = array<i64: 1, 128>}, {pipeline_mode = #tpu.pipeline_mode<synchronous>, transform_indices = @transform_5, window_bounds = array<i64: 1, 128>}, {pipeline_mode = #tpu.pipeline_mode<synchronous>, transform_indices = @transform_6, window_bounds = array<i64: 1, 128>}, {transform_indices = @transform_7, window_bounds = array<i64: 32, 128>}]} {
    %c0 = arith.constant 0 : index
    %c0_0 = arith.constant 0 : index
    %0 = vector.load %arg1[%c0, %c0_0] : memref<32x128xf32, #tpu.memory_space<vmem>>, vector<32x128xf32>
    %c0_1 = arith.constant 0 : index
    %c0_2 = arith.constant 0 : index
    %1 = vector.load %arg2[%c0_1, %c0_2] : memref<128x512xf32, #tpu.memory_space<vmem>>, vector<128x512xf32>
    %cst = arith.constant dense<0.000000e+00> : vector<32x512xf32>
    %2 = tpu.matmul %0, %1, %cst {dimension_numbers = #tpu.dot_dimension_numbers<[1], [0], [0], [1], [0, 0, 1, 1], [], []>} : vector<32x128xf32>, vector<128x512xf32>, vector<32x512xf32> -> vector<32x512xf32>
    %c0_3 = arith.constant 0 : index
    %c0_4 = arith.constant 0 : index
    %3 = vector.load %arg3[%c0_3, %c0_4] : memref<1x512xf32, #tpu.memory_space<vmem>>, vector<1x512xf32>
    %4 = vector.broadcast %3 : vector<1x512xf32> to vector<32x512xf32>
    %5 = arith.addf %2, %4 : vector<32x512xf32>
    %cst_5 = arith.constant 0.000000e+00 : f32
    %6 = vector.broadcast %cst_5 : f32 to vector<32x512xf32>
    %7 = arith.maximumf %5, %6 : vector<32x512xf32>
    %c0_6 = arith.constant 0 : index
    %c0_7 = arith.constant 0 : index
    %8 = vector.load %arg4[%c0_6, %c0_7] : memref<512x128xf32, #tpu.memory_space<vmem>>, vector<512x128xf32>
    %cst_8 = arith.constant dense<0.000000e+00> : vector<32x128xf32>
    %9 = tpu.matmul %7, %8, %cst_8 {dimension_numbers = #tpu.dot_dimension_numbers<[1], [0], [0], [1], [0, 0, 1, 1], [], []>} : vector<32x512xf32>, vector<512x128xf32>, vector<32x128xf32> -> vector<32x128xf32>
    %c0_9 = arith.constant 0 : index
    %c0_10 = arith.constant 0 : index
    %10 = vector.load %arg5[%c0_9, %c0_10] : memref<1x128xf32, #tpu.memory_space<vmem>>, vector<1x128xf32>
    %11 = vector.broadcast %10 : vector<1x128xf32> to vector<32x128xf32>
    %12 = arith.addf %9, %11 : vector<32x128xf32>
    %13 = arith.addf %0, %12 : vector<32x128xf32>
    %c0_11 = arith.constant 0 : index
    %c0_12 = arith.constant 0 : index
    %14 = vector.load %arg6[%c0_11, %c0_12] : memref<1x128xf32, #tpu.memory_space<vmem>>, vector<1x128xf32>
    %c0_13 = arith.constant 0 : index
    %c0_14 = arith.constant 0 : index
    %15 = vector.load %arg7[%c0_13, %c0_14] : memref<1x128xf32, #tpu.memory_space<vmem>>, vector<1x128xf32>
    %cst_15 = arith.constant dense<0.000000e+00> : vector<32xf32>
    %16 = vector.multi_reduction <add>, %13, %cst_15 [1] : vector<32x128xf32> to vector<32xf32>
    %17 = vector.shape_cast %16 : vector<32xf32> to vector<32x1xf32>
    %cst_16 = arith.constant 1.280000e+02 : f32
    %18 = vector.broadcast %cst_16 : f32 to vector<32x1xf32>
    %19 = arith.divf %17, %18 : vector<32x1xf32>
    %20 = vector.broadcast %19 : vector<32x1xf32> to vector<32x128xf32>
    %21 = arith.subf %13, %20 : vector<32x128xf32>
    %22 = arith.mulf %21, %21 : vector<32x128xf32>
    %cst_17 = arith.constant dense<0.000000e+00> : vector<32xf32>
    %23 = vector.multi_reduction <add>, %22, %cst_17 [1] : vector<32x128xf32> to vector<32xf32>
    %24 = vector.shape_cast %23 : vector<32xf32> to vector<32x1xf32>
    %cst_18 = arith.constant 1.280000e+02 : f32
    %25 = vector.broadcast %cst_18 : f32 to vector<32x1xf32>
    %26 = arith.divf %24, %25 : vector<32x1xf32>
    %cst_19 = arith.constant 9.99999974E-6 : f32
    %27 = vector.broadcast %cst_19 : f32 to vector<32x1xf32>
    %28 = arith.addf %26, %27 : vector<32x1xf32>
    %29 = math.rsqrt %28 : vector<32x1xf32>
    %30 = vector.broadcast %29 : vector<32x1xf32> to vector<32x128xf32>
    %31 = arith.mulf %21, %30 : vector<32x128xf32>
    %32 = vector.broadcast %14 : vector<1x128xf32> to vector<32x128xf32>
    %33 = arith.mulf %31, %32 : vector<32x128xf32>
    %34 = vector.broadcast %15 : vector<1x128xf32> to vector<32x128xf32>
    %35 = arith.addf %33, %34 : vector<32x128xf32>
    %c0_20 = arith.constant 0 : index
    %c0_21 = arith.constant 0 : index
    %36 = vector.load %arg8[%c0_20, %c0_21] : memref<32x128xf32, #tpu.memory_space<vmem>>, vector<32x128xf32>
    tpu.vector_store %arg8[%c0_20, %c0_21], %35 {strides = array<i32>} : memref<32x128xf32, #tpu.memory_space<vmem>>, vector<32x128xf32>,
    return
  }
  func.func @transform_0(%arg0: i32) -> (i32, i32) {
    %c0_i32 = arith.constant 0 : i32
    %c0_i32_0 = arith.constant 0 : i32
    return %arg0, %c0_i32 : i32, i32
  }
  func.func @transform_1(%arg0: i32) -> (i32, i32) {
    %c0_i32 = arith.constant 0 : i32
    %c0_i32_0 = arith.constant 0 : i32
    %c0_i32_1 = arith.constant 0 : i32
    return %c0_i32, %c0_i32_0 : i32, i32
  }
  func.func @transform_2(%arg0: i32) -> (i32, i32) {
    %c0_i32 = arith.constant 0 : i32
    %c0_i32_0 = arith.constant 0 : i32
    %c0_i32_1 = arith.constant 0 : i32
    return %c0_i32, %c0_i32_0 : i32, i32
  }
  func.func @transform_3(%arg0: i32) -> (i32, i32) {
    %c0_i32 = arith.constant 0 : i32
    %c0_i32_0 = arith.constant 0 : i32
    %c0_i32_1 = arith.constant 0 : i32
    return %c0_i32, %c0_i32_0 : i32, i32
  }
  func.func @transform_4(%arg0: i32) -> (i32, i32) {
    %c0_i32 = arith.constant 0 : i32
    %c0_i32_0 = arith.constant 0 : i32
    %c0_i32_1 = arith.constant 0 : i32
    return %c0_i32, %c0_i32_0 : i32, i32
  }
  func.func @transform_5(%arg0: i32) -> (i32, i32) {
    %c0_i32 = arith.constant 0 : i32
    %c0_i32_0 = arith.constant 0 : i32
    %c0_i32_1 = arith.constant 0 : i32
    return %c0_i32, %c0_i32_0 : i32, i32
  }
  func.func @transform_6(%arg0: i32) -> (i32, i32) {
    %c0_i32 = arith.constant 0 : i32
    %c0_i32_0 = arith.constant 0 : i32
    %c0_i32_1 = arith.constant 0 : i32
    return %c0_i32, %c0_i32_0 : i32, i32
  }
  func.func @transform_7(%arg0: i32) -> (i32, i32) {
    %c0_i32 = arith.constant 0 : i32
    %c0_i32_0 = arith.constant 0 : i32
    return %arg0, %c0_i32 : i32, i32
  }
}

module attributes {stable_mosaic.version = 11 : i64} {
  func.func @_attn_ln_kernel(%arg0: i32, %arg1: memref<2x16x128xf32, #tpu.memory_space<vmem>>, %arg2: memref<128x384xf32, #tpu.memory_space<vmem>>, %arg3: memref<1x384xf32, #tpu.memory_space<vmem>>, %arg4: memref<128x128xf32, #tpu.memory_space<vmem>>, %arg5: memref<1x128xf32, #tpu.memory_space<vmem>>, %arg6: memref<1x128xf32, #tpu.memory_space<vmem>>, %arg7: memref<1x128xf32, #tpu.memory_space<vmem>>, %arg8: memref<2x16x128xf32, #tpu.memory_space<vmem>>) attributes {dimension_semantics = [#tpu.dimension_semantics<parallel>], iteration_bounds = array<i64: 1>, scalar_prefetch = 0 : i64, scratch_operands = 0 : i64, tpu.core_type = #tpu.core_type<tc>, window_params = [{transform_indices = @transform_0, window_bounds = array<i64: 2, 16, 128>}, {pipeline_mode = #tpu.pipeline_mode<synchronous>, transform_indices = @transform_1, window_bounds = array<i64: 128, 384>}, {pipeline_mode = #tpu.pipeline_mode<synchronous>, transform_indices = @transform_2, window_bounds = array<i64: 1, 384>}, {pipeline_mode = #tpu.pipeline_mode<synchronous>, transform_indices = @transform_3, window_bounds = array<i64: 128, 128>}, {pipeline_mode = #tpu.pipeline_mode<synchronous>, transform_indices = @transform_4, window_bounds = array<i64: 1, 128>}, {pipeline_mode = #tpu.pipeline_mode<synchronous>, transform_indices = @transform_5, window_bounds = array<i64: 1, 128>}, {pipeline_mode = #tpu.pipeline_mode<synchronous>, transform_indices = @transform_6, window_bounds = array<i64: 1, 128>}, {transform_indices = @transform_7, window_bounds = array<i64: 2, 16, 128>}]} {
    %c0 = arith.constant 0 : index
    %c0_0 = arith.constant 0 : index
    %c0_1 = arith.constant 0 : index
    %0 = vector.load %arg1[%c0, %c0_0, %c0_1] : memref<2x16x128xf32, #tpu.memory_space<vmem>>, vector<2x16x128xf32>
    %1 = vector.shape_cast %0 : vector<2x16x128xf32> to vector<32x128xf32>
    %c0_2 = arith.constant 0 : index
    %c0_3 = arith.constant 0 : index
    %2 = vector.load %arg2[%c0_2, %c0_3] : memref<128x384xf32, #tpu.memory_space<vmem>>, vector<128x384xf32>
    %cst = arith.constant dense<0.000000e+00> : vector<32x384xf32>
    %3 = tpu.matmul %1, %2, %cst {dimension_numbers = #tpu.dot_dimension_numbers<[1], [0], [0], [1], [0, 0, 1, 1], [], []>} : vector<32x128xf32>, vector<128x384xf32>, vector<32x384xf32> -> vector<32x384xf32>
    %c0_4 = arith.constant 0 : index
    %c0_5 = arith.constant 0 : index
    %4 = vector.load %arg3[%c0_4, %c0_5] : memref<1x384xf32, #tpu.memory_space<vmem>>, vector<1x384xf32>
    %5 = vector.broadcast %4 : vector<1x384xf32> to vector<32x384xf32>
    %6 = arith.addf %3, %5 : vector<32x384xf32>
    %7 = vector.extract_strided_slice %6 {offsets = [0, 0], sizes = [32, 128], strides = [1, 1]} : vector<32x384xf32> to vector<32x128xf32>
    %8 = vector.shape_cast %7 : vector<32x128xf32> to vector<2x16x128xf32>
    %9 = vector.extract_strided_slice %6 {offsets = [0, 128], sizes = [32, 128], strides = [1, 1]} : vector<32x384xf32> to vector<32x128xf32>
    %10 = vector.shape_cast %9 : vector<32x128xf32> to vector<2x16x128xf32>
    %11 = vector.extract_strided_slice %6 {offsets = [0, 256], sizes = [32, 128], strides = [1, 1]} : vector<32x384xf32> to vector<32x128xf32>
    %12 = vector.shape_cast %11 : vector<32x128xf32> to vector<2x16x128xf32>
    "tpu.trace_start"() <{level = 10 : i32, message = "bqd,bkd->bqk"}> : () -> ()
    %cst_6 = arith.constant dense<0.000000e+00> : vector<2x16x16xf32>
    %13 = tpu.matmul %8, %10, %cst_6 {dimension_numbers = #tpu.dot_dimension_numbers<[2], [2], [1], [1], [0, 0, 0, 1, 1, 1], [0], [0]>} : vector<2x16x128xf32>, vector<2x16x128xf32>, vector<2x16x16xf32> -> vector<2x16x16xf32>
    "tpu.trace_stop"() : () -> ()
    %cst_7 = arith.constant 0.0883883461 : f32
    %14 = vector.broadcast %cst_7 : f32 to vector<2x16x16xf32>
    %15 = arith.mulf %13, %14 : vector<2x16x16xf32>
    %cst_8 = arith.constant dense<0xFF800000> : vector<2x16xf32>
    %16 = vector.multi_reduction <maximumf>, %15, %cst_8 [2] : vector<2x16x16xf32> to vector<2x16xf32>
    %17 = vector.shape_cast %16 : vector<2x16xf32> to vector<2x16x1xf32>
    %18 = vector.broadcast %17 : vector<2x16x1xf32> to vector<2x16x16xf32>
    %19 = arith.subf %15, %18 : vector<2x16x16xf32>
    %20 = math.exp %19 : vector<2x16x16xf32>
    %cst_9 = arith.constant dense<0.000000e+00> : vector<2x16xf32>
    %21 = vector.multi_reduction <add>, %20, %cst_9 [2] : vector<2x16x16xf32> to vector<2x16xf32>
    %22 = vector.shape_cast %21 : vector<2x16xf32> to vector<2x16x1xf32>
    %23 = tpu.reciprocal %22 {approx = true} : vector<2x16x1xf32> -> vector<2x16x1xf32>
    %24 = vector.broadcast %23 : vector<2x16x1xf32> to vector<2x16x16xf32>
    %25 = arith.mulf %20, %24 : vector<2x16x16xf32>
    "tpu.trace_start"() <{level = 10 : i32, message = "bqk,bkd->bqd"}> : () -> ()
    %cst_10 = arith.constant dense<0.000000e+00> : vector<2x16x128xf32>
    %26 = tpu.matmul %25, %12, %cst_10 {dimension_numbers = #tpu.dot_dimension_numbers<[2], [1], [1], [2], [0, 0, 0, 1, 1, 2], [0], [0]>} : vector<2x16x16xf32>, vector<2x16x128xf32>, vector<2x16x128xf32> -> vector<2x16x128xf32>
    "tpu.trace_stop"() : () -> ()
    %27 = vector.shape_cast %26 : vector<2x16x128xf32> to vector<32x128xf32>
    %c0_11 = arith.constant 0 : index
    %c0_12 = arith.constant 0 : index
    %28 = vector.load %arg4[%c0_11, %c0_12] : memref<128x128xf32, #tpu.memory_space<vmem>>, vector<128x128xf32>
    %cst_13 = arith.constant dense<0.000000e+00> : vector<32x128xf32>
    %29 = tpu.matmul %27, %28, %cst_13 {dimension_numbers = #tpu.dot_dimension_numbers<[1], [0], [0], [1], [0, 0, 1, 1], [], []>} : vector<32x128xf32>, vector<128x128xf32>, vector<32x128xf32> -> vector<32x128xf32>
    %c0_14 = arith.constant 0 : index
    %c0_15 = arith.constant 0 : index
    %30 = vector.load %arg5[%c0_14, %c0_15] : memref<1x128xf32, #tpu.memory_space<vmem>>, vector<1x128xf32>
    %31 = vector.broadcast %30 : vector<1x128xf32> to vector<32x128xf32>
    %32 = arith.addf %29, %31 : vector<32x128xf32>
    %33 = arith.addf %1, %32 : vector<32x128xf32>
    %c0_16 = arith.constant 0 : index
    %c0_17 = arith.constant 0 : index
    %34 = vector.load %arg6[%c0_16, %c0_17] : memref<1x128xf32, #tpu.memory_space<vmem>>, vector<1x128xf32>
    %c0_18 = arith.constant 0 : index
    %c0_19 = arith.constant 0 : index
    %35 = vector.load %arg7[%c0_18, %c0_19] : memref<1x128xf32, #tpu.memory_space<vmem>>, vector<1x128xf32>
    %cst_20 = arith.constant dense<0.000000e+00> : vector<32xf32>
    %36 = vector.multi_reduction <add>, %33, %cst_20 [1] : vector<32x128xf32> to vector<32xf32>
    %37 = vector.shape_cast %36 : vector<32xf32> to vector<32x1xf32>
    %cst_21 = arith.constant 1.280000e+02 : f32
    %38 = vector.broadcast %cst_21 : f32 to vector<32x1xf32>
    %39 = arith.divf %37, %38 : vector<32x1xf32>
    %40 = vector.broadcast %39 : vector<32x1xf32> to vector<32x128xf32>
    %41 = arith.subf %33, %40 : vector<32x128xf32>
    %42 = arith.mulf %41, %41 : vector<32x128xf32>
    %cst_22 = arith.constant dense<0.000000e+00> : vector<32xf32>
    %43 = vector.multi_reduction <add>, %42, %cst_22 [1] : vector<32x128xf32> to vector<32xf32>
    %44 = vector.shape_cast %43 : vector<32xf32> to vector<32x1xf32>
    %cst_23 = arith.constant 1.280000e+02 : f32
    %45 = vector.broadcast %cst_23 : f32 to vector<32x1xf32>
    %46 = arith.divf %44, %45 : vector<32x1xf32>
    %cst_24 = arith.constant 9.99999974E-6 : f32
    %47 = vector.broadcast %cst_24 : f32 to vector<32x1xf32>
    %48 = arith.addf %46, %47 : vector<32x1xf32>
    %49 = math.rsqrt %48 : vector<32x1xf32>
    %50 = vector.broadcast %49 : vector<32x1xf32> to vector<32x128xf32>
    %51 = arith.mulf %41, %50 : vector<32x128xf32>
    %52 = vector.broadcast %34 : vector<1x128xf32> to vector<32x128xf32>
    %53 = arith.mulf %51, %52 : vector<32x128xf32>
    %54 = vector.broadcast %35 : vector<1x128xf32> to vector<32x128xf32>
    %55 = arith.addf %53, %54 : vector<32x128xf32>
    %56 = vector.shape_cast %55 : vector<32x128xf32> to vector<2x16x128xf32>
    %c0_25 = arith.constant 0 : index
    %c0_26 = arith.constant 0 : index
    %c0_27 = arith.constant 0 : index
    %57 = vector.load %arg8[%c0_25, %c0_26, %c0_27] : memref<2x16x128xf32, #tpu.memory_space<vmem>>, vector<2x16x128xf32>
    tpu.vector_store %arg8[%c0_25, %c0_26, %c0_27], %56 {strides = array<i32>} : memref<2x16x128xf32, #tpu.memory_space<vmem>>, vector<2x16x128xf32>,
    return
  }
  func.func @transform_0(%arg0: i32) -> (i32, i32, i32) {
    %c0_i32 = arith.constant 0 : i32
    %c0_i32_0 = arith.constant 0 : i32
    %c0_i32_1 = arith.constant 0 : i32
    return %arg0, %c0_i32, %c0_i32_0 : i32, i32, i32
  }
  func.func @transform_1(%arg0: i32) -> (i32, i32) {
    %c0_i32 = arith.constant 0 : i32
    %c0_i32_0 = arith.constant 0 : i32
    %c0_i32_1 = arith.constant 0 : i32
    return %c0_i32, %c0_i32_0 : i32, i32
  }
  func.func @transform_2(%arg0: i32) -> (i32, i32) {
    %c0_i32 = arith.constant 0 : i32
    %c0_i32_0 = arith.constant 0 : i32
    %c0_i32_1 = arith.constant 0 : i32
    return %c0_i32, %c0_i32_0 : i32, i32
  }
  func.func @transform_3(%arg0: i32) -> (i32, i32) {
    %c0_i32 = arith.constant 0 : i32
    %c0_i32_0 = arith.constant 0 : i32
    %c0_i32_1 = arith.constant 0 : i32
    return %c0_i32, %c0_i32_0 : i32, i32
  }
  func.func @transform_4(%arg0: i32) -> (i32, i32) {
    %c0_i32 = arith.constant 0 : i32
    %c0_i32_0 = arith.constant 0 : i32
    %c0_i32_1 = arith.constant 0 : i32
    return %c0_i32, %c0_i32_0 : i32, i32
  }
  func.func @transform_5(%arg0: i32) -> (i32, i32) {
    %c0_i32 = arith.constant 0 : i32
    %c0_i32_0 = arith.constant 0 : i32
    %c0_i32_1 = arith.constant 0 : i32
    return %c0_i32, %c0_i32_0 : i32, i32
  }
  func.func @transform_6(%arg0: i32) -> (i32, i32) {
    %c0_i32 = arith.constant 0 : i32
    %c0_i32_0 = arith.constant 0 : i32
    %c0_i32_1 = arith.constant 0 : i32
    return %c0_i32, %c0_i32_0 : i32, i32
  }
  func.func @transform_7(%arg0: i32) -> (i32, i32, i32) {
    %c0_i32 = arith.constant 0 : i32
    %c0_i32_0 = arith.constant 0 : i32
    %c0_i32_1 = arith.constant 0 : i32
    return %arg0, %c0_i32, %c0_i32_0 : i32, i32, i32
  }
}

module attributes {stable_mosaic.version = 11 : i64} {
  func.func @_ln_kernel(%arg0: i32, %arg1: memref<32x128xf32, #tpu.memory_space<vmem>>, %arg2: memref<1x128xf32, #tpu.memory_space<vmem>>, %arg3: memref<1x128xf32, #tpu.memory_space<vmem>>, %arg4: memref<32x128xf32, #tpu.memory_space<vmem>>) attributes {dimension_semantics = [#tpu.dimension_semantics<parallel>], iteration_bounds = array<i64: 1>, scalar_prefetch = 0 : i64, scratch_operands = 0 : i64, tpu.core_type = #tpu.core_type<tc>, window_params = [{transform_indices = @transform_0, window_bounds = array<i64: 32, 128>}, {pipeline_mode = #tpu.pipeline_mode<synchronous>, transform_indices = @transform_1, window_bounds = array<i64: 1, 128>}, {pipeline_mode = #tpu.pipeline_mode<synchronous>, transform_indices = @transform_2, window_bounds = array<i64: 1, 128>}, {transform_indices = @transform_3, window_bounds = array<i64: 32, 128>}]} {
    %c0 = arith.constant 0 : index
    %c0_0 = arith.constant 0 : index
    %0 = vector.load %arg1[%c0, %c0_0] : memref<32x128xf32, #tpu.memory_space<vmem>>, vector<32x128xf32>
    %c0_1 = arith.constant 0 : index
    %c0_2 = arith.constant 0 : index
    %1 = vector.load %arg2[%c0_1, %c0_2] : memref<1x128xf32, #tpu.memory_space<vmem>>, vector<1x128xf32>
    %c0_3 = arith.constant 0 : index
    %c0_4 = arith.constant 0 : index
    %2 = vector.load %arg3[%c0_3, %c0_4] : memref<1x128xf32, #tpu.memory_space<vmem>>, vector<1x128xf32>
    %cst = arith.constant dense<0.000000e+00> : vector<32xf32>
    %3 = vector.multi_reduction <add>, %0, %cst [1] : vector<32x128xf32> to vector<32xf32>
    %4 = vector.shape_cast %3 : vector<32xf32> to vector<32x1xf32>
    %cst_5 = arith.constant 1.280000e+02 : f32
    %5 = vector.broadcast %cst_5 : f32 to vector<32x1xf32>
    %6 = arith.divf %4, %5 : vector<32x1xf32>
    %7 = vector.broadcast %6 : vector<32x1xf32> to vector<32x128xf32>
    %8 = arith.subf %0, %7 : vector<32x128xf32>
    %9 = arith.mulf %8, %8 : vector<32x128xf32>
    %cst_6 = arith.constant dense<0.000000e+00> : vector<32xf32>
    %10 = vector.multi_reduction <add>, %9, %cst_6 [1] : vector<32x128xf32> to vector<32xf32>
    %11 = vector.shape_cast %10 : vector<32xf32> to vector<32x1xf32>
    %cst_7 = arith.constant 1.280000e+02 : f32
    %12 = vector.broadcast %cst_7 : f32 to vector<32x1xf32>
    %13 = arith.divf %11, %12 : vector<32x1xf32>
    %cst_8 = arith.constant 9.99999974E-6 : f32
    %14 = vector.broadcast %cst_8 : f32 to vector<32x1xf32>
    %15 = arith.addf %13, %14 : vector<32x1xf32>
    %16 = math.rsqrt %15 : vector<32x1xf32>
    %17 = vector.broadcast %16 : vector<32x1xf32> to vector<32x128xf32>
    %18 = arith.mulf %8, %17 : vector<32x128xf32>
    %19 = vector.broadcast %1 : vector<1x128xf32> to vector<32x128xf32>
    %20 = arith.mulf %18, %19 : vector<32x128xf32>
    %21 = vector.broadcast %2 : vector<1x128xf32> to vector<32x128xf32>
    %22 = arith.addf %20, %21 : vector<32x128xf32>
    %c0_9 = arith.constant 0 : index
    %c0_10 = arith.constant 0 : index
    %23 = vector.load %arg4[%c0_9, %c0_10] : memref<32x128xf32, #tpu.memory_space<vmem>>, vector<32x128xf32>
    tpu.vector_store %arg4[%c0_9, %c0_10], %22 {strides = array<i32>} : memref<32x128xf32, #tpu.memory_space<vmem>>, vector<32x128xf32>,
    return
  }
  func.func @transform_0(%arg0: i32) -> (i32, i32) {
    %c0_i32 = arith.constant 0 : i32
    %c0_i32_0 = arith.constant 0 : i32
    return %arg0, %c0_i32 : i32, i32
  }
  func.func @transform_1(%arg0: i32) -> (i32, i32) {
    %c0_i32 = arith.constant 0 : i32
    %c0_i32_0 = arith.constant 0 : i32
    %c0_i32_1 = arith.constant 0 : i32
    return %c0_i32, %c0_i32_0 : i32, i32
  }
  func.func @transform_2(%arg0: i32) -> (i32, i32) {
    %c0_i32 = arith.constant 0 : i32
    %c0_i32_0 = arith.constant 0 : i32
    %c0_i32_1 = arith.constant 0 : i32
    return %c0_i32, %c0_i32_0 : i32, i32
  }
  func.func @transform_3(%arg0: i32) -> (i32, i32) {
    %c0_i32 = arith.constant 0 : i32
    %c0_i32_0 = arith.constant 0 : i32
    return %arg0, %c0_i32 : i32, i32
  }
}

</mosaic_0001>

<llo_original>
// kernel: transformer_encoder_forward.6
$region0: #{transformer_encoder_forward.6}
  #allocation0 [shape = 'u32[]', space=smem, size = 0x4, offset = 0x4, fixed_abs, tag = 'smem constant byte address 0x4 - core index']
  #allocation1 [shape = 'u32[72,128]{1,0:T(1,128)}', space=vmem, size = 0x9000, scoped, tag = 'internal scratch']
  %s0 = inlined_call_operand.vmem [shape: f32[32,128], index: 0, kind: input, shape index: {}]
  %s1 = inlined_call_operand.vmem [shape: f32[128,512], index: 1, kind: input, shape index: {}]
  %s2 = inlined_call_operand.vmem [shape: f32[1,512], index: 2, kind: input, shape index: {}]
  %s3 = inlined_call_operand.hbm [shape: f32[512,128], index: 3, kind: input, shape index: {}]
  %s4 = inlined_call_operand.vmem [shape: f32[1,128], index: 4, kind: input, shape index: {}]
  %s5 = inlined_call_operand.vmem [shape: f32[1,128], index: 5, kind: input, shape index: {}]
  %s6 = inlined_call_operand.vmem [shape: f32[1,128], index: 6, kind: input, shape index: {}]
  %s7 = inlined_call_operand.vmem [shape: f32[32,128], index: 7, kind: output, shape index: {}]
  %s8 = sld [smem:[#allocation0]]
  $region42: #{transformer_encoder_forward.6} parent=0
    _
  %s10 = ssub.s32 1, %s8
  %s11 = scalar_select 0, %s10, %s8
  $region1: #{transformer_encoder_forward.6} parent=0
    #allocation2 [shape = 'u8[262144]{0}', space=vmem, size = 0x40000, scoped, tag = 'input window, operand 3, single buffered']
    #allocation3 [shape = 's32[1]{0}', space=sflag, size = 0x4, scoped, tag = 'scoped memory for transformer_encoder_forward.6']
    %12 = vsyncpa [#allocation3], 0
    // Predicated region
    $region2: #{transformer_encoder_forward.6} parent=1 // pred_check
      _
    $region3: #{transformer_encoder_forward.6} parent=1 // pred_check_branch
      %14 = sbr.rel (0) target = $region5
    $region4: #{transformer_encoder_forward.6} parent=1 // pred_region
      _
    $region5: #{transformer_encoder_forward.6} parent=1 // pred_fallthru
      _
    // Predicated region
    $region6: #{transformer_encoder_forward.6} parent=1 // pred_check
      _
    $region7: #{transformer_encoder_forward.6} parent=1 // pred_check_branch
      %16 = sbr.rel (0) target = $region9
    $region8: #{transformer_encoder_forward.6} parent=1 // pred_region
      _
    $region9: #{transformer_encoder_forward.6} parent=1 // pred_fallthru
      _
    // Predicated region
    $region10: #{transformer_encoder_forward.6} parent=1 // pred_check
      _
    $region11: #{transformer_encoder_forward.6} parent=1 // pred_check_branch
      %18 = sbr.rel (0) target = $region13
    $region12: #{transformer_encoder_forward.6} parent=1 // pred_region
      _
    $region13: #{transformer_encoder_forward.6} parent=1 // pred_fallthru
      _
    // Predicated region
    $region14: #{transformer_encoder_forward.6} parent=1 // pred_check
      _
    $region15: #{transformer_encoder_forward.6} parent=1 // pred_check_branch
      %20 = sbr.rel (0) target = $region17
    $region16: #{transformer_encoder_forward.6} parent=1 // pred_region
      %22 = vsyncadd [#allocation3], 0
      %s23 = sshll.u32 %s3, 4
      %s24 = int_to_ptr.hbm [resolvable:$true] %s23
      %s25 = sshll.u32 [#allocation2], 4
      %s26 = int_to_ptr.vmem [resolvable:$true] %s25
      %31 = dma.hbm_to_vmem [thread:$0]  %s24, 8192, %s26, [#allocation3], 128, 128, 8
    $region17: #{transformer_encoder_forward.6} parent=1 // pred_fallthru
      _
    // Predicated region
    $region18: #{transformer_encoder_forward.6} parent=1 // pred_check
      _
    $region19: #{transformer_encoder_forward.6} parent=1 // pred_check_branch
      %33 = sbr.rel (0) target = $region21
    $region20: #{transformer_encoder_forward.6} parent=1 // pred_region
      _
    $region21: #{transformer_encoder_forward.6} parent=1 // pred_fallthru
      _
    // Predicated region
    $region22: #{transformer_encoder_forward.6} parent=1 // pred_check
      _
    $region23: #{transformer_encoder_forward.6} parent=1 // pred_check_branch
      %35 = sbr.rel (0) target = $region25
    $region24: #{transformer_encoder_forward.6} parent=1 // pred_region
      _
    $region25: #{transformer_encoder_forward.6} parent=1 // pred_fallthru
      _
    // Predicated region
    $region26: #{transformer_encoder_forward.6} parent=1 // pred_check
      _
    $region27: #{transformer_encoder_forward.6} parent=1 // pred_check_branch
      %37 = sbr.rel (0) target = $region29
    $region28: #{transformer_encoder_forward.6} parent=1 // pred_region
      _
    $region29: #{transformer_encoder_forward.6} parent=1 // pred_fallthru
      _
    // Predicated region
    $region30: #{transformer_encoder_forward.6} parent=1 // pred_check
      _
    $region31: #{transformer_encoder_forward.6} parent=1 // pred_check_branch
      %39 = sbr.rel (0) target = $region33
    $region32: #{transformer_encoder_forward.6} parent=1 // pred_region
      %41 = dma.done [#allocation3], 8192
    $region33: #{transformer_encoder_forward.6} parent=1 // pred_fallthru
      _
    %v42 = vld [vmem:[%s0] sm:$0xff]
    %v43 = vld [vmem:[%s0 + $0x8] sm:$0xff]
    %v44 = vld [vmem:[%s0 + $0x10] sm:$0xff]
    %v45 = vld [vmem:[%s0 + $0x18] sm:$0xff]
    %v46 = vld [vmem:[%s1] sm:$0xff]
    %v47 = vld [vmem:[%s1 + $0x8] sm:$0xff]
    %v48 = vld [vmem:[%s1 + $0x10] sm:$0xff]
    %v49 = vld [vmem:[%s1 + $0x18] sm:$0xff]
    %v50 = vld [vmem:[%s1 + $0x20] sm:$0xff]
    %v51 = vld [vmem:[%s1 + $0x28] sm:$0xff]
    %v52 = vld [vmem:[%s1 + $0x30] sm:$0xff]
    %v53 = vld [vmem:[%s1 + $0x38] sm:$0xff]
    %v54 = vld [vmem:[%s1 + $0x40] sm:$0xff]
    %v55 = vld [vmem:[%s1 + $0x48] sm:$0xff]
    %v56 = vld [vmem:[%s1 + $0x50] sm:$0xff]
    %v57 = vld [vmem:[%s1 + $0x58] sm:$0xff]
    %v58 = vld [vmem:[%s1 + $0x60] sm:$0xff]
    %v59 = vld [vmem:[%s1 + $0x68] sm:$0xff]
    %v60 = vld [vmem:[%s1 + $0x70] sm:$0xff]
    %v61 = vld [vmem:[%s1 + $0x78] sm:$0xff]
    %v62 = vld [vmem:[%s1 + $0x80] sm:$0xff]
    %v63 = vld [vmem:[%s1 + $0x88] sm:$0xff]
    %v64 = vld [vmem:[%s1 + $0x90] sm:$0xff]
    %v65 = vld [vmem:[%s1 + $0x98] sm:$0xff]
    %v66 = vld [vmem:[%s1 + $0xa0] sm:$0xff]
    %v67 = vld [vmem:[%s1 + $0xa8] sm:$0xff]
    %v68 = vld [vmem:[%s1 + $0xb0] sm:$0xff]
    %v69 = vld [vmem:[%s1 + $0xb8] sm:$0xff]
    %v70 = vld [vmem:[%s1 + $0xc0] sm:$0xff]
    %v71 = vld [vmem:[%s1 + $0xc8] sm:$0xff]
    %v72 = vld [vmem:[%s1 + $0xd0] sm:$0xff]
    %v73 = vld [vmem:[%s1 + $0xd8] sm:$0xff]
    %v74 = vld [vmem:[%s1 + $0xe0] sm:$0xff]
    %v75 = vld [vmem:[%s1 + $0xe8] sm:$0xff]
    %v76 = vld [vmem:[%s1 + $0xf0] sm:$0xff]
    %v77 = vld [vmem:[%s1 + $0xf8] sm:$0xff]
    %v78 = vld [vmem:[%s1 + $0x100] sm:$0xff]
    %v79 = vld [vmem:[%s1 + $0x108] sm:$0xff]
    %v80 = vld [vmem:[%s1 + $0x110] sm:$0xff]
    %v81 = vld [vmem:[%s1 + $0x118] sm:$0xff]
    %v82 = vld [vmem:[%s1 + $0x120] sm:$0xff]
    %v83 = vld [vmem:[%s1 + $0x128] sm:$0xff]
    %v84 = vld [vmem:[%s1 + $0x130] sm:$0xff]
    %v85 = vld [vmem:[%s1 + $0x138] sm:$0xff]
    %v86 = vld [vmem:[%s1 + $0x140] sm:$0xff]
    %v87 = vld [vmem:[%s1 + $0x148] sm:$0xff]
    %v88 = vld [vmem:[%s1 + $0x150] sm:$0xff]
    %v89 = vld [vmem:[%s1 + $0x158] sm:$0xff]
    %v90 = vld [vmem:[%s1 + $0x160] sm:$0xff]
    %v91 = vld [vmem:[%s1 + $0x168] sm:$0xff]
    %v92 = vld [vmem:[%s1 + $0x170] sm:$0xff]
    %v93 = vld [vmem:[%s1 + $0x178] sm:$0xff]
    %v94 = vld [vmem:[%s1 + $0x180] sm:$0xff]
    %v95 = vld [vmem:[%s1 + $0x188] sm:$0xff]
    %v96 = vld [vmem:[%s1 + $0x190] sm:$0xff]
    %v97 = vld [vmem:[%s1 + $0x198] sm:$0xff]
    %v98 = vld [vmem:[%s1 + $0x1a0] sm:$0xff]
    %v99 = vld [vmem:[%s1 + $0x1a8] sm:$0xff]
    %v100 = vld [vmem:[%s1 + $0x1b0] sm:$0xff]
    %v101 = vld [vmem:[%s1 + $0x1b8] sm:$0xff]
    %v102 = vld [vmem:[%s1 + $0x1c0] sm:$0xff]
    %v103 = vld [vmem:[%s1 + $0x1c8] sm:$0xff]
    %v104 = vld [vmem:[%s1 + $0x1d0] sm:$0xff]
    %v105 = vld [vmem:[%s1 + $0x1d8] sm:$0xff]
    %v106 = vld [vmem:[%s1 + $0x1e0] sm:$0xff]
    %v107 = vld [vmem:[%s1 + $0x1e8] sm:$0xff]
    %v108 = vld [vmem:[%s1 + $0x1f0] sm:$0xff]
    %v109 = vld [vmem:[%s1 + $0x1f8] sm:$0xff]
    %v110 = vld [vmem:[%s2] sm:$0xf]
    %v112 = vperm.slane %v110, 0
    %v113 = vperm.slane %v110, 1
    %v114 = vperm.slane %v110, 2
    %v115 = vperm.slane %v110, 3
    %120 = vmatpush.msra.mxu0 %v106
    %121 = vmatpush.msra.mxu0 %v102
    %122 = vmatpush.msra.mxu0 %v98
    %123 = vmatpush.msra.mxu0 %v94
    %124 = vmatpush.msra.mxu0 %v90
    %125 = vmatpush.msra.mxu0 %v86
    %126 = vmatpush.msra.mxu0 %v82
    %127 = vmatpush.msra.mxu0 %v78
    %128 = vmatpush.msra.mxu0 %v74
    %129 = vmatpush.msra.mxu0 %v70
    %130 = vmatpush.msra.mxu0 %v66
    %131 = vmatpush.msra.mxu0 %v62
    %132 = vmatpush.msra.mxu0 %v58
    %133 = vmatpush.msra.mxu0 %v54
    %134 = vmatpush.msra.mxu0 %v50
    %135 = vmatpush.msra.mxu0 %v46
    %136 = vmatmul.f32.gmra.mxu0 %v42
    %v137 = vpop.f32.mrf.mxu0
    %v138 = vadd.f32 %v112, %v137
    %139 = vmatmul.f32.gmra.mxu0 %v43
    %v140 = vpop.f32.mrf.mxu0
    %v141 = vadd.f32 %v112, %v140
    %142 = vmatmul.f32.gmra.mxu0 %v44
    %v143 = vpop.f32.mrf.mxu0
    %v144 = vadd.f32 %v112, %v143
    %145 = vmatmul.f32.gmra.mxu0 %v45
    %v146 = vpop.f32.mrf.mxu0
    %v147 = vadd.f32 %v112, %v146
    %148 = vdwg.mxu0
    %149 = vmatpush.msra.mxu0 %v107
    %150 = vmatpush.msra.mxu0 %v103
    %151 = vmatpush.msra.mxu0 %v99
    %152 = vmatpush.msra.mxu0 %v95
    %153 = vmatpush.msra.mxu0 %v91
    %154 = vmatpush.msra.mxu0 %v87
    %155 = vmatpush.msra.mxu0 %v83
    %156 = vmatpush.msra.mxu0 %v79
    %157 = vmatpush.msra.mxu0 %v75
    %158 = vmatpush.msra.mxu0 %v71
    %159 = vmatpush.msra.mxu0 %v67
    %160 = vmatpush.msra.mxu0 %v63
    %161 = vmatpush.msra.mxu0 %v59
    %162 = vmatpush.msra.mxu0 %v55
    %163 = vmatpush.msra.mxu0 %v51
    %164 = vmatpush.msra.mxu0 %v47
    %165 = vmatmul.f32.gmra.mxu0 %v42
    %v166 = vpop.f32.mrf.mxu0
    %v167 = vadd.f32 %v113, %v166
    %168 = vmatmul.f32.gmra.mxu0 %v43
    %v169 = vpop.f32.mrf.mxu0
    %v170 = vadd.f32 %v113, %v169
    %171 = vmatmul.f32.gmra.mxu0 %v44
    %v172 = vpop.f32.mrf.mxu0
    %v173 = vadd.f32 %v113, %v172
    %174 = vmatmul.f32.gmra.mxu0 %v45
    %v175 = vpop.f32.mrf.mxu0
    %v176 = vadd.f32 %v113, %v175
    %177 = vdwg.mxu0
    %178 = vmatpush.msra.mxu0 %v108
    %179 = vmatpush.msra.mxu0 %v104
    %180 = vmatpush.msra.mxu0 %v100
    %181 = vmatpush.msra.mxu0 %v96
    %182 = vmatpush.msra.mxu0 %v92
    %183 = vmatpush.msra.mxu0 %v88
    %184 = vmatpush.msra.mxu0 %v84
    %185 = vmatpush.msra.mxu0 %v80
    %186 = vmatpush.msra.mxu0 %v76
    %187 = vmatpush.msra.mxu0 %v72
    %188 = vmatpush.msra.mxu0 %v68
    %189 = vmatpush.msra.mxu0 %v64
    %190 = vmatpush.msra.mxu0 %v60
    %191 = vmatpush.msra.mxu0 %v56
    %192 = vmatpush.msra.mxu0 %v52
    %193 = vmatpush.msra.mxu0 %v48
    %194 = vmatmul.f32.gmra.mxu0 %v42
    %v195 = vpop.f32.mrf.mxu0
    %v196 = vadd.f32 %v114, %v195
    %197 = vmatmul.f32.gmra.mxu0 %v43
    %v198 = vpop.f32.mrf.mxu0
    %v199 = vadd.f32 %v114, %v198
    %200 = vmatmul.f32.gmra.mxu0 %v44
    %v201 = vpop.f32.mrf.mxu0
    %v202 = vadd.f32 %v114, %v201
    %203 = vmatmul.f32.gmra.mxu0 %v45
    %v204 = vpop.f32.mrf.mxu0
    %v205 = vadd.f32 %v114, %v204
    %206 = vdwg.mxu0
    %207 = vmatpush.msra.mxu0 %v109
    %208 = vmatpush.msra.mxu0 %v105
    %209 = vmatpush.msra.mxu0 %v101
    %210 = vmatpush.msra.mxu0 %v97
    %211 = vmatpush.msra.mxu0 %v93
    %212 = vmatpush.msra.mxu0 %v89
    %213 = vmatpush.msra.mxu0 %v85
    %214 = vmatpush.msra.mxu0 %v81
    %215 = vmatpush.msra.mxu0 %v77
    %216 = vmatpush.msra.mxu0 %v73
    %217 = vmatpush.msra.mxu0 %v69
    %218 = vmatpush.msra.mxu0 %v65
    %219 = vmatpush.msra.mxu0 %v61
    %220 = vmatpush.msra.mxu0 %v57
    %221 = vmatpush.msra.mxu0 %v53
    %222 = vmatpush.msra.mxu0 %v49
    %223 = vmatmul.f32.gmra.mxu0 %v42
    %v224 = vpop.f32.mrf.mxu0
    %v225 = vadd.f32 %v115, %v224
    %226 = vmatmul.f32.gmra.mxu0 %v43
    %v227 = vpop.f32.mrf.mxu0
    %v228 = vadd.f32 %v115, %v227
    %229 = vmatmul.f32.gmra.mxu0 %v44
    %v230 = vpop.f32.mrf.mxu0
    %v231 = vadd.f32 %v115, %v230
    %232 = vmatmul.f32.gmra.mxu0 %v45
    %v233 = vpop.f32.mrf.mxu0
    %v234 = vadd.f32 %v115, %v233
    %235 = vdwg.mxu0
    %v236 = vmax.f32 %v138, 0.0
    %v237 = vmax.f32 %v167, 0.0
    %v238 = vmax.f32 %v196, 0.0
    %v239 = vmax.f32 %v225, 0.0
    %v240 = vmax.f32 %v141, 0.0
    %v241 = vmax.f32 %v170, 0.0
    %v242 = vmax.f32 %v199, 0.0
    %v243 = vmax.f32 %v228, 0.0
    %v244 = vmax.f32 %v144, 0.0
    %v245 = vmax.f32 %v173, 0.0
    %v246 = vmax.f32 %v202, 0.0
    %v247 = vmax.f32 %v231, 0.0
    %v248 = vmax.f32 %v147, 0.0
    %v249 = vmax.f32 %v176, 0.0
    %v250 = vmax.f32 %v205, 0.0
    %v251 = vmax.f32 %v234, 0.0
    %v252 = vld [vmem:[#allocation2] sm:$0xff]
    %v253 = vld [vmem:[#allocation2 + $0x8] sm:$0xff]
    %v254 = vld [vmem:[#allocation2 + $0x10] sm:$0xff]
    %v255 = vld [vmem:[#allocation2 + $0x18] sm:$0xff]
    %v256 = vld [vmem:[#allocation2 + $0x20] sm:$0xff]
    %v257 = vld [vmem:[#allocation2 + $0x28] sm:$0xff]
    %v258 = vld [vmem:[#allocation2 + $0x30] sm:$0xff]
    %v259 = vld [vmem:[#allocation2 + $0x38] sm:$0xff]
    %v260 = vld [vmem:[#allocation2 + $0x40] sm:$0xff]
    %v261 = vld [vmem:[#allocation2 + $0x48] sm:$0xff]
    %v262 = vld [vmem:[#allocation2 + $0x50] sm:$0xff]
    %v263 = vld [vmem:[#allocation2 + $0x58] sm:$0xff]
    %v264 = vld [vmem:[#allocation2 + $0x60] sm:$0xff]
    %v265 = vld [vmem:[#allocation2 + $0x68] sm:$0xff]
    %v266 = vld [vmem:[#allocation2 + $0x70] sm:$0xff]
    %v267 = vld [vmem:[#allocation2 + $0x78] sm:$0xff]
    %v268 = vld [vmem:[#allocation2 + $0x80] sm:$0xff]
    %v269 = vld [vmem:[#allocation2 + $0x88] sm:$0xff]
    %v270 = vld [vmem:[#allocation2 + $0x90] sm:$0xff]
    %v271 = vld [vmem:[#allocation2 + $0x98] sm:$0xff]
    %v272 = vld [vmem:[#allocation2 + $0xa0] sm:$0xff]
    %v273 = vld [vmem:[#allocation2 + $0xa8] sm:$0xff]
    %v274 = vld [vmem:[#allocation2 + $0xb0] sm:$0xff]
    %v275 = vld [vmem:[#allocation2 + $0xb8] sm:$0xff]
    %v276 = vld [vmem:[#allocation2 + $0xc0] sm:$0xff]
    %v277 = vld [vmem:[#allocation2 + $0xc8] sm:$0xff]
    %v278 = vld [vmem:[#allocation2 + $0xd0] sm:$0xff]
    %v279 = vld [vmem:[#allocation2 + $0xd8] sm:$0xff]
    %v280 = vld [vmem:[#allocation2 + $0xe0] sm:$0xff]
    %v281 = vld [vmem:[#allocation2 + $0xe8] sm:$0xff]
    %v282 = vld [vmem:[#allocation2 + $0xf0] sm:$0xff]
    %v283 = vld [vmem:[#allocation2 + $0xf8] sm:$0xff]
    %v284 = vld [vmem:[#allocation2 + $0x100] sm:$0xff]
    %v285 = vld [vmem:[#allocation2 + $0x108] sm:$0xff]
    %v286 = vld [vmem:[#allocation2 + $0x110] sm:$0xff]
    %v287 = vld [vmem:[#allocation2 + $0x118] sm:$0xff]
    %v288 = vld [vmem:[#allocation2 + $0x120] sm:$0xff]
    %v289 = vld [vmem:[#allocation2 + $0x128] sm:$0xff]
    %v290 = vld [vmem:[#allocation2 + $0x130] sm:$0xff]
    %v291 = vld [vmem:[#allocation2 + $0x138] sm:$0xff]
    %v292 = vld [vmem:[#allocation2 + $0x140] sm:$0xff]
    %v293 = vld [vmem:[#allocation2 + $0x148] sm:$0xff]
    %v294 = vld [vmem:[#allocation2 + $0x150] sm:$0xff]
    %v295 = vld [vmem:[#allocation2 + $0x158] sm:$0xff]
    %v296 = vld [vmem:[#allocation2 + $0x160] sm:$0xff]
    %v297 = vld [vmem:[#allocation2 + $0x168] sm:$0xff]
    %v298 = vld [vmem:[#allocation2 + $0x170] sm:$0xff]
    %v299 = vld [vmem:[#allocation2 + $0x178] sm:$0xff]
    %v300 = vld [vmem:[#allocation2 + $0x180] sm:$0xff]
    %v301 = vld [vmem:[#allocation2 + $0x188] sm:$0xff]
    %v302 = vld [vmem:[#allocation2 + $0x190] sm:$0xff]
    %v303 = vld [vmem:[#allocation2 + $0x198] sm:$0xff]
    %v304 = vld [vmem:[#allocation2 + $0x1a0] sm:$0xff]
    %v305 = vld [vmem:[#allocation2 + $0x1a8] sm:$0xff]
    %v306 = vld [vmem:[#allocation2 + $0x1b0] sm:$0xff]
    %v307 = vld [vmem:[#allocation2 + $0x1b8] sm:$0xff]
    %v308 = vld [vmem:[#allocation2 + $0x1c0] sm:$0xff]
    %v309 = vld [vmem:[#allocation2 + $0x1c8] sm:$0xff]
    %v310 = vld [vmem:[#allocation2 + $0x1d0] sm:$0xff]
    %v311 = vld [vmem:[#allocation2 + $0x1d8] sm:$0xff]
    %v312 = vld [vmem:[#allocation2 + $0x1e0] sm:$0xff]
    %v313 = vld [vmem:[#allocation2 + $0x1e8] sm:$0xff]
    %v314 = vld [vmem:[#allocation2 + $0x1f0] sm:$0xff]
    %v315 = vld [vmem:[#allocation2 + $0x1f8] sm:$0xff]
    %v316 = vld [vmem:[%s4] sm:$0x1]
    %v318 = vperm.slane %v316, 0
    %320 = vmatpush.msra.mxu0 %v267
    %321 = vmatpush.msra.mxu0 %v266
    %322 = vmatpush.msra.mxu0 %v265
    %323 = vmatpush.msra.mxu0 %v264
    %324 = vmatpush.msra.mxu0 %v263
    %325 = vmatpush.msra.mxu0 %v262
    %326 = vmatpush.msra.mxu0 %v261
    %327 = vmatpush.msra.mxu0 %v260
    %328 = vmatpush.msra.mxu0 %v259
    %329 = vmatpush.msra.mxu0 %v258
    %330 = vmatpush.msra.mxu0 %v257
    %331 = vmatpush.msra.mxu0 %v256
    %332 = vmatpush.msra.mxu0 %v255
    %333 = vmatpush.msra.mxu0 %v254
    %334 = vmatpush.msra.mxu0 %v253
    %335 = vmatpush.msra.mxu0 %v252
    %336 = vmatmul.f32.gmra.mxu0 %v236
    %v337 = vpop.f32.mrf.mxu0
    %v338 = vadd.f32 %v318, %v337
    %339 = vmatmul.f32.gmra.mxu0 %v240
    %v340 = vpop.f32.mrf.mxu0
    %v341 = vadd.f32 %v318, %v340
    %342 = vmatmul.f32.gmra.mxu0 %v244
    %v343 = vpop.f32.mrf.mxu0
    %v344 = vadd.f32 %v318, %v343
    %345 = vmatmul.f32.gmra.mxu0 %v248
    %v346 = vpop.f32.mrf.mxu0
    %v347 = vadd.f32 %v318, %v346
    %348 = vdwg.mxu0
    %349 = vmatpush.msra.mxu0 %v283
    %350 = vmatpush.msra.mxu0 %v282
    %351 = vmatpush.msra.mxu0 %v281
    %352 = vmatpush.msra.mxu0 %v280
    %353 = vmatpush.msra.mxu0 %v279
    %354 = vmatpush.msra.mxu0 %v278
    %355 = vmatpush.msra.mxu0 %v277
    %356 = vmatpush.msra.mxu0 %v276
    %357 = vmatpush.msra.mxu0 %v275
    %358 = vmatpush.msra.mxu0 %v274
    %359 = vmatpush.msra.mxu0 %v273
    %360 = vmatpush.msra.mxu0 %v272
    %361 = vmatpush.msra.mxu0 %v271
    %362 = vmatpush.msra.mxu0 %v270
    %363 = vmatpush.msra.mxu0 %v269
    %364 = vmatpush.msra.mxu0 %v268
    %365 = vmatmul.f32.gmra.mxu0 %v237
    %v366 = vpop.f32.mrf.mxu0
    %v367 = vadd.f32 %v338, %v366
    %368 = vmatmul.f32.gmra.mxu0 %v241
    %v369 = vpop.f32.mrf.mxu0
    %v370 = vadd.f32 %v341, %v369
    %371 = vmatmul.f32.gmra.mxu0 %v245
    %v372 = vpop.f32.mrf.mxu0
    %v373 = vadd.f32 %v344, %v372
    %374 = vmatmul.f32.gmra.mxu0 %v249
    %v375 = vpop.f32.mrf.mxu0
    %v376 = vadd.f32 %v347, %v375
    %377 = vdwg.mxu0
    %378 = vmatpush.msra.mxu0 %v299
    %379 = vmatpush.msra.mxu0 %v298
    %380 = vmatpush.msra.mxu0 %v297
    %381 = vmatpush.msra.mxu0 %v296
    %382 = vmatpush.msra.mxu0 %v295
    %383 = vmatpush.msra.mxu0 %v294
    %384 = vmatpush.msra.mxu0 %v293
    %385 = vmatpush.msra.mxu0 %v292
    %386 = vmatpush.msra.mxu0 %v291
    %387 = vmatpush.msra.mxu0 %v290
    %388 = vmatpush.msra.mxu0 %v289
    %389 = vmatpush.msra.mxu0 %v288
    %390 = vmatpush.msra.mxu0 %v287
    %391 = vmatpush.msra.mxu0 %v286
    %392 = vmatpush.msra.mxu0 %v285
    %393 = vmatpush.msra.mxu0 %v284
    %394 = vmatmul.f32.gmra.mxu0 %v238
    %v395 = vpop.f32.mrf.mxu0
    %v396 = vadd.f32 %v367, %v395
    %397 = vmatmul.f32.gmra.mxu0 %v242
    %v398 = vpop.f32.mrf.mxu0
    %v399 = vadd.f32 %v370, %v398
    %400 = vmatmul.f32.gmra.mxu0 %v246
    %v401 = vpop.f32.mrf.mxu0
    %v402 = vadd.f32 %v373, %v401
    %403 = vmatmul.f32.gmra.mxu0 %v250
    %v404 = vpop.f32.mrf.mxu0
    %v405 = vadd.f32 %v376, %v404
    %406 = vdwg.mxu0
    %407 = vmatpush.msra.mxu0 %v315
    %408 = vmatpush.msra.mxu0 %v314
    %409 = vmatpush.msra.mxu0 %v313
    %410 = vmatpush.msra.mxu0 %v312
    %411 = vmatpush.msra.mxu0 %v311
    %412 = vmatpush.msra.mxu0 %v310
    %413 = vmatpush.msra.mxu0 %v309
    %414 = vmatpush.msra.mxu0 %v308
    %415 = vmatpush.msra.mxu0 %v307
    %416 = vmatpush.msra.mxu0 %v306
    %417 = vmatpush.msra.mxu0 %v305
    %418 = vmatpush.msra.mxu0 %v304
    %419 = vmatpush.msra.mxu0 %v303
    %420 = vmatpush.msra.mxu0 %v302
    %421 = vmatpush.msra.mxu0 %v301
    %422 = vmatpush.msra.mxu0 %v300
    %423 = vmatmul.f32.gmra.mxu0 %v239
    %v424 = vpop.f32.mrf.mxu0
    %v425 = vadd.f32 %v396, %v424
    %426 = vmatmul.f32.gmra.mxu0 %v243
    %v427 = vpop.f32.mrf.mxu0
    %v428 = vadd.f32 %v399, %v427
    %429 = vmatmul.f32.gmra.mxu0 %v247
    %v430 = vpop.f32.mrf.mxu0
    %v431 = vadd.f32 %v402, %v430
    %432 = vmatmul.f32.gmra.mxu0 %v251
    %v433 = vpop.f32.mrf.mxu0
    %v434 = vadd.f32 %v405, %v433
    %435 = vdwg.mxu0
    %v436 = vadd.f32 %v42, %v425
    %v437 = vadd.f32 %v43, %v428
    %v438 = vadd.f32 %v44, %v431
    %v439 = vadd.f32 %v45, %v434
    %v440 = vld [vmem:[%s5] sm:$0x1]
    %v441 = vld [vmem:[%s6] sm:$0x1]
    %442 = vadd.xlane.f32.xlu0 %v436
    %v443 = vpop.xlane.xlu0 %442
    %444 = vadd.xlane.f32.xlu0 %v437
    %v445 = vpop.xlane.xlu0 %444
    %446 = vadd.xlane.f32.xlu0 %v438
    %v447 = vpop.xlane.xlu0 %446
    %448 = vadd.xlane.f32.xlu0 %v439
    %v449 = vpop.xlane.xlu0 %448
    %v450 = vrcp.pop 128.0
    %v451 = vmul.f32 128.0, %v450
    %v452 = vsub.f32 1.0, %v451
    %v453 = vmul.f32 %v450, %v452
    %v454 = vadd.f32 %v450, %v453
    %vm455 = vweird.f32 %v450
    %v456 = vsel %vm455, %v450, %v454
    %v457 = vmul.f32 %v443, %v456
    %v458 = vmul.f32 %v445, %v456
    %v459 = vmul.f32 %v447, %v456
    %v460 = vmul.f32 %v449, %v456
    %v461 = vsub.f32 %v436, %v457
    %v462 = vsub.f32 %v437, %v458
    %v463 = vsub.f32 %v438, %v459
    %v464 = vsub.f32 %v439, %v460
    %v465 = vmul.f32 %v461, %v461
    %v466 = vmul.f32 %v462, %v462
    %v467 = vmul.f32 %v463, %v463
    %v468 = vmul.f32 %v464, %v464
    %469 = vadd.xlane.f32.xlu0 %v465
    %v470 = vpop.xlane.xlu0 %469
    %471 = vadd.xlane.f32.xlu0 %v466
    %v472 = vpop.xlane.xlu0 %471
    %473 = vadd.xlane.f32.xlu0 %v467
    %v474 = vpop.xlane.xlu0 %473
    %475 = vadd.xlane.f32.xlu0 %v468
    %v476 = vpop.xlane.xlu0 %475
    %v477 = vmul.f32 %v470, %v456
    %v478 = vmul.f32 %v472, %v456
    %v479 = vmul.f32 %v474, %v456
    %v480 = vmul.f32 %v476, %v456
    %v481 = vadd.f32 %v477, 1e-05
    %v482 = vadd.f32 %v478, 1e-05
    %v483 = vadd.f32 %v479, 1e-05
    %v484 = vadd.f32 %v480, 1e-05
    %v485 = vrsqrt.pop %v481
    %v486 = vmul.f32 %v485, %v481
    %v487 = vmul.f32 %v486, %v485
    %v488 = vmul.f32 0.5, %v487
    %v489 = vsub.f32 1.5, %v488
    %v490 = vmul.f32 %v485, %v489
    %vm491 = vweird.f32 %v481
    %vm492 = vweird.f32 %v485
    %vm493 = vmor %vm491, %vm492
    %v494 = vsel %vm493, %v485, %v490
    %v495 = vrsqrt.pop %v482
    %v496 = vmul.f32 %v495, %v482
    %v497 = vmul.f32 %v496, %v495
    %v498 = vmul.f32 0.5, %v497
    %v499 = vsub.f32 1.5, %v498
    %v500 = vmul.f32 %v495, %v499
    %vm501 = vweird.f32 %v482
    %vm502 = vweird.f32 %v495
    %vm503 = vmor %vm501, %vm502
    %v504 = vsel %vm503, %v495, %v500
    %v505 = vrsqrt.pop %v483
    %v506 = vmul.f32 %v505, %v483
    %v507 = vmul.f32 %v506, %v505
    %v508 = vmul.f32 0.5, %v507
    %v509 = vsub.f32 1.5, %v508
    %v510 = vmul.f32 %v505, %v509
    %vm511 = vweird.f32 %v483
    %vm512 = vweird.f32 %v505
    %vm513 = vmor %vm511, %vm512
    %v514 = vsel %vm513, %v505, %v510
    %v515 = vrsqrt.pop %v484
    %v516 = vmul.f32 %v515, %v484
    %v517 = vmul.f32 %v516, %v515
    %v518 = vmul.f32 0.5, %v517
    %v519 = vsub.f32 1.5, %v518
    %v520 = vmul.f32 %v515, %v519
    %vm521 = vweird.f32 %v484
    %vm522 = vweird.f32 %v515
    %vm523 = vmor %vm521, %vm522
    %v524 = vsel %vm523, %v515, %v520
    %v525 = vmul.f32 %v461, %v494
    %v526 = vmul.f32 %v462, %v504
    %v527 = vmul.f32 %v463, %v514
    %v528 = vmul.f32 %v464, %v524
    %v530 = vperm.slane %v440, 0
    %v532 = vmul.f32 %v525, %v530
    %v533 = vmul.f32 %v526, %v530
    %v534 = vmul.f32 %v527, %v530
    %v535 = vmul.f32 %v528, %v530
    %v537 = vperm.slane %v441, 0
    %v539 = vadd.f32 %v532, %v537
    %v540 = vadd.f32 %v533, %v537
    %v541 = vadd.f32 %v534, %v537
    %v542 = vadd.f32 %v535, %v537
    %543 = vst [vmem:[%s7] sm:$0xff] %v539
    %544 = vst [vmem:[%s7 + $0x8] sm:$0xff] %v540
    %545 = vst [vmem:[%s7 + $0x10] sm:$0xff] %v541
    %546 = vst [vmem:[%s7 + $0x18] sm:$0xff] %v542
    // Predicated region
    $region34: #{transformer_encoder_forward.6} parent=1 // pred_check
      _
    $region35: #{transformer_encoder_forward.6} parent=1 // pred_check_branch
      %548 = sbr.rel (0) target = $region37
    $region36: #{transformer_encoder_forward.6} parent=1 // pred_region
      _
    $region37: #{transformer_encoder_forward.6} parent=1 // pred_fallthru
      _
    // Predicated region
    $region38: #{transformer_encoder_forward.6} parent=1 // pred_check
      _
    $region39: #{transformer_encoder_forward.6} parent=1 // pred_check_branch
      %550 = sbr.rel (0) target = $region41
    $region40: #{transformer_encoder_forward.6} parent=1 // pred_region
      _
    $region41: #{transformer_encoder_forward.6} parent=1 // pred_fallthru
      _
    %551 = vsyncpa [#allocation3], 1

// kernel: transformer_encoder_forward.8
$region0: #{transformer_encoder_forward.8}
  #allocation0 [shape = 'u32[]', space=smem, size = 0x4, offset = 0x4, fixed_abs, tag = 'smem constant byte address 0x4 - core index']
  #allocation1 [shape = 'u32[72,128]{1,0:T(1,128)}', space=vmem, size = 0x9000, scoped, tag = 'internal scratch']
  %s0 = inlined_call_operand.vmem [shape: f32[32,128], index: 0, kind: input, shape index: {}]
  %s1 = inlined_call_operand.vmem [shape: f32[128,512], index: 1, kind: input, shape index: {}]
  %s2 = inlined_call_operand.vmem [shape: f32[1,512], index: 2, kind: input, shape index: {}]
  %s3 = inlined_call_operand.vmem [shape: f32[512,128], index: 3, kind: input, shape index: {}]
  %s4 = inlined_call_operand.vmem [shape: f32[1,128], index: 4, kind: input, shape index: {}]
  %s5 = inlined_call_operand.vmem [shape: f32[1,128], index: 5, kind: input, shape index: {}]
  %s6 = inlined_call_operand.vmem [shape: f32[1,128], index: 6, kind: input, shape index: {}]
  %s7 = inlined_call_operand.vmem [shape: f32[32,128], index: 7, kind: output, shape index: {}]
  %s8 = sld [smem:[#allocation0]]
  $region38: #{transformer_encoder_forward.8} parent=0
    _
  %s10 = ssub.s32 1, %s8
  %s11 = scalar_select 0, %s10, %s8
  // Predicated region
  $region2: #{transformer_encoder_forward.8} parent=0 // pred_check
    _
  $region3: #{transformer_encoder_forward.8} parent=0 // pred_check_branch
    %13 = sbr.rel (0) target = $region5
  $region4: #{transformer_encoder_forward.8} parent=0 // pred_region
    _
  $region5: #{transformer_encoder_forward.8} parent=0 // pred_fallthru
    _
  // Predicated region
  $region6: #{transformer_encoder_forward.8} parent=0 // pred_check
    _
  $region7: #{transformer_encoder_forward.8} parent=0 // pred_check_branch
    %15 = sbr.rel (0) target = $region9
  $region8: #{transformer_encoder_forward.8} parent=0 // pred_region
    _
  $region9: #{transformer_encoder_forward.8} parent=0 // pred_fallthru
    _
  // Predicated region
  $region10: #{transformer_encoder_forward.8} parent=0 // pred_check
    _
  $region11: #{transformer_encoder_forward.8} parent=0 // pred_check_branch
    %17 = sbr.rel (0) target = $region13
  $region12: #{transformer_encoder_forward.8} parent=0 // pred_region
    _
  $region13: #{transformer_encoder_forward.8} parent=0 // pred_fallthru
    _
  // Predicated region
  $region14: #{transformer_encoder_forward.8} parent=0 // pred_check
    _
  $region15: #{transformer_encoder_forward.8} parent=0 // pred_check_branch
    %19 = sbr.rel (0) target = $region17
  $region16: #{transformer_encoder_forward.8} parent=0 // pred_region
    _
  $region17: #{transformer_encoder_forward.8} parent=0 // pred_fallthru
    _
  // Predicated region
  $region18: #{transformer_encoder_forward.8} parent=0 // pred_check
    _
  $region19: #{transformer_encoder_forward.8} parent=0 // pred_check_branch
    %21 = sbr.rel (0) target = $region21
  $region20: #{transformer_encoder_forward.8} parent=0 // pred_region
    _
  $region21: #{transformer_encoder_forward.8} parent=0 // pred_fallthru
    _
  // Predicated region
  $region22: #{transformer_encoder_forward.8} parent=0 // pred_check
    _
  $region23: #{transformer_encoder_forward.8} parent=0 // pred_check_branch
    %23 = sbr.rel (0) target = $region25
  $region24: #{transformer_encoder_forward.8} parent=0 // pred_region
    _
  $region25: #{transformer_encoder_forward.8} parent=0 // pred_fallthru
    _
  // Predicated region
  $region26: #{transformer_encoder_forward.8} parent=0 // pred_check
    _
  $region27: #{transformer_encoder_forward.8} parent=0 // pred_check_branch
    %25 = sbr.rel (0) target = $region29
  $region28: #{transformer_encoder_forward.8} parent=0 // pred_region
    _
  $region29: #{transformer_encoder_forward.8} parent=0 // pred_fallthru
    _
  %v26 = vld [vmem:[%s0] sm:$0xff]
  %v27 = vld [vmem:[%s0 + $0x8] sm:$0xff]
  %v28 = vld [vmem:[%s0 + $0x10] sm:$0xff]
  %v29 = vld [vmem:[%s0 + $0x18] sm:$0xff]
  %v30 = vld [vmem:[%s1] sm:$0xff]
  %v31 = vld [vmem:[%s1 + $0x8] sm:$0xff]
  %v32 = vld [vmem:[%s1 + $0x10] sm:$0xff]
  %v33 = vld [vmem:[%s1 + $0x18] sm:$0xff]
  %v34 = vld [vmem:[%s1 + $0x20] sm:$0xff]
  %v35 = vld [vmem:[%s1 + $0x28] sm:$0xff]
  %v36 = vld [vmem:[%s1 + $0x30] sm:$0xff]
  %v37 = vld [vmem:[%s1 + $0x38] sm:$0xff]
  %v38 = vld [vmem:[%s1 + $0x40] sm:$0xff]
  %v39 = vld [vmem:[%s1 + $0x48] sm:$0xff]
  %v40 = vld [vmem:[%s1 + $0x50] sm:$0xff]
  %v41 = vld [vmem:[%s1 + $0x58] sm:$0xff]
  %v42 = vld [vmem:[%s1 + $0x60] sm:$0xff]
  %v43 = vld [vmem:[%s1 + $0x68] sm:$0xff]
  %v44 = vld [vmem:[%s1 + $0x70] sm:$0xff]
  %v45 = vld [vmem:[%s1 + $0x78] sm:$0xff]
  %v46 = vld [vmem:[%s1 + $0x80] sm:$0xff]
  %v47 = vld [vmem:[%s1 + $0x88] sm:$0xff]
  %v48 = vld [vmem:[%s1 + $0x90] sm:$0xff]
  %v49 = vld [vmem:[%s1 + $0x98] sm:$0xff]
  %v50 = vld [vmem:[%s1 + $0xa0] sm:$0xff]
  %v51 = vld [vmem:[%s1 + $0xa8] sm:$0xff]
  %v52 = vld [vmem:[%s1 + $0xb0] sm:$0xff]
  %v53 = vld [vmem:[%s1 + $0xb8] sm:$0xff]
  %v54 = vld [vmem:[%s1 + $0xc0] sm:$0xff]
  %v55 = vld [vmem:[%s1 + $0xc8] sm:$0xff]
  %v56 = vld [vmem:[%s1 + $0xd0] sm:$0xff]
  %v57 = vld [vmem:[%s1 + $0xd8] sm:$0xff]
  %v58 = vld [vmem:[%s1 + $0xe0] sm:$0xff]
  %v59 = vld [vmem:[%s1 + $0xe8] sm:$0xff]
  %v60 = vld [vmem:[%s1 + $0xf0] sm:$0xff]
  %v61 = vld [vmem:[%s1 + $0xf8] sm:$0xff]
  %v62 = vld [vmem:[%s1 + $0x100] sm:$0xff]
  %v63 = vld [vmem:[%s1 + $0x108] sm:$0xff]
  %v64 = vld [vmem:[%s1 + $0x110] sm:$0xff]
  %v65 = vld [vmem:[%s1 + $0x118] sm:$0xff]
  %v66 = vld [vmem:[%s1 + $0x120] sm:$0xff]
  %v67 = vld [vmem:[%s1 + $0x128] sm:$0xff]
  %v68 = vld [vmem:[%s1 + $0x130] sm:$0xff]
  %v69 = vld [vmem:[%s1 + $0x138] sm:$0xff]
  %v70 = vld [vmem:[%s1 + $0x140] sm:$0xff]
  %v71 = vld [vmem:[%s1 + $0x148] sm:$0xff]
  %v72 = vld [vmem:[%s1 + $0x150] sm:$0xff]
  %v73 = vld [vmem:[%s1 + $0x158] sm:$0xff]
  %v74 = vld [vmem:[%s1 + $0x160] sm:$0xff]
  %v75 = vld [vmem:[%s1 + $0x168] sm:$0xff]
  %v76 = vld [vmem:[%s1 + $0x170] sm:$0xff]
  %v77 = vld [vmem:[%s1 + $0x178] sm:$0xff]
  %v78 = vld [vmem:[%s1 + $0x180] sm:$0xff]
  %v79 = vld [vmem:[%s1 + $0x188] sm:$0xff]
  %v80 = vld [vmem:[%s1 + $0x190] sm:$0xff]
  %v81 = vld [vmem:[%s1 + $0x198] sm:$0xff]
  %v82 = vld [vmem:[%s1 + $0x1a0] sm:$0xff]
  %v83 = vld [vmem:[%s1 + $0x1a8] sm:$0xff]
  %v84 = vld [vmem:[%s1 + $0x1b0] sm:$0xff]
  %v85 = vld [vmem:[%s1 + $0x1b8] sm:$0xff]
  %v86 = vld [vmem:[%s1 + $0x1c0] sm:$0xff]
  %v87 = vld [vmem:[%s1 + $0x1c8] sm:$0xff]
  %v88 = vld [vmem:[%s1 + $0x1d0] sm:$0xff]
  %v89 = vld [vmem:[%s1 + $0x1d8] sm:$0xff]
  %v90 = vld [vmem:[%s1 + $0x1e0] sm:$0xff]
  %v91 = vld [vmem:[%s1 + $0x1e8] sm:$0xff]
  %v92 = vld [vmem:[%s1 + $0x1f0] sm:$0xff]
  %v93 = vld [vmem:[%s1 + $0x1f8] sm:$0xff]
  %v94 = vld [vmem:[%s2] sm:$0xf]
  %v96 = vperm.slane %v94, 0
  %v97 = vperm.slane %v94, 1
  %v98 = vperm.slane %v94, 2
  %v99 = vperm.slane %v94, 3
  %104 = vmatpush.msra.mxu0 %v90
  %105 = vmatpush.msra.mxu0 %v86
  %106 = vmatpush.msra.mxu0 %v82
  %107 = vmatpush.msra.mxu0 %v78
  %108 = vmatpush.msra.mxu0 %v74
  %109 = vmatpush.msra.mxu0 %v70
  %110 = vmatpush.msra.mxu0 %v66
  %111 = vmatpush.msra.mxu0 %v62
  %112 = vmatpush.msra.mxu0 %v58
  %113 = vmatpush.msra.mxu0 %v54
  %114 = vmatpush.msra.mxu0 %v50
  %115 = vmatpush.msra.mxu0 %v46
  %116 = vmatpush.msra.mxu0 %v42
  %117 = vmatpush.msra.mxu0 %v38
  %118 = vmatpush.msra.mxu0 %v34
  %119 = vmatpush.msra.mxu0 %v30
  %120 = vmatmul.f32.gmra.mxu0 %v26
  %v121 = vpop.f32.mrf.mxu0
  %v122 = vadd.f32 %v96, %v121
  %123 = vmatmul.f32.gmra.mxu0 %v27
  %v124 = vpop.f32.mrf.mxu0
  %v125 = vadd.f32 %v96, %v124
  %126 = vmatmul.f32.gmra.mxu0 %v28
  %v127 = vpop.f32.mrf.mxu0
  %v128 = vadd.f32 %v96, %v127
  %129 = vmatmul.f32.gmra.mxu0 %v29
  %v130 = vpop.f32.mrf.mxu0
  %v131 = vadd.f32 %v96, %v130
  %132 = vdwg.mxu0
  %133 = vmatpush.msra.mxu0 %v91
  %134 = vmatpush.msra.mxu0 %v87
  %135 = vmatpush.msra.mxu0 %v83
  %136 = vmatpush.msra.mxu0 %v79
  %137 = vmatpush.msra.mxu0 %v75
  %138 = vmatpush.msra.mxu0 %v71
  %139 = vmatpush.msra.mxu0 %v67
  %140 = vmatpush.msra.mxu0 %v63
  %141 = vmatpush.msra.mxu0 %v59
  %142 = vmatpush.msra.mxu0 %v55
  %143 = vmatpush.msra.mxu0 %v51
  %144 = vmatpush.msra.mxu0 %v47
  %145 = vmatpush.msra.mxu0 %v43
  %146 = vmatpush.msra.mxu0 %v39
  %147 = vmatpush.msra.mxu0 %v35
  %148 = vmatpush.msra.mxu0 %v31
  %149 = vmatmul.f32.gmra.mxu0 %v26
  %v150 = vpop.f32.mrf.mxu0
  %v151 = vadd.f32 %v97, %v150
  %152 = vmatmul.f32.gmra.mxu0 %v27
  %v153 = vpop.f32.mrf.mxu0
  %v154 = vadd.f32 %v97, %v153
  %155 = vmatmul.f32.gmra.mxu0 %v28
  %v156 = vpop.f32.mrf.mxu0
  %v157 = vadd.f32 %v97, %v156
  %158 = vmatmul.f32.gmra.mxu0 %v29
  %v159 = vpop.f32.mrf.mxu0
  %v160 = vadd.f32 %v97, %v159
  %161 = vdwg.mxu0
  %162 = vmatpush.msra.mxu0 %v92
  %163 = vmatpush.msra.mxu0 %v88
  %164 = vmatpush.msra.mxu0 %v84
  %165 = vmatpush.msra.mxu0 %v80
  %166 = vmatpush.msra.mxu0 %v76
  %167 = vmatpush.msra.mxu0 %v72
  %168 = vmatpush.msra.mxu0 %v68
  %169 = vmatpush.msra.mxu0 %v64
  %170 = vmatpush.msra.mxu0 %v60
  %171 = vmatpush.msra.mxu0 %v56
  %172 = vmatpush.msra.mxu0 %v52
  %173 = vmatpush.msra.mxu0 %v48
  %174 = vmatpush.msra.mxu0 %v44
  %175 = vmatpush.msra.mxu0 %v40
  %176 = vmatpush.msra.mxu0 %v36
  %177 = vmatpush.msra.mxu0 %v32
  %178 = vmatmul.f32.gmra.mxu0 %v26
  %v179 = vpop.f32.mrf.mxu0
  %v180 = vadd.f32 %v98, %v179
  %181 = vmatmul.f32.gmra.mxu0 %v27
  %v182 = vpop.f32.mrf.mxu0
  %v183 = vadd.f32 %v98, %v182
  %184 = vmatmul.f32.gmra.mxu0 %v28
  %v185 = vpop.f32.mrf.mxu0
  %v186 = vadd.f32 %v98, %v185
  %187 = vmatmul.f32.gmra.mxu0 %v29
  %v188 = vpop.f32.mrf.mxu0
  %v189 = vadd.f32 %v98, %v188
  %190 = vdwg.mxu0
  %191 = vmatpush.msra.mxu0 %v93
  %192 = vmatpush.msra.mxu0 %v89
  %193 = vmatpush.msra.mxu0 %v85
  %194 = vmatpush.msra.mxu0 %v81
  %195 = vmatpush.msra.mxu0 %v77
  %196 = vmatpush.msra.mxu0 %v73
  %197 = vmatpush.msra.mxu0 %v69
  %198 = vmatpush.msra.mxu0 %v65
  %199 = vmatpush.msra.mxu0 %v61
  %200 = vmatpush.msra.mxu0 %v57
  %201 = vmatpush.msra.mxu0 %v53
  %202 = vmatpush.msra.mxu0 %v49
  %203 = vmatpush.msra.mxu0 %v45
  %204 = vmatpush.msra.mxu0 %v41
  %205 = vmatpush.msra.mxu0 %v37
  %206 = vmatpush.msra.mxu0 %v33
  %207 = vmatmul.f32.gmra.mxu0 %v26
  %v208 = vpop.f32.mrf.mxu0
  %v209 = vadd.f32 %v99, %v208
  %210 = vmatmul.f32.gmra.mxu0 %v27
  %v211 = vpop.f32.mrf.mxu0
  %v212 = vadd.f32 %v99, %v211
  %213 = vmatmul.f32.gmra.mxu0 %v28
  %v214 = vpop.f32.mrf.mxu0
  %v215 = vadd.f32 %v99, %v214
  %216 = vmatmul.f32.gmra.mxu0 %v29
  %v217 = vpop.f32.mrf.mxu0
  %v218 = vadd.f32 %v99, %v217
  %219 = vdwg.mxu0
  %v220 = vmax.f32 %v122, 0.0
  %v221 = vmax.f32 %v151, 0.0
  %v222 = vmax.f32 %v180, 0.0
  %v223 = vmax.f32 %v209, 0.0
  %v224 = vmax.f32 %v125, 0.0
  %v225 = vmax.f32 %v154, 0.0
  %v226 = vmax.f32 %v183, 0.0
  %v227 = vmax.f32 %v212, 0.0
  %v228 = vmax.f32 %v128, 0.0
  %v229 = vmax.f32 %v157, 0.0
  %v230 = vmax.f32 %v186, 0.0
  %v231 = vmax.f32 %v215, 0.0
  %v232 = vmax.f32 %v131, 0.0
  %v233 = vmax.f32 %v160, 0.0
  %v234 = vmax.f32 %v189, 0.0
  %v235 = vmax.f32 %v218, 0.0
  %v236 = vld [vmem:[%s3] sm:$0xff]
  %v237 = vld [vmem:[%s3 + $0x8] sm:$0xff]
  %v238 = vld [vmem:[%s3 + $0x10] sm:$0xff]
  %v239 = vld [vmem:[%s3 + $0x18] sm:$0xff]
  %v240 = vld [vmem:[%s3 + $0x20] sm:$0xff]
  %v241 = vld [vmem:[%s3 + $0x28] sm:$0xff]
  %v242 = vld [vmem:[%s3 + $0x30] sm:$0xff]
  %v243 = vld [vmem:[%s3 + $0x38] sm:$0xff]
  %v244 = vld [vmem:[%s3 + $0x40] sm:$0xff]
  %v245 = vld [vmem:[%s3 + $0x48] sm:$0xff]
  %v246 = vld [vmem:[%s3 + $0x50] sm:$0xff]
  %v247 = vld [vmem:[%s3 + $0x58] sm:$0xff]
  %v248 = vld [vmem:[%s3 + $0x60] sm:$0xff]
  %v249 = vld [vmem:[%s3 + $0x68] sm:$0xff]
  %v250 = vld [vmem:[%s3 + $0x70] sm:$0xff]
  %v251 = vld [vmem:[%s3 + $0x78] sm:$0xff]
  %v252 = vld [vmem:[%s3 + $0x80] sm:$0xff]
  %v253 = vld [vmem:[%s3 + $0x88] sm:$0xff]
  %v254 = vld [vmem:[%s3 + $0x90] sm:$0xff]
  %v255 = vld [vmem:[%s3 + $0x98] sm:$0xff]
  %v256 = vld [vmem:[%s3 + $0xa0] sm:$0xff]
  %v257 = vld [vmem:[%s3 + $0xa8] sm:$0xff]
  %v258 = vld [vmem:[%s3 + $0xb0] sm:$0xff]
  %v259 = vld [vmem:[%s3 + $0xb8] sm:$0xff]
  %v260 = vld [vmem:[%s3 + $0xc0] sm:$0xff]
  %v261 = vld [vmem:[%s3 + $0xc8] sm:$0xff]
  %v262 = vld [vmem:[%s3 + $0xd0] sm:$0xff]
  %v263 = vld [vmem:[%s3 + $0xd8] sm:$0xff]
  %v264 = vld [vmem:[%s3 + $0xe0] sm:$0xff]
  %v265 = vld [vmem:[%s3 + $0xe8] sm:$0xff]
  %v266 = vld [vmem:[%s3 + $0xf0] sm:$0xff]
  %v267 = vld [vmem:[%s3 + $0xf8] sm:$0xff]
  %v268 = vld [vmem:[%s3 + $0x100] sm:$0xff]
  %v269 = vld [vmem:[%s3 + $0x108] sm:$0xff]
  %v270 = vld [vmem:[%s3 + $0x110] sm:$0xff]
  %v271 = vld [vmem:[%s3 + $0x118] sm:$0xff]
  %v272 = vld [vmem:[%s3 + $0x120] sm:$0xff]
  %v273 = vld [vmem:[%s3 + $0x128] sm:$0xff]
  %v274 = vld [vmem:[%s3 + $0x130] sm:$0xff]
  %v275 = vld [vmem:[%s3 + $0x138] sm:$0xff]
  %v276 = vld [vmem:[%s3 + $0x140] sm:$0xff]
  %v277 = vld [vmem:[%s3 + $0x148] sm:$0xff]
  %v278 = vld [vmem:[%s3 + $0x150] sm:$0xff]
  %v279 = vld [vmem:[%s3 + $0x158] sm:$0xff]
  %v280 = vld [vmem:[%s3 + $0x160] sm:$0xff]
  %v281 = vld [vmem:[%s3 + $0x168] sm:$0xff]
  %v282 = vld [vmem:[%s3 + $0x170] sm:$0xff]
  %v283 = vld [vmem:[%s3 + $0x178] sm:$0xff]
  %v284 = vld [vmem:[%s3 + $0x180] sm:$0xff]
  %v285 = vld [vmem:[%s3 + $0x188] sm:$0xff]
  %v286 = vld [vmem:[%s3 + $0x190] sm:$0xff]
  %v287 = vld [vmem:[%s3 + $0x198] sm:$0xff]
  %v288 = vld [vmem:[%s3 + $0x1a0] sm:$0xff]
  %v289 = vld [vmem:[%s3 + $0x1a8] sm:$0xff]
  %v290 = vld [vmem:[%s3 + $0x1b0] sm:$0xff]
  %v291 = vld [vmem:[%s3 + $0x1b8] sm:$0xff]
  %v292 = vld [vmem:[%s3 + $0x1c0] sm:$0xff]
  %v293 = vld [vmem:[%s3 + $0x1c8] sm:$0xff]
  %v294 = vld [vmem:[%s3 + $0x1d0] sm:$0xff]
  %v295 = vld [vmem:[%s3 + $0x1d8] sm:$0xff]
  %v296 = vld [vmem:[%s3 + $0x1e0] sm:$0xff]
  %v297 = vld [vmem:[%s3 + $0x1e8] sm:$0xff]
  %v298 = vld [vmem:[%s3 + $0x1f0] sm:$0xff]
  %v299 = vld [vmem:[%s3 + $0x1f8] sm:$0xff]
  %v300 = vld [vmem:[%s4] sm:$0x1]
  %v302 = vperm.slane %v300, 0
  %304 = vmatpush.msra.mxu0 %v251
  %305 = vmatpush.msra.mxu0 %v250
  %306 = vmatpush.msra.mxu0 %v249
  %307 = vmatpush.msra.mxu0 %v248
  %308 = vmatpush.msra.mxu0 %v247
  %309 = vmatpush.msra.mxu0 %v246
  %310 = vmatpush.msra.mxu0 %v245
  %311 = vmatpush.msra.mxu0 %v244
  %312 = vmatpush.msra.mxu0 %v243
  %313 = vmatpush.msra.mxu0 %v242
  %314 = vmatpush.msra.mxu0 %v241
  %315 = vmatpush.msra.mxu0 %v240
  %316 = vmatpush.msra.mxu0 %v239
  %317 = vmatpush.msra.mxu0 %v238
  %318 = vmatpush.msra.mxu0 %v237
  %319 = vmatpush.msra.mxu0 %v236
  %320 = vmatmul.f32.gmra.mxu0 %v220
  %v321 = vpop.f32.mrf.mxu0
  %v322 = vadd.f32 %v302, %v321
  %323 = vmatmul.f32.gmra.mxu0 %v224
  %v324 = vpop.f32.mrf.mxu0
  %v325 = vadd.f32 %v302, %v324
  %326 = vmatmul.f32.gmra.mxu0 %v228
  %v327 = vpop.f32.mrf.mxu0
  %v328 = vadd.f32 %v302, %v327
  %329 = vmatmul.f32.gmra.mxu0 %v232
  %v330 = vpop.f32.mrf.mxu0
  %v331 = vadd.f32 %v302, %v330
  %332 = vdwg.mxu0
  %333 = vmatpush.msra.mxu0 %v267
  %334 = vmatpush.msra.mxu0 %v266
  %335 = vmatpush.msra.mxu0 %v265
  %336 = vmatpush.msra.mxu0 %v264
  %337 = vmatpush.msra.mxu0 %v263
  %338 = vmatpush.msra.mxu0 %v262
  %339 = vmatpush.msra.mxu0 %v261
  %340 = vmatpush.msra.mxu0 %v260
  %341 = vmatpush.msra.mxu0 %v259
  %342 = vmatpush.msra.mxu0 %v258
  %343 = vmatpush.msra.mxu0 %v257
  %344 = vmatpush.msra.mxu0 %v256
  %345 = vmatpush.msra.mxu0 %v255
  %346 = vmatpush.msra.mxu0 %v254
  %347 = vmatpush.msra.mxu0 %v253
  %348 = vmatpush.msra.mxu0 %v252
  %349 = vmatmul.f32.gmra.mxu0 %v221
  %v350 = vpop.f32.mrf.mxu0
  %v351 = vadd.f32 %v322, %v350
  %352 = vmatmul.f32.gmra.mxu0 %v225
  %v353 = vpop.f32.mrf.mxu0
  %v354 = vadd.f32 %v325, %v353
  %355 = vmatmul.f32.gmra.mxu0 %v229
  %v356 = vpop.f32.mrf.mxu0
  %v357 = vadd.f32 %v328, %v356
  %358 = vmatmul.f32.gmra.mxu0 %v233
  %v359 = vpop.f32.mrf.mxu0
  %v360 = vadd.f32 %v331, %v359
  %361 = vdwg.mxu0
  %362 = vmatpush.msra.mxu0 %v283
  %363 = vmatpush.msra.mxu0 %v282
  %364 = vmatpush.msra.mxu0 %v281
  %365 = vmatpush.msra.mxu0 %v280
  %366 = vmatpush.msra.mxu0 %v279
  %367 = vmatpush.msra.mxu0 %v278
  %368 = vmatpush.msra.mxu0 %v277
  %369 = vmatpush.msra.mxu0 %v276
  %370 = vmatpush.msra.mxu0 %v275
  %371 = vmatpush.msra.mxu0 %v274
  %372 = vmatpush.msra.mxu0 %v273
  %373 = vmatpush.msra.mxu0 %v272
  %374 = vmatpush.msra.mxu0 %v271
  %375 = vmatpush.msra.mxu0 %v270
  %376 = vmatpush.msra.mxu0 %v269
  %377 = vmatpush.msra.mxu0 %v268
  %378 = vmatmul.f32.gmra.mxu0 %v222
  %v379 = vpop.f32.mrf.mxu0
  %v380 = vadd.f32 %v351, %v379
  %381 = vmatmul.f32.gmra.mxu0 %v226
  %v382 = vpop.f32.mrf.mxu0
  %v383 = vadd.f32 %v354, %v382
  %384 = vmatmul.f32.gmra.mxu0 %v230
  %v385 = vpop.f32.mrf.mxu0
  %v386 = vadd.f32 %v357, %v385
  %387 = vmatmul.f32.gmra.mxu0 %v234
  %v388 = vpop.f32.mrf.mxu0
  %v389 = vadd.f32 %v360, %v388
  %390 = vdwg.mxu0
  %391 = vmatpush.msra.mxu0 %v299
  %392 = vmatpush.msra.mxu0 %v298
  %393 = vmatpush.msra.mxu0 %v297
  %394 = vmatpush.msra.mxu0 %v296
  %395 = vmatpush.msra.mxu0 %v295
  %396 = vmatpush.msra.mxu0 %v294
  %397 = vmatpush.msra.mxu0 %v293
  %398 = vmatpush.msra.mxu0 %v292
  %399 = vmatpush.msra.mxu0 %v291
  %400 = vmatpush.msra.mxu0 %v290
  %401 = vmatpush.msra.mxu0 %v289
  %402 = vmatpush.msra.mxu0 %v288
  %403 = vmatpush.msra.mxu0 %v287
  %404 = vmatpush.msra.mxu0 %v286
  %405 = vmatpush.msra.mxu0 %v285
  %406 = vmatpush.msra.mxu0 %v284
  %407 = vmatmul.f32.gmra.mxu0 %v223
  %v408 = vpop.f32.mrf.mxu0
  %v409 = vadd.f32 %v380, %v408
  %410 = vmatmul.f32.gmra.mxu0 %v227
  %v411 = vpop.f32.mrf.mxu0
  %v412 = vadd.f32 %v383, %v411
  %413 = vmatmul.f32.gmra.mxu0 %v231
  %v414 = vpop.f32.mrf.mxu0
  %v415 = vadd.f32 %v386, %v414
  %416 = vmatmul.f32.gmra.mxu0 %v235
  %v417 = vpop.f32.mrf.mxu0
  %v418 = vadd.f32 %v389, %v417
  %419 = vdwg.mxu0
  %v420 = vadd.f32 %v26, %v409
  %v421 = vadd.f32 %v27, %v412
  %v422 = vadd.f32 %v28, %v415
  %v423 = vadd.f32 %v29, %v418
  %v424 = vld [vmem:[%s5] sm:$0x1]
  %v425 = vld [vmem:[%s6] sm:$0x1]
  %426 = vadd.xlane.f32.xlu0 %v420
  %v427 = vpop.xlane.xlu0 %426
  %428 = vadd.xlane.f32.xlu0 %v421
  %v429 = vpop.xlane.xlu0 %428
  %430 = vadd.xlane.f32.xlu0 %v422
  %v431 = vpop.xlane.xlu0 %430
  %432 = vadd.xlane.f32.xlu0 %v423
  %v433 = vpop.xlane.xlu0 %432
  %v434 = vrcp.pop 128.0
  %v435 = vmul.f32 128.0, %v434
  %v436 = vsub.f32 1.0, %v435
  %v437 = vmul.f32 %v434, %v436
  %v438 = vadd.f32 %v434, %v437
  %vm439 = vweird.f32 %v434
  %v440 = vsel %vm439, %v434, %v438
  %v441 = vmul.f32 %v427, %v440
  %v442 = vmul.f32 %v429, %v440
  %v443 = vmul.f32 %v431, %v440
  %v444 = vmul.f32 %v433, %v440
  %v445 = vsub.f32 %v420, %v441
  %v446 = vsub.f32 %v421, %v442
  %v447 = vsub.f32 %v422, %v443
  %v448 = vsub.f32 %v423, %v444
  %v449 = vmul.f32 %v445, %v445
  %v450 = vmul.f32 %v446, %v446
  %v451 = vmul.f32 %v447, %v447
  %v452 = vmul.f32 %v448, %v448
  %453 = vadd.xlane.f32.xlu0 %v449
  %v454 = vpop.xlane.xlu0 %453
  %455 = vadd.xlane.f32.xlu0 %v450
  %v456 = vpop.xlane.xlu0 %455
  %457 = vadd.xlane.f32.xlu0 %v451
  %v458 = vpop.xlane.xlu0 %457
  %459 = vadd.xlane.f32.xlu0 %v452
  %v460 = vpop.xlane.xlu0 %459
  %v461 = vmul.f32 %v454, %v440
  %v462 = vmul.f32 %v456, %v440
  %v463 = vmul.f32 %v458, %v440
  %v464 = vmul.f32 %v460, %v440
  %v465 = vadd.f32 %v461, 1e-05
  %v466 = vadd.f32 %v462, 1e-05
  %v467 = vadd.f32 %v463, 1e-05
  %v468 = vadd.f32 %v464, 1e-05
  %v469 = vrsqrt.pop %v465
  %v470 = vmul.f32 %v469, %v465
  %v471 = vmul.f32 %v470, %v469
  %v472 = vmul.f32 0.5, %v471
  %v473 = vsub.f32 1.5, %v472
  %v474 = vmul.f32 %v469, %v473
  %vm475 = vweird.f32 %v465
  %vm476 = vweird.f32 %v469
  %vm477 = vmor %vm475, %vm476
  %v478 = vsel %vm477, %v469, %v474
  %v479 = vrsqrt.pop %v466
  %v480 = vmul.f32 %v479, %v466
  %v481 = vmul.f32 %v480, %v479
  %v482 = vmul.f32 0.5, %v481
  %v483 = vsub.f32 1.5, %v482
  %v484 = vmul.f32 %v479, %v483
  %vm485 = vweird.f32 %v466
  %vm486 = vweird.f32 %v479
  %vm487 = vmor %vm485, %vm486
  %v488 = vsel %vm487, %v479, %v484
  %v489 = vrsqrt.pop %v467
  %v490 = vmul.f32 %v489, %v467
  %v491 = vmul.f32 %v490, %v489
  %v492 = vmul.f32 0.5, %v491
  %v493 = vsub.f32 1.5, %v492
  %v494 = vmul.f32 %v489, %v493
  %vm495 = vweird.f32 %v467
  %vm496 = vweird.f32 %v489
  %vm497 = vmor %vm495, %vm496
  %v498 = vsel %vm497, %v489, %v494
  %v499 = vrsqrt.pop %v468
  %v500 = vmul.f32 %v499, %v468
  %v501 = vmul.f32 %v500, %v499
  %v502 = vmul.f32 0.5, %v501
  %v503 = vsub.f32 1.5, %v502
  %v504 = vmul.f32 %v499, %v503
  %vm505 = vweird.f32 %v468
  %vm506 = vweird.f32 %v499
  %vm507 = vmor %vm505, %vm506
  %v508 = vsel %vm507, %v499, %v504
  %v509 = vmul.f32 %v445, %v478
  %v510 = vmul.f32 %v446, %v488
  %v511 = vmul.f32 %v447, %v498
  %v512 = vmul.f32 %v448, %v508
  %v514 = vperm.slane %v424, 0
  %v516 = vmul.f32 %v509, %v514
  %v517 = vmul.f32 %v510, %v514
  %v518 = vmul.f32 %v511, %v514
  %v519 = vmul.f32 %v512, %v514
  %v521 = vperm.slane %v425, 0
  %v523 = vadd.f32 %v516, %v521
  %v524 = vadd.f32 %v517, %v521
  %v525 = vadd.f32 %v518, %v521
  %v526 = vadd.f32 %v519, %v521
  %527 = vst [vmem:[%s7] sm:$0xff] %v523
  %528 = vst [vmem:[%s7 + $0x8] sm:$0xff] %v524
  %529 = vst [vmem:[%s7 + $0x10] sm:$0xff] %v525
  %530 = vst [vmem:[%s7 + $0x18] sm:$0xff] %v526
  // Predicated region
  $region30: #{transformer_encoder_forward.8} parent=0 // pred_check
    _
  $region31: #{transformer_encoder_forward.8} parent=0 // pred_check_branch
    %532 = sbr.rel (0) target = $region33
  $region32: #{transformer_encoder_forward.8} parent=0 // pred_region
    _
  $region33: #{transformer_encoder_forward.8} parent=0 // pred_fallthru
    _
  // Predicated region
  $region34: #{transformer_encoder_forward.8} parent=0 // pred_check
    _
  $region35: #{transformer_encoder_forward.8} parent=0 // pred_check_branch
    %534 = sbr.rel (0) target = $region37
  $region36: #{transformer_encoder_forward.8} parent=0 // pred_region
    _
  $region37: #{transformer_encoder_forward.8} parent=0 // pred_fallthru
    _

// kernel: transformer_encoder_forward.5
$region0: #{transformer_encoder_forward.5}
  #allocation0 [shape = 'u32[]', space=smem, size = 0x4, offset = 0x4, fixed_abs, tag = 'smem constant byte address 0x4 - core index']
  #allocation1 [shape = 'u32[72,128]{1,0:T(1,128)}', space=vmem, size = 0x9000, scoped, tag = 'internal scratch']
  %s0 = inlined_call_operand.hbm [shape: f32[2,16,128], index: 0, kind: input, shape index: {}]
  %s1 = inlined_call_operand.hbm [shape: f32[1,16,128], index: 1, kind: input, shape index: {}]
  %s2 = inlined_call_operand.hbm [shape: f32[128,384], index: 2, kind: input, shape index: {}]
  %s3 = inlined_call_operand.vmem [shape: f32[1,384], index: 3, kind: input, shape index: {}]
  %s4 = inlined_call_operand.hbm [shape: f32[128,128], index: 4, kind: input, shape index: {}]
  %s5 = inlined_call_operand.hbm [shape: f32[1,128], index: 5, kind: input, shape index: {}]
  %s6 = inlined_call_operand.hbm [shape: f32[1,128], index: 6, kind: input, shape index: {}]
  %s7 = inlined_call_operand.hbm [shape: f32[1,128], index: 7, kind: input, shape index: {}]
  %s8 = inlined_call_operand.vmem [shape: f32[2,16,128], index: 8, kind: output, shape index: {}]
  %s9 = sld [smem:[#allocation0]]
  $region70: #{transformer_encoder_forward.5} parent=0
    _
  %s11 = ssub.s32 1, %s9
  %s12 = scalar_select 0, %s11, %s9
  $region1: #{transformer_encoder_forward.5} parent=0
    #allocation2 [shape = 'u8[16384]{0}', space=vmem, size = 0x4000, scoped, tag = 'input window, operand 0, single buffered']
    #allocation3 [shape = 's32[1]{0}', space=sflag, size = 0x4, scoped, tag = 'scoped memory for transformer_encoder_forward.5']
    #allocation4 [shape = 'u8[8192]{0}', space=vmem, size = 0x2000, scoped, tag = 'input window, operand 1, single buffered']
    #allocation5 [shape = 's32[1]{0}', space=sflag, size = 0x4, scoped, tag = 'scoped memory for transformer_encoder_forward.5']
    #allocation6 [shape = 'u8[196608]{0}', space=vmem, size = 0x30000, scoped, tag = 'input window, operand 2, single buffered']
    #allocation7 [shape = 'u8[65536]{0}', space=vmem, size = 0x10000, scoped, tag = 'input window, operand 4, single buffered']
    #allocation8 [shape = 's32[1]{0}', space=sflag, size = 0x4, scoped, tag = 'scoped memory for transformer_encoder_forward.5']
    #allocation9 [shape = 'u8[512]{0}', space=vmem, size = 0x400, scoped, tag = 'input window, operand 5, single buffered']
    #allocation10 [shape = 'u8[512]{0}', space=vmem, size = 0x400, scoped, tag = 'input window, operand 6, single buffered']
    #allocation11 [shape = 's32[1]{0}', space=sflag, size = 0x4, scoped, tag = 'scoped memory for transformer_encoder_forward.5']
    #allocation12 [shape = 'u8[512]{0}', space=vmem, size = 0x400, scoped, tag = 'input window, operand 7, single buffered']
    %13 = vsyncpa [#allocation3], 0
    %14 = vsyncpa [#allocation5], 0
    %15 = vsyncpa [#allocation8], 0
    %16 = vsyncpa [#allocation11], 0
    // Predicated region
    $region2: #{transformer_encoder_forward.5} parent=1 // pred_check
      _
    $region3: #{transformer_encoder_forward.5} parent=1 // pred_check_branch
      %18 = sbr.rel (0) target = $region5
    $region4: #{transformer_encoder_forward.5} parent=1 // pred_region
      %20 = vsyncadd [#allocation3], 0
      %s21 = sshll.u32 %s0, 4
      %s22 = int_to_ptr.hbm [resolvable:$true] %s21
      %s23 = sshll.u32 [#allocation2], 4
      %s24 = int_to_ptr.vmem [resolvable:$true] %s23
      %29 = dma.hbm_to_vmem [thread:$0]  %s22, 512, %s24, [#allocation3], 128, 128, 8
    $region5: #{transformer_encoder_forward.5} parent=1 // pred_fallthru
      _
    // Predicated region
    $region6: #{transformer_encoder_forward.5} parent=1 // pred_check
      _
    $region7: #{transformer_encoder_forward.5} parent=1 // pred_check_branch
      %31 = sbr.rel (0) target = $region9
    $region8: #{transformer_encoder_forward.5} parent=1 // pred_region
      %33 = vsyncadd [#allocation5], 0
      %s34 = sshll.u32 %s1, 4
      %s35 = int_to_ptr.hbm [resolvable:$true] %s34
      %s36 = sshll.u32 [#allocation4], 4
      %s37 = int_to_ptr.vmem [resolvable:$true] %s36
      %42 = dma.hbm_to_vmem [thread:$0]  %s35, 256, %s37, [#allocation5], 128, 128, 8
    $region9: #{transformer_encoder_forward.5} parent=1 // pred_fallthru
      _
    // Predicated region
    $region10: #{transformer_encoder_forward.5} parent=1 // pred_check
      _
    $region11: #{transformer_encoder_forward.5} parent=1 // pred_check_branch
      %44 = sbr.rel (0) target = $region13
    $region12: #{transformer_encoder_forward.5} parent=1 // pred_region
      %46 = vsyncadd [#allocation5], 0
      %s47 = sshll.u32 %s2, 4
      %s48 = int_to_ptr.hbm [resolvable:$true] %s47
      %s49 = sshll.u32 [#allocation6], 4
      %s50 = int_to_ptr.vmem [resolvable:$true] %s49
      %55 = dma.hbm_to_vmem [thread:$0]  %s48, 6144, %s50, [#allocation5], 384, 384, 24
    $region13: #{transformer_encoder_forward.5} parent=1 // pred_fallthru
      _
    // Predicated region
    $region14: #{transformer_encoder_forward.5} parent=1 // pred_check
      _
    $region15: #{transformer_encoder_forward.5} parent=1 // pred_check_branch
      %57 = sbr.rel (0) target = $region17
    $region16: #{transformer_encoder_forward.5} parent=1 // pred_region
      _
    $region17: #{transformer_encoder_forward.5} parent=1 // pred_fallthru
      _
    // Predicated region
    $region18: #{transformer_encoder_forward.5} parent=1 // pred_check
      _
    $region19: #{transformer_encoder_forward.5} parent=1 // pred_check_branch
      %59 = sbr.rel (0) target = $region21
    $region20: #{transformer_encoder_forward.5} parent=1 // pred_region
      %61 = vsyncadd [#allocation8], 0
      %s62 = sshll.u32 %s4, 4
      %s63 = int_to_ptr.hbm [resolvable:$true] %s62
      %s64 = sshll.u32 [#allocation7], 4
      %s65 = int_to_ptr.vmem [resolvable:$true] %s64
      %70 = dma.hbm_to_vmem [thread:$0]  %s63, 2048, %s65, [#allocation8], 128, 128, 8
    $region21: #{transformer_encoder_forward.5} parent=1 // pred_fallthru
      _
    // Predicated region
    $region22: #{transformer_encoder_forward.5} parent=1 // pred_check
      _
    $region23: #{transformer_encoder_forward.5} parent=1 // pred_check_branch
      %72 = sbr.rel (0) target = $region25
    $region24: #{transformer_encoder_forward.5} parent=1 // pred_region
      %74 = vsyncadd [#allocation8], 0
      %s76 = sshll.u32 %s5, 4
      %s77 = int_to_ptr.hbm [resolvable:$true] %s76
      %s78 = sshll.u32 [#allocation9], 4
      %s79 = int_to_ptr.vmem [resolvable:$true] %s78
      %81 = dma.hbm_to_vmem [thread:$0]  %s77, 16, %s79, [#allocation8]
    $region25: #{transformer_encoder_forward.5} parent=1 // pred_fallthru
      _
    // Predicated region
    $region26: #{transformer_encoder_forward.5} parent=1 // pred_check
      _
    $region27: #{transformer_encoder_forward.5} parent=1 // pred_check_branch
      %83 = sbr.rel (0) target = $region29
    $region28: #{transformer_encoder_forward.5} parent=1 // pred_region
      %85 = vsyncadd [#allocation11], 0
      %s87 = sshll.u32 %s6, 4
      %s88 = int_to_ptr.hbm [resolvable:$true] %s87
      %s89 = sshll.u32 [#allocation10], 4
      %s90 = int_to_ptr.vmem [resolvable:$true] %s89
      %92 = dma.hbm_to_vmem [thread:$0]  %s88, 16, %s90, [#allocation11]
    $region29: #{transformer_encoder_forward.5} parent=1 // pred_fallthru
      _
    // Predicated region
    $region30: #{transformer_encoder_forward.5} parent=1 // pred_check
      _
    $region31: #{transformer_encoder_forward.5} parent=1 // pred_check_branch
      %94 = sbr.rel (0) target = $region33
    $region32: #{transformer_encoder_forward.5} parent=1 // pred_region
      %96 = vsyncadd [#allocation11], 0
      %s98 = sshll.u32 %s7, 4
      %s99 = int_to_ptr.hbm [resolvable:$true] %s98
      %s100 = sshll.u32 [#allocation12], 4
      %s101 = int_to_ptr.vmem [resolvable:$true] %s100
      %103 = dma.hbm_to_vmem [thread:$0]  %s99, 16, %s101, [#allocation11]
    $region33: #{transformer_encoder_forward.5} parent=1 // pred_fallthru
      _
    // Predicated region
    $region34: #{transformer_encoder_forward.5} parent=1 // pred_check
      _
    $region35: #{transformer_encoder_forward.5} parent=1 // pred_check_branch
      %105 = sbr.rel (0) target = $region37
    $region36: #{transformer_encoder_forward.5} parent=1 // pred_region
      %107 = dma.done [#allocation3], 512
    $region37: #{transformer_encoder_forward.5} parent=1 // pred_fallthru
      _
    // Predicated region
    $region38: #{transformer_encoder_forward.5} parent=1 // pred_check
      _
    $region39: #{transformer_encoder_forward.5} parent=1 // pred_check_branch
      %109 = sbr.rel (0) target = $region41
    $region40: #{transformer_encoder_forward.5} parent=1 // pred_region
      %111 = dma.done [#allocation5], 256
    $region41: #{transformer_encoder_forward.5} parent=1 // pred_fallthru
      _
    // Predicated region
    $region42: #{transformer_encoder_forward.5} parent=1 // pred_check
      _
    $region43: #{transformer_encoder_forward.5} parent=1 // pred_check_branch
      %113 = sbr.rel (0) target = $region45
    $region44: #{transformer_encoder_forward.5} parent=1 // pred_region
      %115 = dma.done [#allocation5], 6144
    $region45: #{transformer_encoder_forward.5} parent=1 // pred_fallthru
      _
    // Predicated region
    $region46: #{transformer_encoder_forward.5} parent=1 // pred_check
      _
    $region47: #{transformer_encoder_forward.5} parent=1 // pred_check_branch
      %117 = sbr.rel (0) target = $region49
    $region48: #{transformer_encoder_forward.5} parent=1 // pred_region
      %119 = dma.done [#allocation8], 2048
    $region49: #{transformer_encoder_forward.5} parent=1 // pred_fallthru
      _
    // Predicated region
    $region50: #{transformer_encoder_forward.5} parent=1 // pred_check
      _
    $region51: #{transformer_encoder_forward.5} parent=1 // pred_check_branch
      %121 = sbr.rel (0) target = $region53
    $region52: #{transformer_encoder_forward.5} parent=1 // pred_region
      %123 = dma.done [#allocation8], 16
    $region53: #{transformer_encoder_forward.5} parent=1 // pred_fallthru
      _
    // Predicated region
    $region54: #{transformer_encoder_forward.5} parent=1 // pred_check
      _
    $region55: #{transformer_encoder_forward.5} parent=1 // pred_check_branch
      %125 = sbr.rel (0) target = $region57
    $region56: #{transformer_encoder_forward.5} parent=1 // pred_region
      %127 = dma.done [#allocation11], 16
    $region57: #{transformer_encoder_forward.5} parent=1 // pred_fallthru
      _
    // Predicated region
    $region58: #{transformer_encoder_forward.5} parent=1 // pred_check
      _
    $region59: #{transformer_encoder_forward.5} parent=1 // pred_check_branch
      %129 = sbr.rel (0) target = $region61
    $region60: #{transformer_encoder_forward.5} parent=1 // pred_region
      %131 = dma.done [#allocation11], 16
    $region61: #{transformer_encoder_forward.5} parent=1 // pred_fallthru
      _
    %v132 = vld [vmem:[#allocation2] sm:$0xff]
    %v133 = vld [vmem:[#allocation2 + $0x8] sm:$0xff]
    %v134 = vld [vmem:[#allocation2 + $0x10] sm:$0xff]
    %v135 = vld [vmem:[#allocation2 + $0x18] sm:$0xff]
    %v136 = vld [vmem:[#allocation4] sm:$0xff]
    %v137 = vld [vmem:[#allocation4 + $0x8] sm:$0xff]
    %v138 = vadd.f32 %v132, %v136
    %v139 = vadd.f32 %v133, %v137
    %v140 = vadd.f32 %v134, %v136
    %v141 = vadd.f32 %v135, %v137
    %v142 = vld [vmem:[#allocation6] sm:$0xff]
    %v143 = vld [vmem:[#allocation6 + $0x8] sm:$0xff]
    %v144 = vld [vmem:[#allocation6 + $0x10] sm:$0xff]
    %v145 = vld [vmem:[#allocation6 + $0x18] sm:$0xff]
    %v146 = vld [vmem:[#allocation6 + $0x20] sm:$0xff]
    %v147 = vld [vmem:[#allocation6 + $0x28] sm:$0xff]
    %v148 = vld [vmem:[#allocation6 + $0x30] sm:$0xff]
    %v149 = vld [vmem:[#allocation6 + $0x38] sm:$0xff]
    %v150 = vld [vmem:[#allocation6 + $0x40] sm:$0xff]
    %v151 = vld [vmem:[#allocation6 + $0x48] sm:$0xff]
    %v152 = vld [vmem:[#allocation6 + $0x50] sm:$0xff]
    %v153 = vld [vmem:[#allocation6 + $0x58] sm:$0xff]
    %v154 = vld [vmem:[#allocation6 + $0x60] sm:$0xff]
    %v155 = vld [vmem:[#allocation6 + $0x68] sm:$0xff]
    %v156 = vld [vmem:[#allocation6 + $0x70] sm:$0xff]
    %v157 = vld [vmem:[#allocation6 + $0x78] sm:$0xff]
    %v158 = vld [vmem:[#allocation6 + $0x80] sm:$0xff]
    %v159 = vld [vmem:[#allocation6 + $0x88] sm:$0xff]
    %v160 = vld [vmem:[#allocation6 + $0x90] sm:$0xff]
    %v161 = vld [vmem:[#allocation6 + $0x98] sm:$0xff]
    %v162 = vld [vmem:[#allocation6 + $0xa0] sm:$0xff]
    %v163 = vld [vmem:[#allocation6 + $0xa8] sm:$0xff]
    %v164 = vld [vmem:[#allocation6 + $0xb0] sm:$0xff]
    %v165 = vld [vmem:[#allocation6 + $0xb8] sm:$0xff]
    %v166 = vld [vmem:[#allocation6 + $0xc0] sm:$0xff]
    %v167 = vld [vmem:[#allocation6 + $0xc8] sm:$0xff]
    %v168 = vld [vmem:[#allocation6 + $0xd0] sm:$0xff]
    %v169 = vld [vmem:[#allocation6 + $0xd8] sm:$0xff]
    %v170 = vld [vmem:[#allocation6 + $0xe0] sm:$0xff]
    %v171 = vld [vmem:[#allocation6 + $0xe8] sm:$0xff]
    %v172 = vld [vmem:[#allocation6 + $0xf0] sm:$0xff]
    %v173 = vld [vmem:[#allocation6 + $0xf8] sm:$0xff]
    %v174 = vld [vmem:[#allocation6 + $0x100] sm:$0xff]
    %v175 = vld [vmem:[#allocation6 + $0x108] sm:$0xff]
    %v176 = vld [vmem:[#allocation6 + $0x110] sm:$0xff]
    %v177 = vld [vmem:[#allocation6 + $0x118] sm:$0xff]
    %v178 = vld [vmem:[#allocation6 + $0x120] sm:$0xff]
    %v179 = vld [vmem:[#allocation6 + $0x128] sm:$0xff]
    %v180 = vld [vmem:[#allocation6 + $0x130] sm:$0xff]
    %v181 = vld [vmem:[#allocation6 + $0x138] sm:$0xff]
    %v182 = vld [vmem:[#allocation6 + $0x140] sm:$0xff]
    %v183 = vld [vmem:[#allocation6 + $0x148] sm:$0xff]
    %v184 = vld [vmem:[#allocation6 + $0x150] sm:$0xff]
    %v185 = vld [vmem:[#allocation6 + $0x158] sm:$0xff]
    %v186 = vld [vmem:[#allocation6 + $0x160] sm:$0xff]
    %v187 = vld [vmem:[#allocation6 + $0x168] sm:$0xff]
    %v188 = vld [vmem:[#allocation6 + $0x170] sm:$0xff]
    %v189 = vld [vmem:[#allocation6 + $0x178] sm:$0xff]
    %v190 = vld [vmem:[%s3] sm:$0x7]
    %v192 = vperm.slane %v190, 0
    %v193 = vperm.slane %v190, 1
    %v194 = vperm.slane %v190, 2
    %198 = vmatpush.msra.mxu0 %v187
    %199 = vmatpush.msra.mxu0 %v184
    %200 = vmatpush.msra.mxu0 %v181
    %201 = vmatpush.msra.mxu0 %v178
    %202 = vmatpush.msra.mxu0 %v175
    %203 = vmatpush.msra.mxu0 %v172
    %204 = vmatpush.msra.mxu0 %v169
    %205 = vmatpush.msra.mxu0 %v166
    %206 = vmatpush.msra.mxu0 %v163
    %207 = vmatpush.msra.mxu0 %v160
    %208 = vmatpush.msra.mxu0 %v157
    %209 = vmatpush.msra.mxu0 %v154
    %210 = vmatpush.msra.mxu0 %v151
    %211 = vmatpush.msra.mxu0 %v148
    %212 = vmatpush.msra.mxu0 %v145
    %213 = vmatpush.msra.mxu0 %v142
    %214 = vmatmul.f32.gmra.mxu0 %v138
    %v215 = vpop.f32.mrf.mxu0
    %v216 = vadd.f32 %v192, %v215
    %217 = vmatmul.f32.gmra.mxu0 %v139
    %v218 = vpop.f32.mrf.mxu0
    %v219 = vadd.f32 %v192, %v218
    %220 = vmatmul.f32.gmra.mxu0 %v140
    %v221 = vpop.f32.mrf.mxu0
    %v222 = vadd.f32 %v192, %v221
    %223 = vmatmul.f32.gmra.mxu0 %v141
    %v224 = vpop.f32.mrf.mxu0
    %v225 = vadd.f32 %v192, %v224
    %226 = vdwg.mxu0
    %227 = vmatpush.msra.mxu0 %v188
    %228 = vmatpush.msra.mxu0 %v185
    %229 = vmatpush.msra.mxu0 %v182
    %230 = vmatpush.msra.mxu0 %v179
    %231 = vmatpush.msra.mxu0 %v176
    %232 = vmatpush.msra.mxu0 %v173
    %233 = vmatpush.msra.mxu0 %v170
    %234 = vmatpush.msra.mxu0 %v167
    %235 = vmatpush.msra.mxu0 %v164
    %236 = vmatpush.msra.mxu0 %v161
    %237 = vmatpush.msra.mxu0 %v158
    %238 = vmatpush.msra.mxu0 %v155
    %239 = vmatpush.msra.mxu0 %v152
    %240 = vmatpush.msra.mxu0 %v149
    %241 = vmatpush.msra.mxu0 %v146
    %242 = vmatpush.msra.mxu0 %v143
    %243 = vmatmul.f32.gmra.mxu0 %v138
    %v244 = vpop.f32.mrf.mxu0
    %v245 = vadd.f32 %v193, %v244
    %246 = vmatmul.f32.gmra.mxu0 %v139
    %v247 = vpop.f32.mrf.mxu0
    %v248 = vadd.f32 %v193, %v247
    %249 = vmatmul.f32.gmra.mxu0 %v140
    %v250 = vpop.f32.mrf.mxu0
    %v251 = vadd.f32 %v193, %v250
    %252 = vmatmul.f32.gmra.mxu0 %v141
    %v253 = vpop.f32.mrf.mxu0
    %v254 = vadd.f32 %v193, %v253
    %255 = vdwg.mxu0
    %256 = vmatpush.msra.mxu0 %v189
    %257 = vmatpush.msra.mxu0 %v186
    %258 = vmatpush.msra.mxu0 %v183
    %259 = vmatpush.msra.mxu0 %v180
    %260 = vmatpush.msra.mxu0 %v177
    %261 = vmatpush.msra.mxu0 %v174
    %262 = vmatpush.msra.mxu0 %v171
    %263 = vmatpush.msra.mxu0 %v168
    %264 = vmatpush.msra.mxu0 %v165
    %265 = vmatpush.msra.mxu0 %v162
    %266 = vmatpush.msra.mxu0 %v159
    %267 = vmatpush.msra.mxu0 %v156
    %268 = vmatpush.msra.mxu0 %v153
    %269 = vmatpush.msra.mxu0 %v150
    %270 = vmatpush.msra.mxu0 %v147
    %271 = vmatpush.msra.mxu0 %v144
    %272 = vmatmul.f32.gmra.mxu0 %v138
    %v273 = vpop.f32.mrf.mxu0
    %v274 = vadd.f32 %v194, %v273
    %275 = vmatmul.f32.gmra.mxu0 %v139
    %v276 = vpop.f32.mrf.mxu0
    %v277 = vadd.f32 %v194, %v276
    %278 = vmatmul.f32.gmra.mxu0 %v140
    %v279 = vpop.f32.mrf.mxu0
    %v280 = vadd.f32 %v194, %v279
    %281 = vmatmul.f32.gmra.mxu0 %v141
    %v282 = vpop.f32.mrf.mxu0
    %v283 = vadd.f32 %v194, %v282
    %284 = vdwg.mxu0
    %285 = vmatpush.xpose.msra.mxu0 0.0
    %286 = vmatpush.xpose.msra.mxu0 0.0
    %287 = vmatpush.xpose.msra.mxu0 0.0
    %288 = vmatpush.xpose.msra.mxu0 0.0
    %289 = vmatpush.xpose.msra.mxu0 0.0
    %290 = vmatpush.xpose.msra.mxu0 0.0
    %291 = vmatpush.xpose.msra.mxu0 0.0
    %292 = vmatpush.xpose.msra.mxu0 0.0
    %293 = vmatpush.xpose.msra.mxu0 0.0
    %294 = vmatpush.xpose.msra.mxu0 0.0
    %295 = vmatpush.xpose.msra.mxu0 0.0
    %296 = vmatpush.xpose.msra.mxu0 0.0
    %297 = vmatpush.xpose.msra.mxu0 0.0
    %298 = vmatpush.xpose.msra.mxu0 0.0
    %299 = vmatpush.xpose.msra.mxu0 %v248
    %300 = vmatpush.xpose.msra.mxu0 %v245
    %301 = vmatmul.f32.gmra.mxu0 %v216
    %v302 = vpop.f32.mrf.mxu0
    %v303 = vadd.f32 0.0, %v302
    %304 = vmatmul.f32.gmra.mxu0 %v219
    %v305 = vpop.f32.mrf.mxu0
    %v306 = vadd.f32 0.0, %v305
    %307 = vdwg.mxu0
    %308 = vmatpush.xpose.msra.mxu0 0.0
    %309 = vmatpush.xpose.msra.mxu0 0.0
    %310 = vmatpush.xpose.msra.mxu0 0.0
    %311 = vmatpush.xpose.msra.mxu0 0.0
    %312 = vmatpush.xpose.msra.mxu0 0.0
    %313 = vmatpush.xpose.msra.mxu0 0.0
    %314 = vmatpush.xpose.msra.mxu0 0.0
    %315 = vmatpush.xpose.msra.mxu0 0.0
    %316 = vmatpush.xpose.msra.mxu0 0.0
    %317 = vmatpush.xpose.msra.mxu0 0.0
    %318 = vmatpush.xpose.msra.mxu0 0.0
    %319 = vmatpush.xpose.msra.mxu0 0.0
    %320 = vmatpush.xpose.msra.mxu0 0.0
    %321 = vmatpush.xpose.msra.mxu0 0.0
    %322 = vmatpush.xpose.msra.mxu0 %v254
    %323 = vmatpush.xpose.msra.mxu0 %v251
    %324 = vmatmul.f32.gmra.mxu0 %v222
    %v325 = vpop.f32.mrf.mxu0
    %v326 = vadd.f32 0.0, %v325
    %327 = vmatmul.f32.gmra.mxu0 %v225
    %v328 = vpop.f32.mrf.mxu0
    %v329 = vadd.f32 0.0, %v328
    %330 = vdwg.mxu0
    %v331 = vmul.f32 %v303, 0.088388346
    %v332 = vmul.f32 %v306, 0.088388346
    %v333 = vmul.f32 %v326, 0.088388346
    %v334 = vmul.f32 %v329, 0.088388346
    %vm335 = vcmask 130048
    %v336 = vsel %vm335, %v331, -inf
    %337 = vmax.xlane.f32.xlu0 %v336
    %v338 = vpop.xlane.xlu0 %337
    %v339 = vsel %vm335, %v332, -inf
    %340 = vmax.xlane.f32.xlu0 %v339
    %v341 = vpop.xlane.xlu0 %340
    %v342 = vsel %vm335, %v333, -inf
    %343 = vmax.xlane.f32.xlu0 %v342
    %v344 = vpop.xlane.xlu0 %343
    %v345 = vsel %vm335, %v334, -inf
    %346 = vmax.xlane.f32.xlu0 %v345
    %v347 = vpop.xlane.xlu0 %346
    %v348 = vsub.f32 %v331, %v338
    %v349 = vsub.f32 %v332, %v341
    %v350 = vsub.f32 %v333, %v344
    %v351 = vsub.f32 %v334, %v347
    %v352 = vmul.f32 %v348, 1.442695
    %v353 = vpow.pop %v352
    %v354 = vmul.f32 %v349, 1.442695
    %v355 = vpow.pop %v354
    %v356 = vmul.f32 %v350, 1.442695
    %v357 = vpow.pop %v356
    %v358 = vmul.f32 %v351, 1.442695
    %v359 = vpow.pop %v358
    %v360 = vsel %vm335, %v353, 0.0
    %361 = vadd.xlane.f32.xlu0 %v360
    %v362 = vpop.xlane.xlu0 %361
    %v363 = vsel %vm335, %v355, 0.0
    %364 = vadd.xlane.f32.xlu0 %v363
    %v365 = vpop.xlane.xlu0 %364
    %v366 = vsel %vm335, %v357, 0.0
    %367 = vadd.xlane.f32.xlu0 %v366
    %v368 = vpop.xlane.xlu0 %367
    %v369 = vsel %vm335, %v359, 0.0
    %370 = vadd.xlane.f32.xlu0 %v369
    %v371 = vpop.xlane.xlu0 %370
    %v372 = vrcp.pop %v362
    %v373 = vrcp.pop %v365
    %v374 = vrcp.pop %v368
    %v375 = vrcp.pop %v371
    %v376 = vmul.f32 %v353, %v372
    %v377 = vmul.f32 %v355, %v373
    %v378 = vmul.f32 %v357, %v374
    %v379 = vmul.f32 %v359, %v375
    %v381 = vsel %vm335, %v376, 0
    %v384 = vsel %vm335, %v377, 0
    %386 = vmatpush.msra.mxu0 0.0
    %387 = vmatpush.msra.mxu0 0.0
    %388 = vmatpush.msra.mxu0 0.0
    %389 = vmatpush.msra.mxu0 0.0
    %390 = vmatpush.msra.mxu0 0.0
    %391 = vmatpush.msra.mxu0 0.0
    %392 = vmatpush.msra.mxu0 0.0
    %393 = vmatpush.msra.mxu0 0.0
    %394 = vmatpush.msra.mxu0 0.0
    %395 = vmatpush.msra.mxu0 0.0
    %396 = vmatpush.msra.mxu0 0.0
    %397 = vmatpush.msra.mxu0 0.0
    %398 = vmatpush.msra.mxu0 0.0
    %399 = vmatpush.msra.mxu0 0.0
    %400 = vmatpush.msra.mxu0 %v277
    %401 = vmatpush.msra.mxu0 %v274
    %402 = vmatmul.f32.gmra.mxu0 %v381
    %v403 = vpop.f32.mrf.mxu0
    %v404 = vadd.f32 0.0, %v403
    %405 = vmatmul.f32.gmra.mxu0 %v384
    %v406 = vpop.f32.mrf.mxu0
    %v407 = vadd.f32 0.0, %v406
    %408 = vdwg.mxu0
    %v410 = vsel %vm335, %v378, 0
    %v413 = vsel %vm335, %v379, 0
    %415 = vmatpush.msra.mxu0 0.0
    %416 = vmatpush.msra.mxu0 0.0
    %417 = vmatpush.msra.mxu0 0.0
    %418 = vmatpush.msra.mxu0 0.0
    %419 = vmatpush.msra.mxu0 0.0
    %420 = vmatpush.msra.mxu0 0.0
    %421 = vmatpush.msra.mxu0 0.0
    %422 = vmatpush.msra.mxu0 0.0
    %423 = vmatpush.msra.mxu0 0.0
    %424 = vmatpush.msra.mxu0 0.0
    %425 = vmatpush.msra.mxu0 0.0
    %426 = vmatpush.msra.mxu0 0.0
    %427 = vmatpush.msra.mxu0 0.0
    %428 = vmatpush.msra.mxu0 0.0
    %429 = vmatpush.msra.mxu0 %v283
    %430 = vmatpush.msra.mxu0 %v280
    %431 = vmatmul.f32.gmra.mxu0 %v410
    %v432 = vpop.f32.mrf.mxu0
    %v433 = vadd.f32 0.0, %v432
    %434 = vmatmul.f32.gmra.mxu0 %v413
    %v435 = vpop.f32.mrf.mxu0
    %v436 = vadd.f32 0.0, %v435
    %437 = vdwg.mxu0
    %v438 = vld [vmem:[#allocation7] sm:$0xff]
    %v439 = vld [vmem:[#allocation7 + $0x8] sm:$0xff]
    %v440 = vld [vmem:[#allocation7 + $0x10] sm:$0xff]
    %v441 = vld [vmem:[#allocation7 + $0x18] sm:$0xff]
    %v442 = vld [vmem:[#allocation7 + $0x20] sm:$0xff]
    %v443 = vld [vmem:[#allocation7 + $0x28] sm:$0xff]
    %v444 = vld [vmem:[#allocation7 + $0x30] sm:$0xff]
    %v445 = vld [vmem:[#allocation7 + $0x38] sm:$0xff]
    %v446 = vld [vmem:[#allocation7 + $0x40] sm:$0xff]
    %v447 = vld [vmem:[#allocation7 + $0x48] sm:$0xff]
    %v448 = vld [vmem:[#allocation7 + $0x50] sm:$0xff]
    %v449 = vld [vmem:[#allocation7 + $0x58] sm:$0xff]
    %v450 = vld [vmem:[#allocation7 + $0x60] sm:$0xff]
    %v451 = vld [vmem:[#allocation7 + $0x68] sm:$0xff]
    %v452 = vld [vmem:[#allocation7 + $0x70] sm:$0xff]
    %v453 = vld [vmem:[#allocation7 + $0x78] sm:$0xff]
    %v454 = vld [vmem:[#allocation9] sm:$0x1]
    %v456 = vperm.slane %v454, 0
    %458 = vmatpush.msra.mxu0 %v453
    %459 = vmatpush.msra.mxu0 %v452
    %460 = vmatpush.msra.mxu0 %v451
    %461 = vmatpush.msra.mxu0 %v450
    %462 = vmatpush.msra.mxu0 %v449
    %463 = vmatpush.msra.mxu0 %v448
    %464 = vmatpush.msra.mxu0 %v447
    %465 = vmatpush.msra.mxu0 %v446
    %466 = vmatpush.msra.mxu0 %v445
    %467 = vmatpush.msra.mxu0 %v444
    %468 = vmatpush.msra.mxu0 %v443
    %469 = vmatpush.msra.mxu0 %v442
    %470 = vmatpush.msra.mxu0 %v441
    %471 = vmatpush.msra.mxu0 %v440
    %472 = vmatpush.msra.mxu0 %v439
    %473 = vmatpush.msra.mxu0 %v438
    %474 = vmatmul.f32.gmra.mxu0 %v404
    %v475 = vpop.f32.mrf.mxu0
    %v476 = vadd.f32 %v456, %v475
    %477 = vmatmul.f32.gmra.mxu0 %v407
    %v478 = vpop.f32.mrf.mxu0
    %v479 = vadd.f32 %v456, %v478
    %480 = vmatmul.f32.gmra.mxu0 %v433
    %v481 = vpop.f32.mrf.mxu0
    %v482 = vadd.f32 %v456, %v481
    %483 = vmatmul.f32.gmra.mxu0 %v436
    %v484 = vpop.f32.mrf.mxu0
    %v485 = vadd.f32 %v456, %v484
    %486 = vdwg.mxu0
    %v487 = vadd.f32 %v138, %v476
    %v488 = vadd.f32 %v139, %v479
    %v489 = vadd.f32 %v140, %v482
    %v490 = vadd.f32 %v141, %v485
    %v491 = vld [vmem:[#allocation10] sm:$0x1]
    %v492 = vld [vmem:[#allocation12] sm:$0x1]
    %493 = vadd.xlane.f32.xlu0 %v487
    %v494 = vpop.xlane.xlu0 %493
    %495 = vadd.xlane.f32.xlu0 %v488
    %v496 = vpop.xlane.xlu0 %495
    %497 = vadd.xlane.f32.xlu0 %v489
    %v498 = vpop.xlane.xlu0 %497
    %499 = vadd.xlane.f32.xlu0 %v490
    %v500 = vpop.xlane.xlu0 %499
    %v501 = vrcp.pop 128.0
    %v502 = vmul.f32 128.0, %v501
    %v503 = vsub.f32 1.0, %v502
    %v504 = vmul.f32 %v501, %v503
    %v505 = vadd.f32 %v501, %v504
    %vm506 = vweird.f32 %v501
    %v507 = vsel %vm506, %v501, %v505
    %v508 = vmul.f32 %v494, %v507
    %v509 = vmul.f32 %v496, %v507
    %v510 = vmul.f32 %v498, %v507
    %v511 = vmul.f32 %v500, %v507
    %v512 = vsub.f32 %v487, %v508
    %v513 = vsub.f32 %v488, %v509
    %v514 = vsub.f32 %v489, %v510
    %v515 = vsub.f32 %v490, %v511
    %v516 = vmul.f32 %v512, %v512
    %v517 = vmul.f32 %v513, %v513
    %v518 = vmul.f32 %v514, %v514
    %v519 = vmul.f32 %v515, %v515
    %520 = vadd.xlane.f32.xlu0 %v516
    %v521 = vpop.xlane.xlu0 %520
    %522 = vadd.xlane.f32.xlu0 %v517
    %v523 = vpop.xlane.xlu0 %522
    %524 = vadd.xlane.f32.xlu0 %v518
    %v525 = vpop.xlane.xlu0 %524
    %526 = vadd.xlane.f32.xlu0 %v519
    %v527 = vpop.xlane.xlu0 %526
    %v528 = vmul.f32 %v521, %v507
    %v529 = vmul.f32 %v523, %v507
    %v530 = vmul.f32 %v525, %v507
    %v531 = vmul.f32 %v527, %v507
    %v532 = vadd.f32 %v528, 1e-05
    %v533 = vadd.f32 %v529, 1e-05
    %v534 = vadd.f32 %v530, 1e-05
    %v535 = vadd.f32 %v531, 1e-05
    %v536 = vrsqrt.pop %v532
    %v537 = vmul.f32 %v536, %v532
    %v538 = vmul.f32 %v537, %v536
    %v539 = vmul.f32 0.5, %v538
    %v540 = vsub.f32 1.5, %v539
    %v541 = vmul.f32 %v536, %v540
    %vm542 = vweird.f32 %v532
    %vm543 = vweird.f32 %v536
    %vm544 = vmor %vm542, %vm543
    %v545 = vsel %vm544, %v536, %v541
    %v546 = vrsqrt.pop %v533
    %v547 = vmul.f32 %v546, %v533
    %v548 = vmul.f32 %v547, %v546
    %v549 = vmul.f32 0.5, %v548
    %v550 = vsub.f32 1.5, %v549
    %v551 = vmul.f32 %v546, %v550
    %vm552 = vweird.f32 %v533
    %vm553 = vweird.f32 %v546
    %vm554 = vmor %vm552, %vm553
    %v555 = vsel %vm554, %v546, %v551
    %v556 = vrsqrt.pop %v534
    %v557 = vmul.f32 %v556, %v534
    %v558 = vmul.f32 %v557, %v556
    %v559 = vmul.f32 0.5, %v558
    %v560 = vsub.f32 1.5, %v559
    %v561 = vmul.f32 %v556, %v560
    %vm562 = vweird.f32 %v534
    %vm563 = vweird.f32 %v556
    %vm564 = vmor %vm562, %vm563
    %v565 = vsel %vm564, %v556, %v561
    %v566 = vrsqrt.pop %v535
    %v567 = vmul.f32 %v566, %v535
    %v568 = vmul.f32 %v567, %v566
    %v569 = vmul.f32 0.5, %v568
    %v570 = vsub.f32 1.5, %v569
    %v571 = vmul.f32 %v566, %v570
    %vm572 = vweird.f32 %v535
    %vm573 = vweird.f32 %v566
    %vm574 = vmor %vm572, %vm573
    %v575 = vsel %vm574, %v566, %v571
    %v576 = vmul.f32 %v512, %v545
    %v577 = vmul.f32 %v513, %v555
    %v578 = vmul.f32 %v514, %v565
    %v579 = vmul.f32 %v515, %v575
    %v581 = vperm.slane %v491, 0
    %v583 = vmul.f32 %v576, %v581
    %v584 = vmul.f32 %v577, %v581
    %v585 = vmul.f32 %v578, %v581
    %v586 = vmul.f32 %v579, %v581
    %v588 = vperm.slane %v492, 0
    %v590 = vadd.f32 %v583, %v588
    %v591 = vadd.f32 %v584, %v588
    %v592 = vadd.f32 %v585, %v588
    %v593 = vadd.f32 %v586, %v588
    %594 = vst [vmem:[%s8] sm:$0xff] %v590
    %595 = vst [vmem:[%s8 + $0x8] sm:$0xff] %v591
    %596 = vst [vmem:[%s8 + $0x10] sm:$0xff] %v592
    %597 = vst [vmem:[%s8 + $0x18] sm:$0xff] %v593
    // Predicated region
    $region62: #{transformer_encoder_forward.5} parent=1 // pred_check
      _
    $region63: #{transformer_encoder_forward.5} parent=1 // pred_check_branch
      %599 = sbr.rel (0) target = $region65
    $region64: #{transformer_encoder_forward.5} parent=1 // pred_region
      _
    $region65: #{transformer_encoder_forward.5} parent=1 // pred_fallthru
      _
    // Predicated region
    $region66: #{transformer_encoder_forward.5} parent=1 // pred_check
      _
    $region67: #{transformer_encoder_forward.5} parent=1 // pred_check_branch
      %601 = sbr.rel (0) target = $region69
    $region68: #{transformer_encoder_forward.5} parent=1 // pred_region
      _
    $region69: #{transformer_encoder_forward.5} parent=1 // pred_fallthru
      _
    %602 = vsyncpa [#allocation3], 1
    %603 = vsyncpa [#allocation5], 1
    %604 = vsyncpa [#allocation8], 1
    %605 = vsyncpa [#allocation11], 1

// kernel: transformer_encoder_forward.7
$region0: #{transformer_encoder_forward.7}
  #allocation0 [shape = 'u32[]', space=smem, size = 0x4, offset = 0x4, fixed_abs, tag = 'smem constant byte address 0x4 - core index']
  #allocation1 [shape = 'u32[72,128]{1,0:T(1,128)}', space=vmem, size = 0x9000, scoped, tag = 'internal scratch']
  %s0 = inlined_call_operand.vmem [shape: f32[2,16,128], index: 0, kind: input, shape index: {}]
  %s1 = inlined_call_operand.vmem [shape: f32[128,384], index: 1, kind: input, shape index: {}]
  %s2 = inlined_call_operand.vmem [shape: f32[1,384], index: 2, kind: input, shape index: {}]
  %s3 = inlined_call_operand.vmem [shape: f32[128,128], index: 3, kind: input, shape index: {}]
  %s4 = inlined_call_operand.vmem [shape: f32[1,128], index: 4, kind: input, shape index: {}]
  %s5 = inlined_call_operand.vmem [shape: f32[1,128], index: 5, kind: input, shape index: {}]
  %s6 = inlined_call_operand.vmem [shape: f32[1,128], index: 6, kind: input, shape index: {}]
  %s7 = inlined_call_operand.vmem [shape: f32[2,16,128], index: 7, kind: output, shape index: {}]
  %s8 = sld [smem:[#allocation0]]
  $region38: #{transformer_encoder_forward.7} parent=0
    _
  %s10 = ssub.s32 1, %s8
  %s11 = scalar_select 0, %s10, %s8
  // Predicated region
  $region2: #{transformer_encoder_forward.7} parent=0 // pred_check
    _
  $region3: #{transformer_encoder_forward.7} parent=0 // pred_check_branch
    %13 = sbr.rel (0) target = $region5
  $region4: #{transformer_encoder_forward.7} parent=0 // pred_region
    _
  $region5: #{transformer_encoder_forward.7} parent=0 // pred_fallthru
    _
  // Predicated region
  $region6: #{transformer_encoder_forward.7} parent=0 // pred_check
    _
  $region7: #{transformer_encoder_forward.7} parent=0 // pred_check_branch
    %15 = sbr.rel (0) target = $region9
  $region8: #{transformer_encoder_forward.7} parent=0 // pred_region
    _
  $region9: #{transformer_encoder_forward.7} parent=0 // pred_fallthru
    _
  // Predicated region
  $region10: #{transformer_encoder_forward.7} parent=0 // pred_check
    _
  $region11: #{transformer_encoder_forward.7} parent=0 // pred_check_branch
    %17 = sbr.rel (0) target = $region13
  $region12: #{transformer_encoder_forward.7} parent=0 // pred_region
    _
  $region13: #{transformer_encoder_forward.7} parent=0 // pred_fallthru
    _
  // Predicated region
  $region14: #{transformer_encoder_forward.7} parent=0 // pred_check
    _
  $region15: #{transformer_encoder_forward.7} parent=0 // pred_check_branch
    %19 = sbr.rel (0) target = $region17
  $region16: #{transformer_encoder_forward.7} parent=0 // pred_region
    _
  $region17: #{transformer_encoder_forward.7} parent=0 // pred_fallthru
    _
  // Predicated region
  $region18: #{transformer_encoder_forward.7} parent=0 // pred_check
    _
  $region19: #{transformer_encoder_forward.7} parent=0 // pred_check_branch
    %21 = sbr.rel (0) target = $region21
  $region20: #{transformer_encoder_forward.7} parent=0 // pred_region
    _
  $region21: #{transformer_encoder_forward.7} parent=0 // pred_fallthru
    _
  // Predicated region
  $region22: #{transformer_encoder_forward.7} parent=0 // pred_check
    _
  $region23: #{transformer_encoder_forward.7} parent=0 // pred_check_branch
    %23 = sbr.rel (0) target = $region25
  $region24: #{transformer_encoder_forward.7} parent=0 // pred_region
    _
  $region25: #{transformer_encoder_forward.7} parent=0 // pred_fallthru
    _
  // Predicated region
  $region26: #{transformer_encoder_forward.7} parent=0 // pred_check
    _
  $region27: #{transformer_encoder_forward.7} parent=0 // pred_check_branch
    %25 = sbr.rel (0) target = $region29
  $region28: #{transformer_encoder_forward.7} parent=0 // pred_region
    _
  $region29: #{transformer_encoder_forward.7} parent=0 // pred_fallthru
    _
  %v26 = vld [vmem:[%s0] sm:$0xff]
  %v27 = vld [vmem:[%s0 + $0x8] sm:$0xff]
  %v28 = vld [vmem:[%s0 + $0x10] sm:$0xff]
  %v29 = vld [vmem:[%s0 + $0x18] sm:$0xff]
  %v30 = vld [vmem:[%s1] sm:$0xff]
  %v31 = vld [vmem:[%s1 + $0x8] sm:$0xff]
  %v32 = vld [vmem:[%s1 + $0x10] sm:$0xff]
  %v33 = vld [vmem:[%s1 + $0x18] sm:$0xff]
  %v34 = vld [vmem:[%s1 + $0x20] sm:$0xff]
  %v35 = vld [vmem:[%s1 + $0x28] sm:$0xff]
  %v36 = vld [vmem:[%s1 + $0x30] sm:$0xff]
  %v37 = vld [vmem:[%s1 + $0x38] sm:$0xff]
  %v38 = vld [vmem:[%s1 + $0x40] sm:$0xff]
  %v39 = vld [vmem:[%s1 + $0x48] sm:$0xff]
  %v40 = vld [vmem:[%s1 + $0x50] sm:$0xff]
  %v41 = vld [vmem:[%s1 + $0x58] sm:$0xff]
  %v42 = vld [vmem:[%s1 + $0x60] sm:$0xff]
  %v43 = vld [vmem:[%s1 + $0x68] sm:$0xff]
  %v44 = vld [vmem:[%s1 + $0x70] sm:$0xff]
  %v45 = vld [vmem:[%s1 + $0x78] sm:$0xff]
  %v46 = vld [vmem:[%s1 + $0x80] sm:$0xff]
  %v47 = vld [vmem:[%s1 + $0x88] sm:$0xff]
  %v48 = vld [vmem:[%s1 + $0x90] sm:$0xff]
  %v49 = vld [vmem:[%s1 + $0x98] sm:$0xff]
  %v50 = vld [vmem:[%s1 + $0xa0] sm:$0xff]
  %v51 = vld [vmem:[%s1 + $0xa8] sm:$0xff]
  %v52 = vld [vmem:[%s1 + $0xb0] sm:$0xff]
  %v53 = vld [vmem:[%s1 + $0xb8] sm:$0xff]
  %v54 = vld [vmem:[%s1 + $0xc0] sm:$0xff]
  %v55 = vld [vmem:[%s1 + $0xc8] sm:$0xff]
  %v56 = vld [vmem:[%s1 + $0xd0] sm:$0xff]
  %v57 = vld [vmem:[%s1 + $0xd8] sm:$0xff]
  %v58 = vld [vmem:[%s1 + $0xe0] sm:$0xff]
  %v59 = vld [vmem:[%s1 + $0xe8] sm:$0xff]
  %v60 = vld [vmem:[%s1 + $0xf0] sm:$0xff]
  %v61 = vld [vmem:[%s1 + $0xf8] sm:$0xff]
  %v62 = vld [vmem:[%s1 + $0x100] sm:$0xff]
  %v63 = vld [vmem:[%s1 + $0x108] sm:$0xff]
  %v64 = vld [vmem:[%s1 + $0x110] sm:$0xff]
  %v65 = vld [vmem:[%s1 + $0x118] sm:$0xff]
  %v66 = vld [vmem:[%s1 + $0x120] sm:$0xff]
  %v67 = vld [vmem:[%s1 + $0x128] sm:$0xff]
  %v68 = vld [vmem:[%s1 + $0x130] sm:$0xff]
  %v69 = vld [vmem:[%s1 + $0x138] sm:$0xff]
  %v70 = vld [vmem:[%s1 + $0x140] sm:$0xff]
  %v71 = vld [vmem:[%s1 + $0x148] sm:$0xff]
  %v72 = vld [vmem:[%s1 + $0x150] sm:$0xff]
  %v73 = vld [vmem:[%s1 + $0x158] sm:$0xff]
  %v74 = vld [vmem:[%s1 + $0x160] sm:$0xff]
  %v75 = vld [vmem:[%s1 + $0x168] sm:$0xff]
  %v76 = vld [vmem:[%s1 + $0x170] sm:$0xff]
  %v77 = vld [vmem:[%s1 + $0x178] sm:$0xff]
  %v78 = vld [vmem:[%s2] sm:$0x7]
  %v80 = vperm.slane %v78, 0
  %v81 = vperm.slane %v78, 1
  %v82 = vperm.slane %v78, 2
  %86 = vmatpush.msra.mxu0 %v75
  %87 = vmatpush.msra.mxu0 %v72
  %88 = vmatpush.msra.mxu0 %v69
  %89 = vmatpush.msra.mxu0 %v66
  %90 = vmatpush.msra.mxu0 %v63
  %91 = vmatpush.msra.mxu0 %v60
  %92 = vmatpush.msra.mxu0 %v57
  %93 = vmatpush.msra.mxu0 %v54
  %94 = vmatpush.msra.mxu0 %v51
  %95 = vmatpush.msra.mxu0 %v48
  %96 = vmatpush.msra.mxu0 %v45
  %97 = vmatpush.msra.mxu0 %v42
  %98 = vmatpush.msra.mxu0 %v39
  %99 = vmatpush.msra.mxu0 %v36
  %100 = vmatpush.msra.mxu0 %v33
  %101 = vmatpush.msra.mxu0 %v30
  %102 = vmatmul.f32.gmra.mxu0 %v26
  %v103 = vpop.f32.mrf.mxu0
  %v104 = vadd.f32 %v80, %v103
  %105 = vmatmul.f32.gmra.mxu0 %v27
  %v106 = vpop.f32.mrf.mxu0
  %v107 = vadd.f32 %v80, %v106
  %108 = vmatmul.f32.gmra.mxu0 %v28
  %v109 = vpop.f32.mrf.mxu0
  %v110 = vadd.f32 %v80, %v109
  %111 = vmatmul.f32.gmra.mxu0 %v29
  %v112 = vpop.f32.mrf.mxu0
  %v113 = vadd.f32 %v80, %v112
  %114 = vdwg.mxu0
  %115 = vmatpush.msra.mxu0 %v76
  %116 = vmatpush.msra.mxu0 %v73
  %117 = vmatpush.msra.mxu0 %v70
  %118 = vmatpush.msra.mxu0 %v67
  %119 = vmatpush.msra.mxu0 %v64
  %120 = vmatpush.msra.mxu0 %v61
  %121 = vmatpush.msra.mxu0 %v58
  %122 = vmatpush.msra.mxu0 %v55
  %123 = vmatpush.msra.mxu0 %v52
  %124 = vmatpush.msra.mxu0 %v49
  %125 = vmatpush.msra.mxu0 %v46
  %126 = vmatpush.msra.mxu0 %v43
  %127 = vmatpush.msra.mxu0 %v40
  %128 = vmatpush.msra.mxu0 %v37
  %129 = vmatpush.msra.mxu0 %v34
  %130 = vmatpush.msra.mxu0 %v31
  %131 = vmatmul.f32.gmra.mxu0 %v26
  %v132 = vpop.f32.mrf.mxu0
  %v133 = vadd.f32 %v81, %v132
  %134 = vmatmul.f32.gmra.mxu0 %v27
  %v135 = vpop.f32.mrf.mxu0
  %v136 = vadd.f32 %v81, %v135
  %137 = vmatmul.f32.gmra.mxu0 %v28
  %v138 = vpop.f32.mrf.mxu0
  %v139 = vadd.f32 %v81, %v138
  %140 = vmatmul.f32.gmra.mxu0 %v29
  %v141 = vpop.f32.mrf.mxu0
  %v142 = vadd.f32 %v81, %v141
  %143 = vdwg.mxu0
  %144 = vmatpush.msra.mxu0 %v77
  %145 = vmatpush.msra.mxu0 %v74
  %146 = vmatpush.msra.mxu0 %v71
  %147 = vmatpush.msra.mxu0 %v68
  %148 = vmatpush.msra.mxu0 %v65
  %149 = vmatpush.msra.mxu0 %v62
  %150 = vmatpush.msra.mxu0 %v59
  %151 = vmatpush.msra.mxu0 %v56
  %152 = vmatpush.msra.mxu0 %v53
  %153 = vmatpush.msra.mxu0 %v50
  %154 = vmatpush.msra.mxu0 %v47
  %155 = vmatpush.msra.mxu0 %v44
  %156 = vmatpush.msra.mxu0 %v41
  %157 = vmatpush.msra.mxu0 %v38
  %158 = vmatpush.msra.mxu0 %v35
  %159 = vmatpush.msra.mxu0 %v32
  %160 = vmatmul.f32.gmra.mxu0 %v26
  %v161 = vpop.f32.mrf.mxu0
  %v162 = vadd.f32 %v82, %v161
  %163 = vmatmul.f32.gmra.mxu0 %v27
  %v164 = vpop.f32.mrf.mxu0
  %v165 = vadd.f32 %v82, %v164
  %166 = vmatmul.f32.gmra.mxu0 %v28
  %v167 = vpop.f32.mrf.mxu0
  %v168 = vadd.f32 %v82, %v167
  %169 = vmatmul.f32.gmra.mxu0 %v29
  %v170 = vpop.f32.mrf.mxu0
  %v171 = vadd.f32 %v82, %v170
  %172 = vdwg.mxu0
  %173 = vmatpush.xpose.msra.mxu0 0.0
  %174 = vmatpush.xpose.msra.mxu0 0.0
  %175 = vmatpush.xpose.msra.mxu0 0.0
  %176 = vmatpush.xpose.msra.mxu0 0.0
  %177 = vmatpush.xpose.msra.mxu0 0.0
  %178 = vmatpush.xpose.msra.mxu0 0.0
  %179 = vmatpush.xpose.msra.mxu0 0.0
  %180 = vmatpush.xpose.msra.mxu0 0.0
  %181 = vmatpush.xpose.msra.mxu0 0.0
  %182 = vmatpush.xpose.msra.mxu0 0.0
  %183 = vmatpush.xpose.msra.mxu0 0.0
  %184 = vmatpush.xpose.msra.mxu0 0.0
  %185 = vmatpush.xpose.msra.mxu0 0.0
  %186 = vmatpush.xpose.msra.mxu0 0.0
  %187 = vmatpush.xpose.msra.mxu0 %v136
  %188 = vmatpush.xpose.msra.mxu0 %v133
  %189 = vmatmul.f32.gmra.mxu0 %v104
  %v190 = vpop.f32.mrf.mxu0
  %v191 = vadd.f32 0.0, %v190
  %192 = vmatmul.f32.gmra.mxu0 %v107
  %v193 = vpop.f32.mrf.mxu0
  %v194 = vadd.f32 0.0, %v193
  %195 = vdwg.mxu0
  %196 = vmatpush.xpose.msra.mxu0 0.0
  %197 = vmatpush.xpose.msra.mxu0 0.0
  %198 = vmatpush.xpose.msra.mxu0 0.0
  %199 = vmatpush.xpose.msra.mxu0 0.0
  %200 = vmatpush.xpose.msra.mxu0 0.0
  %201 = vmatpush.xpose.msra.mxu0 0.0
  %202 = vmatpush.xpose.msra.mxu0 0.0
  %203 = vmatpush.xpose.msra.mxu0 0.0
  %204 = vmatpush.xpose.msra.mxu0 0.0
  %205 = vmatpush.xpose.msra.mxu0 0.0
  %206 = vmatpush.xpose.msra.mxu0 0.0
  %207 = vmatpush.xpose.msra.mxu0 0.0
  %208 = vmatpush.xpose.msra.mxu0 0.0
  %209 = vmatpush.xpose.msra.mxu0 0.0
  %210 = vmatpush.xpose.msra.mxu0 %v142
  %211 = vmatpush.xpose.msra.mxu0 %v139
  %212 = vmatmul.f32.gmra.mxu0 %v110
  %v213 = vpop.f32.mrf.mxu0
  %v214 = vadd.f32 0.0, %v213
  %215 = vmatmul.f32.gmra.mxu0 %v113
  %v216 = vpop.f32.mrf.mxu0
  %v217 = vadd.f32 0.0, %v216
  %218 = vdwg.mxu0
  %v219 = vmul.f32 %v191, 0.088388346
  %v220 = vmul.f32 %v194, 0.088388346
  %v221 = vmul.f32 %v214, 0.088388346
  %v222 = vmul.f32 %v217, 0.088388346
  %vm223 = vcmask 130048
  %v224 = vsel %vm223, %v219, -inf
  %225 = vmax.xlane.f32.xlu0 %v224
  %v226 = vpop.xlane.xlu0 %225
  %v227 = vsel %vm223, %v220, -inf
  %228 = vmax.xlane.f32.xlu0 %v227
  %v229 = vpop.xlane.xlu0 %228
  %v230 = vsel %vm223, %v221, -inf
  %231 = vmax.xlane.f32.xlu0 %v230
  %v232 = vpop.xlane.xlu0 %231
  %v233 = vsel %vm223, %v222, -inf
  %234 = vmax.xlane.f32.xlu0 %v233
  %v235 = vpop.xlane.xlu0 %234
  %v236 = vsub.f32 %v219, %v226
  %v237 = vsub.f32 %v220, %v229
  %v238 = vsub.f32 %v221, %v232
  %v239 = vsub.f32 %v222, %v235
  %v240 = vmul.f32 %v236, 1.442695
  %v241 = vpow.pop %v240
  %v242 = vmul.f32 %v237, 1.442695
  %v243 = vpow.pop %v242
  %v244 = vmul.f32 %v238, 1.442695
  %v245 = vpow.pop %v244
  %v246 = vmul.f32 %v239, 1.442695
  %v247 = vpow.pop %v246
  %v248 = vsel %vm223, %v241, 0.0
  %249 = vadd.xlane.f32.xlu0 %v248
  %v250 = vpop.xlane.xlu0 %249
  %v251 = vsel %vm223, %v243, 0.0
  %252 = vadd.xlane.f32.xlu0 %v251
  %v253 = vpop.xlane.xlu0 %252
  %v254 = vsel %vm223, %v245, 0.0
  %255 = vadd.xlane.f32.xlu0 %v254
  %v256 = vpop.xlane.xlu0 %255
  %v257 = vsel %vm223, %v247, 0.0
  %258 = vadd.xlane.f32.xlu0 %v257
  %v259 = vpop.xlane.xlu0 %258
  %v260 = vrcp.pop %v250
  %v261 = vrcp.pop %v253
  %v262 = vrcp.pop %v256
  %v263 = vrcp.pop %v259
  %v264 = vmul.f32 %v241, %v260
  %v265 = vmul.f32 %v243, %v261
  %v266 = vmul.f32 %v245, %v262
  %v267 = vmul.f32 %v247, %v263
  %v269 = vsel %vm223, %v264, 0
  %v272 = vsel %vm223, %v265, 0
  %274 = vmatpush.msra.mxu0 0.0
  %275 = vmatpush.msra.mxu0 0.0
  %276 = vmatpush.msra.mxu0 0.0
  %277 = vmatpush.msra.mxu0 0.0
  %278 = vmatpush.msra.mxu0 0.0
  %279 = vmatpush.msra.mxu0 0.0
  %280 = vmatpush.msra.mxu0 0.0
  %281 = vmatpush.msra.mxu0 0.0
  %282 = vmatpush.msra.mxu0 0.0
  %283 = vmatpush.msra.mxu0 0.0
  %284 = vmatpush.msra.mxu0 0.0
  %285 = vmatpush.msra.mxu0 0.0
  %286 = vmatpush.msra.mxu0 0.0
  %287 = vmatpush.msra.mxu0 0.0
  %288 = vmatpush.msra.mxu0 %v165
  %289 = vmatpush.msra.mxu0 %v162
  %290 = vmatmul.f32.gmra.mxu0 %v269
  %v291 = vpop.f32.mrf.mxu0
  %v292 = vadd.f32 0.0, %v291
  %293 = vmatmul.f32.gmra.mxu0 %v272
  %v294 = vpop.f32.mrf.mxu0
  %v295 = vadd.f32 0.0, %v294
  %296 = vdwg.mxu0
  %v298 = vsel %vm223, %v266, 0
  %v301 = vsel %vm223, %v267, 0
  %303 = vmatpush.msra.mxu0 0.0
  %304 = vmatpush.msra.mxu0 0.0
  %305 = vmatpush.msra.mxu0 0.0
  %306 = vmatpush.msra.mxu0 0.0
  %307 = vmatpush.msra.mxu0 0.0
  %308 = vmatpush.msra.mxu0 0.0
  %309 = vmatpush.msra.mxu0 0.0
  %310 = vmatpush.msra.mxu0 0.0
  %311 = vmatpush.msra.mxu0 0.0
  %312 = vmatpush.msra.mxu0 0.0
  %313 = vmatpush.msra.mxu0 0.0
  %314 = vmatpush.msra.mxu0 0.0
  %315 = vmatpush.msra.mxu0 0.0
  %316 = vmatpush.msra.mxu0 0.0
  %317 = vmatpush.msra.mxu0 %v171
  %318 = vmatpush.msra.mxu0 %v168
  %319 = vmatmul.f32.gmra.mxu0 %v298
  %v320 = vpop.f32.mrf.mxu0
  %v321 = vadd.f32 0.0, %v320
  %322 = vmatmul.f32.gmra.mxu0 %v301
  %v323 = vpop.f32.mrf.mxu0
  %v324 = vadd.f32 0.0, %v323
  %325 = vdwg.mxu0
  %v326 = vld [vmem:[%s3] sm:$0xff]
  %v327 = vld [vmem:[%s3 + $0x8] sm:$0xff]
  %v328 = vld [vmem:[%s3 + $0x10] sm:$0xff]
  %v329 = vld [vmem:[%s3 + $0x18] sm:$0xff]
  %v330 = vld [vmem:[%s3 + $0x20] sm:$0xff]
  %v331 = vld [vmem:[%s3 + $0x28] sm:$0xff]
  %v332 = vld [vmem:[%s3 + $0x30] sm:$0xff]
  %v333 = vld [vmem:[%s3 + $0x38] sm:$0xff]
  %v334 = vld [vmem:[%s3 + $0x40] sm:$0xff]
  %v335 = vld [vmem:[%s3 + $0x48] sm:$0xff]
  %v336 = vld [vmem:[%s3 + $0x50] sm:$0xff]
  %v337 = vld [vmem:[%s3 + $0x58] sm:$0xff]
  %v338 = vld [vmem:[%s3 + $0x60] sm:$0xff]
  %v339 = vld [vmem:[%s3 + $0x68] sm:$0xff]
  %v340 = vld [vmem:[%s3 + $0x70] sm:$0xff]
  %v341 = vld [vmem:[%s3 + $0x78] sm:$0xff]
  %v342 = vld [vmem:[%s4] sm:$0x1]
  %v344 = vperm.slane %v342, 0
  %346 = vmatpush.msra.mxu0 %v341
  %347 = vmatpush.msra.mxu0 %v340
  %348 = vmatpush.msra.mxu0 %v339
  %349 = vmatpush.msra.mxu0 %v338
  %350 = vmatpush.msra.mxu0 %v337
  %351 = vmatpush.msra.mxu0 %v336
  %352 = vmatpush.msra.mxu0 %v335
  %353 = vmatpush.msra.mxu0 %v334
  %354 = vmatpush.msra.mxu0 %v333
  %355 = vmatpush.msra.mxu0 %v332
  %356 = vmatpush.msra.mxu0 %v331
  %357 = vmatpush.msra.mxu0 %v330
  %358 = vmatpush.msra.mxu0 %v329
  %359 = vmatpush.msra.mxu0 %v328
  %360 = vmatpush.msra.mxu0 %v327
  %361 = vmatpush.msra.mxu0 %v326
  %362 = vmatmul.f32.gmra.mxu0 %v292
  %v363 = vpop.f32.mrf.mxu0
  %v364 = vadd.f32 %v344, %v363
  %365 = vmatmul.f32.gmra.mxu0 %v295
  %v366 = vpop.f32.mrf.mxu0
  %v367 = vadd.f32 %v344, %v366
  %368 = vmatmul.f32.gmra.mxu0 %v321
  %v369 = vpop.f32.mrf.mxu0
  %v370 = vadd.f32 %v344, %v369
  %371 = vmatmul.f32.gmra.mxu0 %v324
  %v372 = vpop.f32.mrf.mxu0
  %v373 = vadd.f32 %v344, %v372
  %374 = vdwg.mxu0
  %v375 = vadd.f32 %v26, %v364
  %v376 = vadd.f32 %v27, %v367
  %v377 = vadd.f32 %v28, %v370
  %v378 = vadd.f32 %v29, %v373
  %v379 = vld [vmem:[%s5] sm:$0x1]
  %v380 = vld [vmem:[%s6] sm:$0x1]
  %381 = vadd.xlane.f32.xlu0 %v375
  %v382 = vpop.xlane.xlu0 %381
  %383 = vadd.xlane.f32.xlu0 %v376
  %v384 = vpop.xlane.xlu0 %383
  %385 = vadd.xlane.f32.xlu0 %v377
  %v386 = vpop.xlane.xlu0 %385
  %387 = vadd.xlane.f32.xlu0 %v378
  %v388 = vpop.xlane.xlu0 %387
  %v389 = vrcp.pop 128.0
  %v390 = vmul.f32 128.0, %v389
  %v391 = vsub.f32 1.0, %v390
  %v392 = vmul.f32 %v389, %v391
  %v393 = vadd.f32 %v389, %v392
  %vm394 = vweird.f32 %v389
  %v395 = vsel %vm394, %v389, %v393
  %v396 = vmul.f32 %v382, %v395
  %v397 = vmul.f32 %v384, %v395
  %v398 = vmul.f32 %v386, %v395
  %v399 = vmul.f32 %v388, %v395
  %v400 = vsub.f32 %v375, %v396
  %v401 = vsub.f32 %v376, %v397
  %v402 = vsub.f32 %v377, %v398
  %v403 = vsub.f32 %v378, %v399
  %v404 = vmul.f32 %v400, %v400
  %v405 = vmul.f32 %v401, %v401
  %v406 = vmul.f32 %v402, %v402
  %v407 = vmul.f32 %v403, %v403
  %408 = vadd.xlane.f32.xlu0 %v404
  %v409 = vpop.xlane.xlu0 %408
  %410 = vadd.xlane.f32.xlu0 %v405
  %v411 = vpop.xlane.xlu0 %410
  %412 = vadd.xlane.f32.xlu0 %v406
  %v413 = vpop.xlane.xlu0 %412
  %414 = vadd.xlane.f32.xlu0 %v407
  %v415 = vpop.xlane.xlu0 %414
  %v416 = vmul.f32 %v409, %v395
  %v417 = vmul.f32 %v411, %v395
  %v418 = vmul.f32 %v413, %v395
  %v419 = vmul.f32 %v415, %v395
  %v420 = vadd.f32 %v416, 1e-05
  %v421 = vadd.f32 %v417, 1e-05
  %v422 = vadd.f32 %v418, 1e-05
  %v423 = vadd.f32 %v419, 1e-05
  %v424 = vrsqrt.pop %v420
  %v425 = vmul.f32 %v424, %v420
  %v426 = vmul.f32 %v425, %v424
  %v427 = vmul.f32 0.5, %v426
  %v428 = vsub.f32 1.5, %v427
  %v429 = vmul.f32 %v424, %v428
  %vm430 = vweird.f32 %v420
  %vm431 = vweird.f32 %v424
  %vm432 = vmor %vm430, %vm431
  %v433 = vsel %vm432, %v424, %v429
  %v434 = vrsqrt.pop %v421
  %v435 = vmul.f32 %v434, %v421
  %v436 = vmul.f32 %v435, %v434
  %v437 = vmul.f32 0.5, %v436
  %v438 = vsub.f32 1.5, %v437
  %v439 = vmul.f32 %v434, %v438
  %vm440 = vweird.f32 %v421
  %vm441 = vweird.f32 %v434
  %vm442 = vmor %vm440, %vm441
  %v443 = vsel %vm442, %v434, %v439
  %v444 = vrsqrt.pop %v422
  %v445 = vmul.f32 %v444, %v422
  %v446 = vmul.f32 %v445, %v444
  %v447 = vmul.f32 0.5, %v446
  %v448 = vsub.f32 1.5, %v447
  %v449 = vmul.f32 %v444, %v448
  %vm450 = vweird.f32 %v422
  %vm451 = vweird.f32 %v444
  %vm452 = vmor %vm450, %vm451
  %v453 = vsel %vm452, %v444, %v449
  %v454 = vrsqrt.pop %v423
  %v455 = vmul.f32 %v454, %v423
  %v456 = vmul.f32 %v455, %v454
  %v457 = vmul.f32 0.5, %v456
  %v458 = vsub.f32 1.5, %v457
  %v459 = vmul.f32 %v454, %v458
  %vm460 = vweird.f32 %v423
  %vm461 = vweird.f32 %v454
  %vm462 = vmor %vm460, %vm461
  %v463 = vsel %vm462, %v454, %v459
  %v464 = vmul.f32 %v400, %v433
  %v465 = vmul.f32 %v401, %v443
  %v466 = vmul.f32 %v402, %v453
  %v467 = vmul.f32 %v403, %v463
  %v469 = vperm.slane %v379, 0
  %v471 = vmul.f32 %v464, %v469
  %v472 = vmul.f32 %v465, %v469
  %v473 = vmul.f32 %v466, %v469
  %v474 = vmul.f32 %v467, %v469
  %v476 = vperm.slane %v380, 0
  %v478 = vadd.f32 %v471, %v476
  %v479 = vadd.f32 %v472, %v476
  %v480 = vadd.f32 %v473, %v476
  %v481 = vadd.f32 %v474, %v476
  %482 = vst [vmem:[%s7] sm:$0xff] %v478
  %483 = vst [vmem:[%s7 + $0x8] sm:$0xff] %v479
  %484 = vst [vmem:[%s7 + $0x10] sm:$0xff] %v480
  %485 = vst [vmem:[%s7 + $0x18] sm:$0xff] %v481
  // Predicated region
  $region30: #{transformer_encoder_forward.7} parent=0 // pred_check
    _
  $region31: #{transformer_encoder_forward.7} parent=0 // pred_check_branch
    %487 = sbr.rel (0) target = $region33
  $region32: #{transformer_encoder_forward.7} parent=0 // pred_region
    _
  $region33: #{transformer_encoder_forward.7} parent=0 // pred_fallthru
    _
  // Predicated region
  $region34: #{transformer_encoder_forward.7} parent=0 // pred_check
    _
  $region35: #{transformer_encoder_forward.7} parent=0 // pred_check_branch
    %489 = sbr.rel (0) target = $region37
  $region36: #{transformer_encoder_forward.7} parent=0 // pred_region
    _
  $region37: #{transformer_encoder_forward.7} parent=0 // pred_fallthru
    _

// kernel: transformer_encoder_forward.9
$region0: #{transformer_encoder_forward.9}
  #allocation0 [shape = 'u32[]', space=smem, size = 0x4, offset = 0x4, fixed_abs, tag = 'smem constant byte address 0x4 - core index']
  #allocation1 [shape = 'u32[72,128]{1,0:T(1,128)}', space=vmem, size = 0x9000, scoped, tag = 'internal scratch']
  %s0 = inlined_call_operand.vmem [shape: f32[32,128], index: 0, kind: input, shape index: {}]
  %s1 = inlined_call_operand.vmem [shape: f32[1,128], index: 1, kind: input, shape index: {}]
  %s2 = inlined_call_operand.vmem [shape: f32[1,128], index: 2, kind: input, shape index: {}]
  %s3 = inlined_call_operand.vmem [shape: f32[32,128], index: 3, kind: output, shape index: {}]
  %s4 = sld [smem:[#allocation0]]
  $region22: #{transformer_encoder_forward.9} parent=0
    _
  %s6 = ssub.s32 1, %s4
  %s7 = scalar_select 0, %s6, %s4
  // Predicated region
  $region2: #{transformer_encoder_forward.9} parent=0 // pred_check
    _
  $region3: #{transformer_encoder_forward.9} parent=0 // pred_check_branch
    %9 = sbr.rel (0) target = $region5
  $region4: #{transformer_encoder_forward.9} parent=0 // pred_region
    _
  $region5: #{transformer_encoder_forward.9} parent=0 // pred_fallthru
    _
  // Predicated region
  $region6: #{transformer_encoder_forward.9} parent=0 // pred_check
    _
  $region7: #{transformer_encoder_forward.9} parent=0 // pred_check_branch
    %11 = sbr.rel (0) target = $region9
  $region8: #{transformer_encoder_forward.9} parent=0 // pred_region
    _
  $region9: #{transformer_encoder_forward.9} parent=0 // pred_fallthru
    _
  // Predicated region
  $region10: #{transformer_encoder_forward.9} parent=0 // pred_check
    _
  $region11: #{transformer_encoder_forward.9} parent=0 // pred_check_branch
    %13 = sbr.rel (0) target = $region13
  $region12: #{transformer_encoder_forward.9} parent=0 // pred_region
    _
  $region13: #{transformer_encoder_forward.9} parent=0 // pred_fallthru
    _
  %v14 = vld [vmem:[%s0] sm:$0xff]
  %v15 = vld [vmem:[%s0 + $0x8] sm:$0xff]
  %v16 = vld [vmem:[%s0 + $0x10] sm:$0xff]
  %v17 = vld [vmem:[%s0 + $0x18] sm:$0xff]
  %v18 = vld [vmem:[%s1] sm:$0x1]
  %v19 = vld [vmem:[%s2] sm:$0x1]
  %20 = vadd.xlane.f32.xlu0 %v14
  %v21 = vpop.xlane.xlu0 %20
  %22 = vadd.xlane.f32.xlu0 %v15
  %v23 = vpop.xlane.xlu0 %22
  %24 = vadd.xlane.f32.xlu0 %v16
  %v25 = vpop.xlane.xlu0 %24
  %26 = vadd.xlane.f32.xlu0 %v17
  %v27 = vpop.xlane.xlu0 %26
  %v28 = vrcp.pop 128.0
  %v29 = vmul.f32 128.0, %v28
  %v30 = vsub.f32 1.0, %v29
  %v31 = vmul.f32 %v28, %v30
  %v32 = vadd.f32 %v28, %v31
  %vm33 = vweird.f32 %v28
  %v34 = vsel %vm33, %v28, %v32
  %v35 = vmul.f32 %v21, %v34
  %v36 = vmul.f32 %v23, %v34
  %v37 = vmul.f32 %v25, %v34
  %v38 = vmul.f32 %v27, %v34
  %v39 = vsub.f32 %v14, %v35
  %v40 = vsub.f32 %v15, %v36
  %v41 = vsub.f32 %v16, %v37
  %v42 = vsub.f32 %v17, %v38
  %v43 = vmul.f32 %v39, %v39
  %v44 = vmul.f32 %v40, %v40
  %v45 = vmul.f32 %v41, %v41
  %v46 = vmul.f32 %v42, %v42
  %47 = vadd.xlane.f32.xlu0 %v43
  %v48 = vpop.xlane.xlu0 %47
  %49 = vadd.xlane.f32.xlu0 %v44
  %v50 = vpop.xlane.xlu0 %49
  %51 = vadd.xlane.f32.xlu0 %v45
  %v52 = vpop.xlane.xlu0 %51
  %53 = vadd.xlane.f32.xlu0 %v46
  %v54 = vpop.xlane.xlu0 %53
  %v55 = vmul.f32 %v48, %v34
  %v56 = vmul.f32 %v50, %v34
  %v57 = vmul.f32 %v52, %v34
  %v58 = vmul.f32 %v54, %v34
  %v59 = vadd.f32 %v55, 1e-05
  %v60 = vadd.f32 %v56, 1e-05
  %v61 = vadd.f32 %v57, 1e-05
  %v62 = vadd.f32 %v58, 1e-05
  %v63 = vrsqrt.pop %v59
  %v64 = vmul.f32 %v63, %v59
  %v65 = vmul.f32 %v64, %v63
  %v66 = vmul.f32 0.5, %v65
  %v67 = vsub.f32 1.5, %v66
  %v68 = vmul.f32 %v63, %v67
  %vm69 = vweird.f32 %v59
  %vm70 = vweird.f32 %v63
  %vm71 = vmor %vm69, %vm70
  %v72 = vsel %vm71, %v63, %v68
  %v73 = vrsqrt.pop %v60
  %v74 = vmul.f32 %v73, %v60
  %v75 = vmul.f32 %v74, %v73
  %v76 = vmul.f32 0.5, %v75
  %v77 = vsub.f32 1.5, %v76
  %v78 = vmul.f32 %v73, %v77
  %vm79 = vweird.f32 %v60
  %vm80 = vweird.f32 %v73
  %vm81 = vmor %vm79, %vm80
  %v82 = vsel %vm81, %v73, %v78
  %v83 = vrsqrt.pop %v61
  %v84 = vmul.f32 %v83, %v61
  %v85 = vmul.f32 %v84, %v83
  %v86 = vmul.f32 0.5, %v85
  %v87 = vsub.f32 1.5, %v86
  %v88 = vmul.f32 %v83, %v87
  %vm89 = vweird.f32 %v61
  %vm90 = vweird.f32 %v83
  %vm91 = vmor %vm89, %vm90
  %v92 = vsel %vm91, %v83, %v88
  %v93 = vrsqrt.pop %v62
  %v94 = vmul.f32 %v93, %v62
  %v95 = vmul.f32 %v94, %v93
  %v96 = vmul.f32 0.5, %v95
  %v97 = vsub.f32 1.5, %v96
  %v98 = vmul.f32 %v93, %v97
  %vm99 = vweird.f32 %v62
  %vm100 = vweird.f32 %v93
  %vm101 = vmor %vm99, %vm100
  %v102 = vsel %vm101, %v93, %v98
  %v103 = vmul.f32 %v39, %v72
  %v104 = vmul.f32 %v40, %v82
  %v105 = vmul.f32 %v41, %v92
  %v106 = vmul.f32 %v42, %v102
  %v108 = vperm.slane %v18, 0
  %v110 = vmul.f32 %v103, %v108
  %v111 = vmul.f32 %v104, %v108
  %v112 = vmul.f32 %v105, %v108
  %v113 = vmul.f32 %v106, %v108
  %v115 = vperm.slane %v19, 0
  %v117 = vadd.f32 %v110, %v115
  %v118 = vadd.f32 %v111, %v115
  %v119 = vadd.f32 %v112, %v115
  %v120 = vadd.f32 %v113, %v115
  %121 = vst [vmem:[%s3] sm:$0xff] %v117
  %122 = vst [vmem:[%s3 + $0x8] sm:$0xff] %v118
  %123 = vst [vmem:[%s3 + $0x10] sm:$0xff] %v119
  %124 = vst [vmem:[%s3 + $0x18] sm:$0xff] %v120
  // Predicated region
  $region14: #{transformer_encoder_forward.9} parent=0 // pred_check
    _
  $region15: #{transformer_encoder_forward.9} parent=0 // pred_check_branch
    %126 = sbr.rel (0) target = $region17
  $region16: #{transformer_encoder_forward.9} parent=0 // pred_region
    _
  $region17: #{transformer_encoder_forward.9} parent=0 // pred_fallthru
    _
  // Predicated region
  $region18: #{transformer_encoder_forward.9} parent=0 // pred_check
    _
  $region19: #{transformer_encoder_forward.9} parent=0 // pred_check_branch
    %128 = sbr.rel (0) target = $region21
  $region20: #{transformer_encoder_forward.9} parent=0 // pred_region
    _
  $region21: #{transformer_encoder_forward.9} parent=0 // pred_fallthru
    _

</llo_original>
